<compile_context>
chip_gen: v7x
topology: tpu7x:2x2x1
jax: 0.10.0
libtpu: 0.0.40
codegen_flags: <defaults>
</compile_context>

<pallas_src>
import functools

import jax
import jax.numpy as jnp
from jax.experimental import pallas as pl
from jax.experimental.pallas import tpu as pltpu

FLAT = 28 * 28            # MNIST flat_size = 784
FLAT_PAD = 896            # 7 * 128, lane-aligned K dim for fc1
H2 = 1024                 # num_nodes_fc_layer2
H3 = 512                  # num_nodes_fc_layer3
NUM_CLASSES = 10
OUT_PAD = 128             # lane-dense output width (sliced back to 10)
TILE_B_MAX = 512          # batch tile (rows per grid step)


def _fused_kernel(x_ref, w1_ref, b1_ref, w2_ref, b2_ref, w3_ref, b3_ref,
                  out_ref):
    # fc1 (orthogonal U already folded into w1 offline) + tanh.
    h = jnp.dot(x_ref[...], w1_ref[...], preferred_element_type=jnp.float32)
    h = jnp.tanh(h + b1_ref[...])                  # f32 elementwise (EUP tanh)
    # fc2 + tanh
    h = jnp.dot(h.astype(jnp.bfloat16), w2_ref[...],
                preferred_element_type=jnp.float32)
    h = jnp.tanh(h + b2_ref[...])
    # fc3 (output padded to 128 lanes -> unmasked lane-dense stores)
    out_ref[...] = jnp.dot(h.astype(jnp.bfloat16), w3_ref[...],
                           preferred_element_type=jnp.float32) + b3_ref[...]


def _round_up(x, m):
    return (x + m - 1) // m * m


@functools.partial(jax.jit, static_argnames=())
def fst_lay_uni_dense_net(x_nchw, U, w1, b1, w2, b2, w3, b3):
    """x_nchw: (B, 1, 28, 28) f32. Weights are (in, out); biases (out,)."""
    B = x_nchw.shape[0]
    x_flat = x_nchw.reshape(B, FLAT).astype(jnp.float32)  # torch .view semantics

    # ---- offline algebra / layout prep (plain XLA, outside the kernel) -----
    # Fold the orthogonal projection into fc1:  x @ U^T @ W1 == x @ (U^T @ W1)
    w1_eff = jnp.dot(U.T, w1, preferred_element_type=jnp.float32)   # (784, 1024)
    # Lane-align the fc1 contraction dim (784 -> 896) with zero padding.
    w1_eff = jnp.pad(w1_eff, ((0, FLAT_PAD - FLAT), (0, 0)))
    # Lane-dense output: pad fc3 from 10 -> 128 columns with zeros.
    w3_p = jnp.pad(w3, ((0, 0), (0, OUT_PAD - NUM_CLASSES)))
    b3_p = jnp.pad(b3, (0, OUT_PAD - NUM_CLASSES))

    # ---- batch tiling -------------------------------------------------------
    tile_b = TILE_B_MAX if B >= TILE_B_MAX else _round_up(B, 8)
    n_tiles = pl.cdiv(_round_up(B, 8), tile_b)
    b_pad = n_tiles * tile_b
    x_p = jnp.pad(x_flat,
                  ((0, b_pad - B), (0, FLAT_PAD - FLAT))).astype(jnp.bfloat16)

    grid = (n_tiles,)

    def w_spec(shape):
        return pl.BlockSpec(shape, lambda i: (0, 0))    # weights stay resident

    # Advisory cost estimate (3 matmuls + 2 tanh layers over the padded batch).
    flops = 2 * b_pad * (FLAT_PAD * H2 + H2 * H3 + H3 * OUT_PAD)
    transcendentals = b_pad * (H2 + H3)
    bytes_accessed = (x_p.size * 2                              # bf16 x
                      + (FLAT_PAD * H2 + H2 * H3 + H3 * OUT_PAD) * 2  # bf16 W
                      + (H2 + H3 + OUT_PAD) * 4                 # f32 biases
                      + b_pad * OUT_PAD * 4)                    # f32 out

    out = pl.pallas_call(
        _fused_kernel,
        out_shape=jax.ShapeDtypeStruct((b_pad, OUT_PAD), jnp.float32),
        grid=grid,
        in_specs=[
            pl.BlockSpec((tile_b, FLAT_PAD), lambda i: (i, 0)),  # x tile (bf16)
            w_spec((FLAT_PAD, H2)),                              # U^T @ W1 (bf16)
            w_spec((1, H2)),                                     # b1 (f32)
            w_spec((H2, H3)),                                    # W2 (bf16)
            w_spec((1, H3)),                                     # b2 (f32)
            w_spec((H3, OUT_PAD)),                               # W3 padded (bf16)
            w_spec((1, OUT_PAD)),                                # b3 padded (f32)
        ],
        out_specs=pl.BlockSpec((tile_b, OUT_PAD), lambda i: (i, 0)),
        compiler_params=pltpu.CompilerParams(
            dimension_semantics=("parallel",),
            vmem_limit_bytes=48 << 20,
        ),
        cost_estimate=pl.CostEstimate(
            flops=flops,
            transcendentals=transcendentals,
            bytes_accessed=bytes_accessed,
        ),
    )(x_p,
      w1_eff.astype(jnp.bfloat16), b1.reshape(1, H2).astype(jnp.float32),
      w2.astype(jnp.bfloat16),     b2.reshape(1, H3).astype(jnp.float32),
      w3_p.astype(jnp.bfloat16),   b3_p.reshape(1, OUT_PAD).astype(jnp.float32))

    return out[:B, :NUM_CLASSES]


def _init_params(key):
    """Deterministic parameter init (shapes per the module's __init__)."""
    ks = jax.random.split(key, 8)
    # Orthogonal U (784 x 784), analogous to get_orthogonal_matrix(28*28).
    g = jax.random.normal(ks[0], (FLAT, FLAT), jnp.float32)
    U, _ = jnp.linalg.qr(g)
    # Linear layers stored already transposed as (in, out).
    def lin(kw, kb, fan_in, fan_out):
        bound = 1.0 / jnp.sqrt(fan_in)
        w = jax.random.uniform(kw, (fan_in, fan_out), jnp.float32, -bound, bound)
        b = jax.random.uniform(kb, (fan_out,), jnp.float32, -bound, bound)
        return w, b
    w1, b1 = lin(ks[1], ks[2], FLAT, H2)
    w2, b2 = lin(ks[3], ks[4], H2, H3)
    w3, b3 = lin(ks[5], ks[6], H3, NUM_CLASSES)
    return U, w1, b1, w2, b2, w3, b3


def _reference(x_nchw, U, w1, b1, w2, b2, w3, b3):
    B = x_nchw.shape[0]
    x = x_nchw.reshape(B, FLAT)
    x = x @ U.T                       # bmm(U, vec(x)) per sample
    x = jnp.tanh(x @ w1 + b1)
    x = jnp.tanh(x @ w2 + b2)
    return x @ w3 + b3


if __name__ == "__main__":
    key = jax.random.PRNGKey(0)
    k_x, k_p = jax.random.split(key)

    B = 2
    x = jax.random.normal(k_x, (B, 1, 28, 28), jnp.float32)   # MNIST-shaped NCHW
    params = _init_params(k_p)

    out = fst_lay_uni_dense_net(x, *params)
    out = jax.block_until_ready(out)

    ref = _reference(x, *params)
    assert out.shape == (B, NUM_CLASSES)
    # bf16 MXU inputs with f32 accumulation -> looser tolerance vs f32 reference.
    assert jnp.allclose(out, ref, atol=5e-2, rtol=5e-2), "mismatch vs reference"

    print("KERNEL_OK")
</pallas_src>

<mosaic_0001>
module attributes {stable_mosaic.version = 11 : i64} {
  func.func @_fused_kernel(%arg0: i32, %arg1: memref<8x896xbf16, #tpu.memory_space<vmem>>, %arg2: memref<896x1024xbf16, #tpu.memory_space<vmem>>, %arg3: memref<1x1024xf32, #tpu.memory_space<vmem>>, %arg4: memref<1024x512xbf16, #tpu.memory_space<vmem>>, %arg5: memref<1x512xf32, #tpu.memory_space<vmem>>, %arg6: memref<512x128xbf16, #tpu.memory_space<vmem>>, %arg7: memref<1x128xf32, #tpu.memory_space<vmem>>, %arg8: memref<8x128xf32, #tpu.memory_space<vmem>>) attributes {dimension_semantics = [#tpu.dimension_semantics<parallel>], iteration_bounds = array<i64: 1>, scalar_prefetch = 0 : i64, scratch_operands = 0 : i64, tpu.core_type = #tpu.core_type<tc>, window_params = [{transform_indices = @transform_0, window_bounds = array<i64: 8, 896>}, {pipeline_mode = #tpu.pipeline_mode<synchronous>, transform_indices = @transform_1, window_bounds = array<i64: 896, 1024>}, {pipeline_mode = #tpu.pipeline_mode<synchronous>, transform_indices = @transform_2, window_bounds = array<i64: 1, 1024>}, {pipeline_mode = #tpu.pipeline_mode<synchronous>, transform_indices = @transform_3, window_bounds = array<i64: 1024, 512>}, {pipeline_mode = #tpu.pipeline_mode<synchronous>, transform_indices = @transform_4, window_bounds = array<i64: 1, 512>}, {pipeline_mode = #tpu.pipeline_mode<synchronous>, transform_indices = @transform_5, window_bounds = array<i64: 512, 128>}, {pipeline_mode = #tpu.pipeline_mode<synchronous>, transform_indices = @transform_6, window_bounds = array<i64: 1, 128>}, {transform_indices = @transform_7, window_bounds = array<i64: 8, 128>}]} {
    %c0 = arith.constant 0 : index
    %c0_0 = arith.constant 0 : index
    %0 = vector.load %arg1[%c0, %c0_0] : memref<8x896xbf16, #tpu.memory_space<vmem>>, vector<8x896xbf16>
    %c0_1 = arith.constant 0 : index
    %c0_2 = arith.constant 0 : index
    %1 = vector.load %arg2[%c0_1, %c0_2] : memref<896x1024xbf16, #tpu.memory_space<vmem>>, vector<896x1024xbf16>
    %cst = arith.constant dense<0.000000e+00> : vector<8x1024xf32>
    %2 = tpu.matmul %0, %1, %cst {dimension_numbers = #tpu.dot_dimension_numbers<[1], [0], [0], [1], [0, 0, 1, 1], [], []>} : vector<8x896xbf16>, vector<896x1024xbf16>, vector<8x1024xf32> -> vector<8x1024xf32>
    %c0_3 = arith.constant 0 : index
    %c0_4 = arith.constant 0 : index
    %3 = vector.load %arg3[%c0_3, %c0_4] : memref<1x1024xf32, #tpu.memory_space<vmem>>, vector<1x1024xf32>
    %4 = vector.broadcast %3 : vector<1x1024xf32> to vector<8x1024xf32>
    %5 = arith.addf %2, %4 : vector<8x1024xf32>
    %6 = math.tanh %5 : vector<8x1024xf32>
    %7 = arith.truncf %6 : vector<8x1024xf32> to vector<8x1024xbf16>
    %c0_5 = arith.constant 0 : index
    %c0_6 = arith.constant 0 : index
    %8 = vector.load %arg4[%c0_5, %c0_6] : memref<1024x512xbf16, #tpu.memory_space<vmem>>, vector<1024x512xbf16>
    %cst_7 = arith.constant dense<0.000000e+00> : vector<8x512xf32>
    %9 = tpu.matmul %7, %8, %cst_7 {dimension_numbers = #tpu.dot_dimension_numbers<[1], [0], [0], [1], [0, 0, 1, 1], [], []>} : vector<8x1024xbf16>, vector<1024x512xbf16>, vector<8x512xf32> -> vector<8x512xf32>
    %c0_8 = arith.constant 0 : index
    %c0_9 = arith.constant 0 : index
    %10 = vector.load %arg5[%c0_8, %c0_9] : memref<1x512xf32, #tpu.memory_space<vmem>>, vector<1x512xf32>
    %11 = vector.broadcast %10 : vector<1x512xf32> to vector<8x512xf32>
    %12 = arith.addf %9, %11 : vector<8x512xf32>
    %13 = math.tanh %12 : vector<8x512xf32>
    %14 = arith.truncf %13 : vector<8x512xf32> to vector<8x512xbf16>
    %c0_10 = arith.constant 0 : index
    %c0_11 = arith.constant 0 : index
    %15 = vector.load %arg6[%c0_10, %c0_11] : memref<512x128xbf16, #tpu.memory_space<vmem>>, vector<512x128xbf16>
    %cst_12 = arith.constant dense<0.000000e+00> : vector<8x128xf32>
    %16 = tpu.matmul %14, %15, %cst_12 {dimension_numbers = #tpu.dot_dimension_numbers<[1], [0], [0], [1], [0, 0, 1, 1], [], []>} : vector<8x512xbf16>, vector<512x128xbf16>, vector<8x128xf32> -> vector<8x128xf32>
    %c0_13 = arith.constant 0 : index
    %c0_14 = arith.constant 0 : index
    %17 = vector.load %arg7[%c0_13, %c0_14] : memref<1x128xf32, #tpu.memory_space<vmem>>, vector<1x128xf32>
    %18 = vector.broadcast %17 : vector<1x128xf32> to vector<8x128xf32>
    %19 = arith.addf %16, %18 : vector<8x128xf32>
    %c0_15 = arith.constant 0 : index
    %c0_16 = arith.constant 0 : index
    %20 = vector.load %arg8[%c0_15, %c0_16] : memref<8x128xf32, #tpu.memory_space<vmem>>, vector<8x128xf32>
    tpu.vector_store %arg8[%c0_15, %c0_16], %19 {strides = array<i32>} : memref<8x128xf32, #tpu.memory_space<vmem>>, vector<8x128xf32>,
    return
  }
  func.func @transform_0(%arg0: i32) -> (i32, i32) {
    %c0_i32 = arith.constant 0 : i32
    %c0_i32_0 = arith.constant 0 : i32
    return %arg0, %c0_i32 : i32, i32
  }
  func.func @transform_1(%arg0: i32) -> (i32, i32) {
    %c0_i32 = arith.constant 0 : i32
    %c0_i32_0 = arith.constant 0 : i32
    %c0_i32_1 = arith.constant 0 : i32
    return %c0_i32, %c0_i32_0 : i32, i32
  }
  func.func @transform_2(%arg0: i32) -> (i32, i32) {
    %c0_i32 = arith.constant 0 : i32
    %c0_i32_0 = arith.constant 0 : i32
    %c0_i32_1 = arith.constant 0 : i32
    return %c0_i32, %c0_i32_0 : i32, i32
  }
  func.func @transform_3(%arg0: i32) -> (i32, i32) {
    %c0_i32 = arith.constant 0 : i32
    %c0_i32_0 = arith.constant 0 : i32
    %c0_i32_1 = arith.constant 0 : i32
    return %c0_i32, %c0_i32_0 : i32, i32
  }
  func.func @transform_4(%arg0: i32) -> (i32, i32) {
    %c0_i32 = arith.constant 0 : i32
    %c0_i32_0 = arith.constant 0 : i32
    %c0_i32_1 = arith.constant 0 : i32
    return %c0_i32, %c0_i32_0 : i32, i32
  }
  func.func @transform_5(%arg0: i32) -> (i32, i32) {
    %c0_i32 = arith.constant 0 : i32
    %c0_i32_0 = arith.constant 0 : i32
    %c0_i32_1 = arith.constant 0 : i32
    return %c0_i32, %c0_i32_0 : i32, i32
  }
  func.func @transform_6(%arg0: i32) -> (i32, i32) {
    %c0_i32 = arith.constant 0 : i32
    %c0_i32_0 = arith.constant 0 : i32
    %c0_i32_1 = arith.constant 0 : i32
    return %c0_i32, %c0_i32_0 : i32, i32
  }
  func.func @transform_7(%arg0: i32) -> (i32, i32) {
    %c0_i32 = arith.constant 0 : i32
    %c0_i32_0 = arith.constant 0 : i32
    return %arg0, %c0_i32 : i32, i32
  }
}

</mosaic_0001>

<llo_original>
// kernel: fst_lay_uni_dense_net.1
$region0: #{fst_lay_uni_dense_net.1}
  #allocation0 [shape = 'u32[]', space=smem, size = 0x4, offset = 0x4, fixed_abs, tag = 'smem constant byte address 0x4 - core index']
  #allocation1 [shape = 'u32[144,128]{1,0:T(1,128)}', space=vmem, size = 0x12000, scoped, tag = 'internal scratch']
  %s0 = inlined_call_operand.vmem [shape: bf16[8,896], index: 0, kind: input, shape index: {}]
  %s1 = inlined_call_operand.vmem [shape: bf16[896,1024], index: 1, kind: input, shape index: {}]
  %s2 = inlined_call_operand.vmem [shape: f32[1,1024], index: 2, kind: input, shape index: {}]
  %s3 = inlined_call_operand.vmem [shape: bf16[1024,512], index: 3, kind: input, shape index: {}]
  %s4 = inlined_call_operand.vmem [shape: f32[1,512], index: 4, kind: input, shape index: {}]
  %s5 = inlined_call_operand.vmem [shape: bf16[512,128], index: 5, kind: input, shape index: {}]
  %s6 = inlined_call_operand.vmem [shape: f32[1,128], index: 6, kind: input, shape index: {}]
  %s7 = inlined_call_operand.vmem [shape: f32[8,128], index: 7, kind: output, shape index: {}]
  %s8 = sld [smem:[#allocation0]]
  $region38: #{fst_lay_uni_dense_net.1} parent=0
    _
  %s10 = ssub.s32 1, %s8
  %s11 = scalar_select 0, %s10, %s8
  // Predicated region
  $region2: #{fst_lay_uni_dense_net.1} parent=0 // pred_check
    _
  $region3: #{fst_lay_uni_dense_net.1} parent=0 // pred_check_branch
    %13 = sbr.rel (0) target = $region5
  $region4: #{fst_lay_uni_dense_net.1} parent=0 // pred_region
    _
  $region5: #{fst_lay_uni_dense_net.1} parent=0 // pred_fallthru
    _
  // Predicated region
  $region6: #{fst_lay_uni_dense_net.1} parent=0 // pred_check
    _
  $region7: #{fst_lay_uni_dense_net.1} parent=0 // pred_check_branch
    %15 = sbr.rel (0) target = $region9
  $region8: #{fst_lay_uni_dense_net.1} parent=0 // pred_region
    _
  $region9: #{fst_lay_uni_dense_net.1} parent=0 // pred_fallthru
    _
  // Predicated region
  $region10: #{fst_lay_uni_dense_net.1} parent=0 // pred_check
    _
  $region11: #{fst_lay_uni_dense_net.1} parent=0 // pred_check_branch
    %17 = sbr.rel (0) target = $region13
  $region12: #{fst_lay_uni_dense_net.1} parent=0 // pred_region
    _
  $region13: #{fst_lay_uni_dense_net.1} parent=0 // pred_fallthru
    _
  // Predicated region
  $region14: #{fst_lay_uni_dense_net.1} parent=0 // pred_check
    _
  $region15: #{fst_lay_uni_dense_net.1} parent=0 // pred_check_branch
    %19 = sbr.rel (0) target = $region17
  $region16: #{fst_lay_uni_dense_net.1} parent=0 // pred_region
    _
  $region17: #{fst_lay_uni_dense_net.1} parent=0 // pred_fallthru
    _
  // Predicated region
  $region18: #{fst_lay_uni_dense_net.1} parent=0 // pred_check
    _
  $region19: #{fst_lay_uni_dense_net.1} parent=0 // pred_check_branch
    %21 = sbr.rel (0) target = $region21
  $region20: #{fst_lay_uni_dense_net.1} parent=0 // pred_region
    _
  $region21: #{fst_lay_uni_dense_net.1} parent=0 // pred_fallthru
    _
  // Predicated region
  $region22: #{fst_lay_uni_dense_net.1} parent=0 // pred_check
    _
  $region23: #{fst_lay_uni_dense_net.1} parent=0 // pred_check_branch
    %23 = sbr.rel (0) target = $region25
  $region24: #{fst_lay_uni_dense_net.1} parent=0 // pred_region
    _
  $region25: #{fst_lay_uni_dense_net.1} parent=0 // pred_fallthru
    _
  // Predicated region
  $region26: #{fst_lay_uni_dense_net.1} parent=0 // pred_check
    _
  $region27: #{fst_lay_uni_dense_net.1} parent=0 // pred_check_branch
    %25 = sbr.rel (0) target = $region29
  $region28: #{fst_lay_uni_dense_net.1} parent=0 // pred_region
    _
  $region29: #{fst_lay_uni_dense_net.1} parent=0 // pred_fallthru
    _
  %v27 = vld [vmem:[%s0] sm:$0xff]
  %v28 = vld [vmem:[%s0 + $0x8] sm:$0xff]
  %v29 = vld [vmem:[%s0 + $0x10] sm:$0xff]
  %v30 = vld [vmem:[%s0 + $0x18] sm:$0xf]
  %v31 = vld [vmem:[%s1] sm:$0xff]
  %v32 = vld [vmem:[%s1 + $0x8] sm:$0xff]
  %v33 = vld [vmem:[%s1 + $0x10] sm:$0xff]
  %v34 = vld [vmem:[%s1 + $0x18] sm:$0xff]
  %v35 = vld [vmem:[%s1 + $0x20] sm:$0xff]
  %v36 = vld [vmem:[%s1 + $0x28] sm:$0xff]
  %v37 = vld [vmem:[%s1 + $0x30] sm:$0xff]
  %v38 = vld [vmem:[%s1 + $0x38] sm:$0xff]
  %v39 = vld [vmem:[%s1 + $0x40] sm:$0xff]
  %v40 = vld [vmem:[%s1 + $0x48] sm:$0xff]
  %v41 = vld [vmem:[%s1 + $0x50] sm:$0xff]
  %v42 = vld [vmem:[%s1 + $0x58] sm:$0xff]
  %v43 = vld [vmem:[%s1 + $0x60] sm:$0xff]
  %v44 = vld [vmem:[%s1 + $0x68] sm:$0xff]
  %v45 = vld [vmem:[%s1 + $0x70] sm:$0xff]
  %v46 = vld [vmem:[%s1 + $0x78] sm:$0xff]
  %v47 = vld [vmem:[%s1 + $0x80] sm:$0xff]
  %v48 = vld [vmem:[%s1 + $0x88] sm:$0xff]
  %v49 = vld [vmem:[%s1 + $0x90] sm:$0xff]
  %v50 = vld [vmem:[%s1 + $0x98] sm:$0xff]
  %v51 = vld [vmem:[%s1 + $0xa0] sm:$0xff]
  %v52 = vld [vmem:[%s1 + $0xa8] sm:$0xff]
  %v53 = vld [vmem:[%s1 + $0xb0] sm:$0xff]
  %v54 = vld [vmem:[%s1 + $0xb8] sm:$0xff]
  %v55 = vld [vmem:[%s1 + $0xc0] sm:$0xff]
  %v56 = vld [vmem:[%s1 + $0xc8] sm:$0xff]
  %v57 = vld [vmem:[%s1 + $0xd0] sm:$0xff]
  %v58 = vld [vmem:[%s1 + $0xd8] sm:$0xff]
  %v59 = vld [vmem:[%s1 + $0xe0] sm:$0xff]
  %v60 = vld [vmem:[%s1 + $0xe8] sm:$0xff]
  %v61 = vld [vmem:[%s1 + $0xf0] sm:$0xff]
  %v62 = vld [vmem:[%s1 + $0xf8] sm:$0xff]
  %v63 = vld [vmem:[%s1 + $0x100] sm:$0xff]
  %v64 = vld [vmem:[%s1 + $0x108] sm:$0xff]
  %v65 = vld [vmem:[%s1 + $0x110] sm:$0xff]
  %v66 = vld [vmem:[%s1 + $0x118] sm:$0xff]
  %v67 = vld [vmem:[%s1 + $0x120] sm:$0xff]
  %v68 = vld [vmem:[%s1 + $0x128] sm:$0xff]
  %v69 = vld [vmem:[%s1 + $0x130] sm:$0xff]
  %v70 = vld [vmem:[%s1 + $0x138] sm:$0xff]
  %v71 = vld [vmem:[%s1 + $0x140] sm:$0xff]
  %v72 = vld [vmem:[%s1 + $0x148] sm:$0xff]
  %v73 = vld [vmem:[%s1 + $0x150] sm:$0xff]
  %v74 = vld [vmem:[%s1 + $0x158] sm:$0xff]
  %v75 = vld [vmem:[%s1 + $0x160] sm:$0xff]
  %v76 = vld [vmem:[%s1 + $0x168] sm:$0xff]
  %v77 = vld [vmem:[%s1 + $0x170] sm:$0xff]
  %v78 = vld [vmem:[%s1 + $0x178] sm:$0xff]
  %v79 = vld [vmem:[%s1 + $0x180] sm:$0xff]
  %v80 = vld [vmem:[%s1 + $0x188] sm:$0xff]
  %v81 = vld [vmem:[%s1 + $0x190] sm:$0xff]
  %v82 = vld [vmem:[%s1 + $0x198] sm:$0xff]
  %v83 = vld [vmem:[%s1 + $0x1a0] sm:$0xff]
  %v84 = vld [vmem:[%s1 + $0x1a8] sm:$0xff]
  %v85 = vld [vmem:[%s1 + $0x1b0] sm:$0xff]
  %v86 = vld [vmem:[%s1 + $0x1b8] sm:$0xff]
  %v87 = vld [vmem:[%s1 + $0x1c0] sm:$0xff]
  %v88 = vld [vmem:[%s1 + $0x1c8] sm:$0xff]
  %v89 = vld [vmem:[%s1 + $0x1d0] sm:$0xff]
  %v90 = vld [vmem:[%s1 + $0x1d8] sm:$0xff]
  %v91 = vld [vmem:[%s1 + $0x1e0] sm:$0xff]
  %v92 = vld [vmem:[%s1 + $0x1e8] sm:$0xff]
  %v93 = vld [vmem:[%s1 + $0x1f0] sm:$0xff]
  %v94 = vld [vmem:[%s1 + $0x1f8] sm:$0xff]
  %v95 = vld [vmem:[%s1 + $0x200] sm:$0xff]
  %v96 = vld [vmem:[%s1 + $0x208] sm:$0xff]
  %v97 = vld [vmem:[%s1 + $0x210] sm:$0xff]
  %v98 = vld [vmem:[%s1 + $0x218] sm:$0xff]
  %v99 = vld [vmem:[%s1 + $0x220] sm:$0xff]
  %v100 = vld [vmem:[%s1 + $0x228] sm:$0xff]
  %v101 = vld [vmem:[%s1 + $0x230] sm:$0xff]
  %v102 = vld [vmem:[%s1 + $0x238] sm:$0xff]
  %v103 = vld [vmem:[%s1 + $0x240] sm:$0xff]
  %v104 = vld [vmem:[%s1 + $0x248] sm:$0xff]
  %v105 = vld [vmem:[%s1 + $0x250] sm:$0xff]
  %v106 = vld [vmem:[%s1 + $0x258] sm:$0xff]
  %v107 = vld [vmem:[%s1 + $0x260] sm:$0xff]
  %v108 = vld [vmem:[%s1 + $0x268] sm:$0xff]
  %v109 = vld [vmem:[%s1 + $0x270] sm:$0xff]
  %v110 = vld [vmem:[%s1 + $0x278] sm:$0xff]
  %v111 = vld [vmem:[%s1 + $0x280] sm:$0xff]
  %v112 = vld [vmem:[%s1 + $0x288] sm:$0xff]
  %v113 = vld [vmem:[%s1 + $0x290] sm:$0xff]
  %v114 = vld [vmem:[%s1 + $0x298] sm:$0xff]
  %v115 = vld [vmem:[%s1 + $0x2a0] sm:$0xff]
  %v116 = vld [vmem:[%s1 + $0x2a8] sm:$0xff]
  %v117 = vld [vmem:[%s1 + $0x2b0] sm:$0xff]
  %v118 = vld [vmem:[%s1 + $0x2b8] sm:$0xff]
  %v119 = vld [vmem:[%s1 + $0x2c0] sm:$0xff]
  %v120 = vld [vmem:[%s1 + $0x2c8] sm:$0xff]
  %v121 = vld [vmem:[%s1 + $0x2d0] sm:$0xff]
  %v122 = vld [vmem:[%s1 + $0x2d8] sm:$0xff]
  %v123 = vld [vmem:[%s1 + $0x2e0] sm:$0xff]
  %v124 = vld [vmem:[%s1 + $0x2e8] sm:$0xff]
  %v125 = vld [vmem:[%s1 + $0x2f0] sm:$0xff]
  %v126 = vld [vmem:[%s1 + $0x2f8] sm:$0xff]
  %v127 = vld [vmem:[%s1 + $0x300] sm:$0xff]
  %v128 = vld [vmem:[%s1 + $0x308] sm:$0xff]
  %v129 = vld [vmem:[%s1 + $0x310] sm:$0xff]
  %v130 = vld [vmem:[%s1 + $0x318] sm:$0xff]
  %v131 = vld [vmem:[%s1 + $0x320] sm:$0xff]
  %v132 = vld [vmem:[%s1 + $0x328] sm:$0xff]
  %v133 = vld [vmem:[%s1 + $0x330] sm:$0xff]
  %v134 = vld [vmem:[%s1 + $0x338] sm:$0xff]
  %v135 = vld [vmem:[%s1 + $0x340] sm:$0xff]
  %v136 = vld [vmem:[%s1 + $0x348] sm:$0xff]
  %v137 = vld [vmem:[%s1 + $0x350] sm:$0xff]
  %v138 = vld [vmem:[%s1 + $0x358] sm:$0xff]
  %v139 = vld [vmem:[%s1 + $0x360] sm:$0xff]
  %v140 = vld [vmem:[%s1 + $0x368] sm:$0xff]
  %v141 = vld [vmem:[%s1 + $0x370] sm:$0xff]
  %v142 = vld [vmem:[%s1 + $0x378] sm:$0xff]
  %v143 = vld [vmem:[%s1 + $0x380] sm:$0xff]
  %v144 = vld [vmem:[%s1 + $0x388] sm:$0xff]
  %v145 = vld [vmem:[%s1 + $0x390] sm:$0xff]
  %v146 = vld [vmem:[%s1 + $0x398] sm:$0xff]
  %v147 = vld [vmem:[%s1 + $0x3a0] sm:$0xff]
  %v148 = vld [vmem:[%s1 + $0x3a8] sm:$0xff]
  %v149 = vld [vmem:[%s1 + $0x3b0] sm:$0xff]
  %v150 = vld [vmem:[%s1 + $0x3b8] sm:$0xff]
  %v151 = vld [vmem:[%s1 + $0x3c0] sm:$0xff]
  %v152 = vld [vmem:[%s1 + $0x3c8] sm:$0xff]
  %v153 = vld [vmem:[%s1 + $0x3d0] sm:$0xff]
  %v154 = vld [vmem:[%s1 + $0x3d8] sm:$0xff]
  %v155 = vld [vmem:[%s1 + $0x3e0] sm:$0xff]
  %v156 = vld [vmem:[%s1 + $0x3e8] sm:$0xff]
  %v157 = vld [vmem:[%s1 + $0x3f0] sm:$0xff]
  %v158 = vld [vmem:[%s1 + $0x3f8] sm:$0xff]
  %v159 = vld [vmem:[%s1 + $0x400] sm:$0xff]
  %v160 = vld [vmem:[%s1 + $0x408] sm:$0xff]
  %v161 = vld [vmem:[%s1 + $0x410] sm:$0xff]
  %v162 = vld [vmem:[%s1 + $0x418] sm:$0xff]
  %v163 = vld [vmem:[%s1 + $0x420] sm:$0xff]
  %v164 = vld [vmem:[%s1 + $0x428] sm:$0xff]
  %v165 = vld [vmem:[%s1 + $0x430] sm:$0xff]
  %v166 = vld [vmem:[%s1 + $0x438] sm:$0xff]
  %v167 = vld [vmem:[%s1 + $0x440] sm:$0xff]
  %v168 = vld [vmem:[%s1 + $0x448] sm:$0xff]
  %v169 = vld [vmem:[%s1 + $0x450] sm:$0xff]
  %v170 = vld [vmem:[%s1 + $0x458] sm:$0xff]
  %v171 = vld [vmem:[%s1 + $0x460] sm:$0xff]
  %v172 = vld [vmem:[%s1 + $0x468] sm:$0xff]
  %v173 = vld [vmem:[%s1 + $0x470] sm:$0xff]
  %v174 = vld [vmem:[%s1 + $0x478] sm:$0xff]
  %v175 = vld [vmem:[%s1 + $0x480] sm:$0xff]
  %v176 = vld [vmem:[%s1 + $0x488] sm:$0xff]
  %v177 = vld [vmem:[%s1 + $0x490] sm:$0xff]
  %v178 = vld [vmem:[%s1 + $0x498] sm:$0xff]
  %v179 = vld [vmem:[%s1 + $0x4a0] sm:$0xff]
  %v180 = vld [vmem:[%s1 + $0x4a8] sm:$0xff]
  %v181 = vld [vmem:[%s1 + $0x4b0] sm:$0xff]
  %v182 = vld [vmem:[%s1 + $0x4b8] sm:$0xff]
  %v183 = vld [vmem:[%s1 + $0x4c0] sm:$0xff]
  %v184 = vld [vmem:[%s1 + $0x4c8] sm:$0xff]
  %v185 = vld [vmem:[%s1 + $0x4d0] sm:$0xff]
  %v186 = vld [vmem:[%s1 + $0x4d8] sm:$0xff]
  %v187 = vld [vmem:[%s1 + $0x4e0] sm:$0xff]
  %v188 = vld [vmem:[%s1 + $0x4e8] sm:$0xff]
  %v189 = vld [vmem:[%s1 + $0x4f0] sm:$0xff]
  %v190 = vld [vmem:[%s1 + $0x4f8] sm:$0xff]
  %v191 = vld [vmem:[%s1 + $0x500] sm:$0xff]
  %v192 = vld [vmem:[%s1 + $0x508] sm:$0xff]
  %v193 = vld [vmem:[%s1 + $0x510] sm:$0xff]
  %v194 = vld [vmem:[%s1 + $0x518] sm:$0xff]
  %v195 = vld [vmem:[%s1 + $0x520] sm:$0xff]
  %v196 = vld [vmem:[%s1 + $0x528] sm:$0xff]
  %v197 = vld [vmem:[%s1 + $0x530] sm:$0xff]
  %v198 = vld [vmem:[%s1 + $0x538] sm:$0xff]
  %v199 = vld [vmem:[%s1 + $0x540] sm:$0xff]
  %v200 = vld [vmem:[%s1 + $0x548] sm:$0xff]
  %v201 = vld [vmem:[%s1 + $0x550] sm:$0xff]
  %v202 = vld [vmem:[%s1 + $0x558] sm:$0xff]
  %v203 = vld [vmem:[%s1 + $0x560] sm:$0xff]
  %v204 = vld [vmem:[%s1 + $0x568] sm:$0xff]
  %v205 = vld [vmem:[%s1 + $0x570] sm:$0xff]
  %v206 = vld [vmem:[%s1 + $0x578] sm:$0xff]
  %v207 = vld [vmem:[%s1 + $0x580] sm:$0xff]
  %v208 = vld [vmem:[%s1 + $0x588] sm:$0xff]
  %v209 = vld [vmem:[%s1 + $0x590] sm:$0xff]
  %v210 = vld [vmem:[%s1 + $0x598] sm:$0xff]
  %v211 = vld [vmem:[%s1 + $0x5a0] sm:$0xff]
  %v212 = vld [vmem:[%s1 + $0x5a8] sm:$0xff]
  %v213 = vld [vmem:[%s1 + $0x5b0] sm:$0xff]
  %v214 = vld [vmem:[%s1 + $0x5b8] sm:$0xff]
  %v215 = vld [vmem:[%s1 + $0x5c0] sm:$0xff]
  %v216 = vld [vmem:[%s1 + $0x5c8] sm:$0xff]
  %v217 = vld [vmem:[%s1 + $0x5d0] sm:$0xff]
  %v218 = vld [vmem:[%s1 + $0x5d8] sm:$0xff]
  %v219 = vld [vmem:[%s1 + $0x5e0] sm:$0xff]
  %v220 = vld [vmem:[%s1 + $0x5e8] sm:$0xff]
  %v221 = vld [vmem:[%s1 + $0x5f0] sm:$0xff]
  %v222 = vld [vmem:[%s1 + $0x5f8] sm:$0xff]
  %v223 = vld [vmem:[%s1 + $0x600] sm:$0xff]
  %v224 = vld [vmem:[%s1 + $0x608] sm:$0xff]
  %v225 = vld [vmem:[%s1 + $0x610] sm:$0xff]
  %v226 = vld [vmem:[%s1 + $0x618] sm:$0xff]
  %v227 = vld [vmem:[%s1 + $0x620] sm:$0xff]
  %v228 = vld [vmem:[%s1 + $0x628] sm:$0xff]
  %v229 = vld [vmem:[%s1 + $0x630] sm:$0xff]
  %v230 = vld [vmem:[%s1 + $0x638] sm:$0xff]
  %v231 = vld [vmem:[%s1 + $0x640] sm:$0xff]
  %v232 = vld [vmem:[%s1 + $0x648] sm:$0xff]
  %v233 = vld [vmem:[%s1 + $0x650] sm:$0xff]
  %v234 = vld [vmem:[%s1 + $0x658] sm:$0xff]
  %v235 = vld [vmem:[%s1 + $0x660] sm:$0xff]
  %v236 = vld [vmem:[%s1 + $0x668] sm:$0xff]
  %v237 = vld [vmem:[%s1 + $0x670] sm:$0xff]
  %v238 = vld [vmem:[%s1 + $0x678] sm:$0xff]
  %v239 = vld [vmem:[%s1 + $0x680] sm:$0xff]
  %v240 = vld [vmem:[%s1 + $0x688] sm:$0xff]
  %v241 = vld [vmem:[%s1 + $0x690] sm:$0xff]
  %v242 = vld [vmem:[%s1 + $0x698] sm:$0xff]
  %v243 = vld [vmem:[%s1 + $0x6a0] sm:$0xff]
  %v244 = vld [vmem:[%s1 + $0x6a8] sm:$0xff]
  %v245 = vld [vmem:[%s1 + $0x6b0] sm:$0xff]
  %v246 = vld [vmem:[%s1 + $0x6b8] sm:$0xff]
  %v247 = vld [vmem:[%s1 + $0x6c0] sm:$0xff]
  %v248 = vld [vmem:[%s1 + $0x6c8] sm:$0xff]
  %v249 = vld [vmem:[%s1 + $0x6d0] sm:$0xff]
  %v250 = vld [vmem:[%s1 + $0x6d8] sm:$0xff]
  %v251 = vld [vmem:[%s1 + $0x6e0] sm:$0xff]
  %v252 = vld [vmem:[%s1 + $0x6e8] sm:$0xff]
  %v253 = vld [vmem:[%s1 + $0x6f0] sm:$0xff]
  %v254 = vld [vmem:[%s1 + $0x6f8] sm:$0xff]
  %v255 = vld [vmem:[%s1 + $0x700] sm:$0xff]
  %v256 = vld [vmem:[%s1 + $0x708] sm:$0xff]
  %v257 = vld [vmem:[%s1 + $0x710] sm:$0xff]
  %v258 = vld [vmem:[%s1 + $0x718] sm:$0xff]
  %v259 = vld [vmem:[%s1 + $0x720] sm:$0xff]
  %v260 = vld [vmem:[%s1 + $0x728] sm:$0xff]
  %v261 = vld [vmem:[%s1 + $0x730] sm:$0xff]
  %v262 = vld [vmem:[%s1 + $0x738] sm:$0xff]
  %v263 = vld [vmem:[%s1 + $0x740] sm:$0xff]
  %v264 = vld [vmem:[%s1 + $0x748] sm:$0xff]
  %v265 = vld [vmem:[%s1 + $0x750] sm:$0xff]
  %v266 = vld [vmem:[%s1 + $0x758] sm:$0xff]
  %v267 = vld [vmem:[%s1 + $0x760] sm:$0xff]
  %v268 = vld [vmem:[%s1 + $0x768] sm:$0xff]
  %v269 = vld [vmem:[%s1 + $0x770] sm:$0xff]
  %v270 = vld [vmem:[%s1 + $0x778] sm:$0xff]
  %v271 = vld [vmem:[%s1 + $0x780] sm:$0xff]
  %v272 = vld [vmem:[%s1 + $0x788] sm:$0xff]
  %v273 = vld [vmem:[%s1 + $0x790] sm:$0xff]
  %v274 = vld [vmem:[%s1 + $0x798] sm:$0xff]
  %v275 = vld [vmem:[%s1 + $0x7a0] sm:$0xff]
  %v276 = vld [vmem:[%s1 + $0x7a8] sm:$0xff]
  %v277 = vld [vmem:[%s1 + $0x7b0] sm:$0xff]
  %v278 = vld [vmem:[%s1 + $0x7b8] sm:$0xff]
  %v279 = vld [vmem:[%s1 + $0x7c0] sm:$0xff]
  %v280 = vld [vmem:[%s1 + $0x7c8] sm:$0xff]
  %v281 = vld [vmem:[%s1 + $0x7d0] sm:$0xff]
  %v282 = vld [vmem:[%s1 + $0x7d8] sm:$0xff]
  %v283 = vld [vmem:[%s1 + $0x7e0] sm:$0xff]
  %v284 = vld [vmem:[%s1 + $0x7e8] sm:$0xff]
  %v285 = vld [vmem:[%s1 + $0x7f0] sm:$0xff]
  %v286 = vld [vmem:[%s1 + $0x7f8] sm:$0xff]
  %v287 = vld [vmem:[%s1 + $0x800] sm:$0xff]
  %v288 = vld [vmem:[%s1 + $0x808] sm:$0xff]
  %v289 = vld [vmem:[%s1 + $0x810] sm:$0xff]
  %v290 = vld [vmem:[%s1 + $0x818] sm:$0xff]
  %v291 = vld [vmem:[%s1 + $0x820] sm:$0xff]
  %v292 = vld [vmem:[%s1 + $0x828] sm:$0xff]
  %v293 = vld [vmem:[%s1 + $0x830] sm:$0xff]
  %v294 = vld [vmem:[%s1 + $0x838] sm:$0xff]
  %v295 = vld [vmem:[%s1 + $0x840] sm:$0xff]
  %v296 = vld [vmem:[%s1 + $0x848] sm:$0xff]
  %v297 = vld [vmem:[%s1 + $0x850] sm:$0xff]
  %v298 = vld [vmem:[%s1 + $0x858] sm:$0xff]
  %v299 = vld [vmem:[%s1 + $0x860] sm:$0xff]
  %v300 = vld [vmem:[%s1 + $0x868] sm:$0xff]
  %v301 = vld [vmem:[%s1 + $0x870] sm:$0xff]
  %v302 = vld [vmem:[%s1 + $0x878] sm:$0xff]
  %v303 = vld [vmem:[%s1 + $0x880] sm:$0xff]
  %v304 = vld [vmem:[%s1 + $0x888] sm:$0xff]
  %v305 = vld [vmem:[%s1 + $0x890] sm:$0xff]
  %v306 = vld [vmem:[%s1 + $0x898] sm:$0xff]
  %v307 = vld [vmem:[%s1 + $0x8a0] sm:$0xff]
  %v308 = vld [vmem:[%s1 + $0x8a8] sm:$0xff]
  %v309 = vld [vmem:[%s1 + $0x8b0] sm:$0xff]
  %v310 = vld [vmem:[%s1 + $0x8b8] sm:$0xff]
  %v311 = vld [vmem:[%s1 + $0x8c0] sm:$0xff]
  %v312 = vld [vmem:[%s1 + $0x8c8] sm:$0xff]
  %v313 = vld [vmem:[%s1 + $0x8d0] sm:$0xff]
  %v314 = vld [vmem:[%s1 + $0x8d8] sm:$0xff]
  %v315 = vld [vmem:[%s1 + $0x8e0] sm:$0xff]
  %v316 = vld [vmem:[%s1 + $0x8e8] sm:$0xff]
  %v317 = vld [vmem:[%s1 + $0x8f0] sm:$0xff]
  %v318 = vld [vmem:[%s1 + $0x8f8] sm:$0xff]
  %v319 = vld [vmem:[%s1 + $0x900] sm:$0xff]
  %v320 = vld [vmem:[%s1 + $0x908] sm:$0xff]
  %v321 = vld [vmem:[%s1 + $0x910] sm:$0xff]
  %v322 = vld [vmem:[%s1 + $0x918] sm:$0xff]
  %v323 = vld [vmem:[%s1 + $0x920] sm:$0xff]
  %v324 = vld [vmem:[%s1 + $0x928] sm:$0xff]
  %v325 = vld [vmem:[%s1 + $0x930] sm:$0xff]
  %v326 = vld [vmem:[%s1 + $0x938] sm:$0xff]
  %v327 = vld [vmem:[%s1 + $0x940] sm:$0xff]
  %v328 = vld [vmem:[%s1 + $0x948] sm:$0xff]
  %v329 = vld [vmem:[%s1 + $0x950] sm:$0xff]
  %v330 = vld [vmem:[%s1 + $0x958] sm:$0xff]
  %v331 = vld [vmem:[%s1 + $0x960] sm:$0xff]
  %v332 = vld [vmem:[%s1 + $0x968] sm:$0xff]
  %v333 = vld [vmem:[%s1 + $0x970] sm:$0xff]
  %v334 = vld [vmem:[%s1 + $0x978] sm:$0xff]
  %v335 = vld [vmem:[%s1 + $0x980] sm:$0xff]
  %v336 = vld [vmem:[%s1 + $0x988] sm:$0xff]
  %v337 = vld [vmem:[%s1 + $0x990] sm:$0xff]
  %v338 = vld [vmem:[%s1 + $0x998] sm:$0xff]
  %v339 = vld [vmem:[%s1 + $0x9a0] sm:$0xff]
  %v340 = vld [vmem:[%s1 + $0x9a8] sm:$0xff]
  %v341 = vld [vmem:[%s1 + $0x9b0] sm:$0xff]
  %v342 = vld [vmem:[%s1 + $0x9b8] sm:$0xff]
  %v343 = vld [vmem:[%s1 + $0x9c0] sm:$0xff]
  %v344 = vld [vmem:[%s1 + $0x9c8] sm:$0xff]
  %v345 = vld [vmem:[%s1 + $0x9d0] sm:$0xff]
  %v346 = vld [vmem:[%s1 + $0x9d8] sm:$0xff]
  %v347 = vld [vmem:[%s1 + $0x9e0] sm:$0xff]
  %v348 = vld [vmem:[%s1 + $0x9e8] sm:$0xff]
  %v349 = vld [vmem:[%s1 + $0x9f0] sm:$0xff]
  %v350 = vld [vmem:[%s1 + $0x9f8] sm:$0xff]
  %v351 = vld [vmem:[%s1 + $0xa00] sm:$0xff]
  %v352 = vld [vmem:[%s1 + $0xa08] sm:$0xff]
  %v353 = vld [vmem:[%s1 + $0xa10] sm:$0xff]
  %v354 = vld [vmem:[%s1 + $0xa18] sm:$0xff]
  %v355 = vld [vmem:[%s1 + $0xa20] sm:$0xff]
  %v356 = vld [vmem:[%s1 + $0xa28] sm:$0xff]
  %v357 = vld [vmem:[%s1 + $0xa30] sm:$0xff]
  %v358 = vld [vmem:[%s1 + $0xa38] sm:$0xff]
  %v359 = vld [vmem:[%s1 + $0xa40] sm:$0xff]
  %v360 = vld [vmem:[%s1 + $0xa48] sm:$0xff]
  %v361 = vld [vmem:[%s1 + $0xa50] sm:$0xff]
  %v362 = vld [vmem:[%s1 + $0xa58] sm:$0xff]
  %v363 = vld [vmem:[%s1 + $0xa60] sm:$0xff]
  %v364 = vld [vmem:[%s1 + $0xa68] sm:$0xff]
  %v365 = vld [vmem:[%s1 + $0xa70] sm:$0xff]
  %v366 = vld [vmem:[%s1 + $0xa78] sm:$0xff]
  %v367 = vld [vmem:[%s1 + $0xa80] sm:$0xff]
  %v368 = vld [vmem:[%s1 + $0xa88] sm:$0xff]
  %v369 = vld [vmem:[%s1 + $0xa90] sm:$0xff]
  %v370 = vld [vmem:[%s1 + $0xa98] sm:$0xff]
  %v371 = vld [vmem:[%s1 + $0xaa0] sm:$0xff]
  %v372 = vld [vmem:[%s1 + $0xaa8] sm:$0xff]
  %v373 = vld [vmem:[%s1 + $0xab0] sm:$0xff]
  %v374 = vld [vmem:[%s1 + $0xab8] sm:$0xff]
  %v375 = vld [vmem:[%s1 + $0xac0] sm:$0xff]
  %v376 = vld [vmem:[%s1 + $0xac8] sm:$0xff]
  %v377 = vld [vmem:[%s1 + $0xad0] sm:$0xff]
  %v378 = vld [vmem:[%s1 + $0xad8] sm:$0xff]
  %v379 = vld [vmem:[%s1 + $0xae0] sm:$0xff]
  %v380 = vld [vmem:[%s1 + $0xae8] sm:$0xff]
  %v381 = vld [vmem:[%s1 + $0xaf0] sm:$0xff]
  %v382 = vld [vmem:[%s1 + $0xaf8] sm:$0xff]
  %v383 = vld [vmem:[%s1 + $0xb00] sm:$0xff]
  %v384 = vld [vmem:[%s1 + $0xb08] sm:$0xff]
  %v385 = vld [vmem:[%s1 + $0xb10] sm:$0xff]
  %v386 = vld [vmem:[%s1 + $0xb18] sm:$0xff]
  %v387 = vld [vmem:[%s1 + $0xb20] sm:$0xff]
  %v388 = vld [vmem:[%s1 + $0xb28] sm:$0xff]
  %v389 = vld [vmem:[%s1 + $0xb30] sm:$0xff]
  %v390 = vld [vmem:[%s1 + $0xb38] sm:$0xff]
  %v391 = vld [vmem:[%s1 + $0xb40] sm:$0xff]
  %v392 = vld [vmem:[%s1 + $0xb48] sm:$0xff]
  %v393 = vld [vmem:[%s1 + $0xb50] sm:$0xff]
  %v394 = vld [vmem:[%s1 + $0xb58] sm:$0xff]
  %v395 = vld [vmem:[%s1 + $0xb60] sm:$0xff]
  %v396 = vld [vmem:[%s1 + $0xb68] sm:$0xff]
  %v397 = vld [vmem:[%s1 + $0xb70] sm:$0xff]
  %v398 = vld [vmem:[%s1 + $0xb78] sm:$0xff]
  %v399 = vld [vmem:[%s1 + $0xb80] sm:$0xff]
  %v400 = vld [vmem:[%s1 + $0xb88] sm:$0xff]
  %v401 = vld [vmem:[%s1 + $0xb90] sm:$0xff]
  %v402 = vld [vmem:[%s1 + $0xb98] sm:$0xff]
  %v403 = vld [vmem:[%s1 + $0xba0] sm:$0xff]
  %v404 = vld [vmem:[%s1 + $0xba8] sm:$0xff]
  %v405 = vld [vmem:[%s1 + $0xbb0] sm:$0xff]
  %v406 = vld [vmem:[%s1 + $0xbb8] sm:$0xff]
  %v407 = vld [vmem:[%s1 + $0xbc0] sm:$0xff]
  %v408 = vld [vmem:[%s1 + $0xbc8] sm:$0xff]
  %v409 = vld [vmem:[%s1 + $0xbd0] sm:$0xff]
  %v410 = vld [vmem:[%s1 + $0xbd8] sm:$0xff]
  %v411 = vld [vmem:[%s1 + $0xbe0] sm:$0xff]
  %v412 = vld [vmem:[%s1 + $0xbe8] sm:$0xff]
  %v413 = vld [vmem:[%s1 + $0xbf0] sm:$0xff]
  %v414 = vld [vmem:[%s1 + $0xbf8] sm:$0xff]
  %v415 = vld [vmem:[%s1 + $0xc00] sm:$0xff]
  %v416 = vld [vmem:[%s1 + $0xc08] sm:$0xff]
  %v417 = vld [vmem:[%s1 + $0xc10] sm:$0xff]
  %v418 = vld [vmem:[%s1 + $0xc18] sm:$0xff]
  %v419 = vld [vmem:[%s1 + $0xc20] sm:$0xff]
  %v420 = vld [vmem:[%s1 + $0xc28] sm:$0xff]
  %v421 = vld [vmem:[%s1 + $0xc30] sm:$0xff]
  %v422 = vld [vmem:[%s1 + $0xc38] sm:$0xff]
  %v423 = vld [vmem:[%s1 + $0xc40] sm:$0xff]
  %v424 = vld [vmem:[%s1 + $0xc48] sm:$0xff]
  %v425 = vld [vmem:[%s1 + $0xc50] sm:$0xff]
  %v426 = vld [vmem:[%s1 + $0xc58] sm:$0xff]
  %v427 = vld [vmem:[%s1 + $0xc60] sm:$0xff]
  %v428 = vld [vmem:[%s1 + $0xc68] sm:$0xff]
  %v429 = vld [vmem:[%s1 + $0xc70] sm:$0xff]
  %v430 = vld [vmem:[%s1 + $0xc78] sm:$0xff]
  %v431 = vld [vmem:[%s1 + $0xc80] sm:$0xff]
  %v432 = vld [vmem:[%s1 + $0xc88] sm:$0xff]
  %v433 = vld [vmem:[%s1 + $0xc90] sm:$0xff]
  %v434 = vld [vmem:[%s1 + $0xc98] sm:$0xff]
  %v435 = vld [vmem:[%s1 + $0xca0] sm:$0xff]
  %v436 = vld [vmem:[%s1 + $0xca8] sm:$0xff]
  %v437 = vld [vmem:[%s1 + $0xcb0] sm:$0xff]
  %v438 = vld [vmem:[%s1 + $0xcb8] sm:$0xff]
  %v439 = vld [vmem:[%s1 + $0xcc0] sm:$0xff]
  %v440 = vld [vmem:[%s1 + $0xcc8] sm:$0xff]
  %v441 = vld [vmem:[%s1 + $0xcd0] sm:$0xff]
  %v442 = vld [vmem:[%s1 + $0xcd8] sm:$0xff]
  %v443 = vld [vmem:[%s1 + $0xce0] sm:$0xff]
  %v444 = vld [vmem:[%s1 + $0xce8] sm:$0xff]
  %v445 = vld [vmem:[%s1 + $0xcf0] sm:$0xff]
  %v446 = vld [vmem:[%s1 + $0xcf8] sm:$0xff]
  %v447 = vld [vmem:[%s1 + $0xd00] sm:$0xff]
  %v448 = vld [vmem:[%s1 + $0xd08] sm:$0xff]
  %v449 = vld [vmem:[%s1 + $0xd10] sm:$0xff]
  %v450 = vld [vmem:[%s1 + $0xd18] sm:$0xff]
  %v451 = vld [vmem:[%s1 + $0xd20] sm:$0xff]
  %v452 = vld [vmem:[%s1 + $0xd28] sm:$0xff]
  %v453 = vld [vmem:[%s1 + $0xd30] sm:$0xff]
  %v454 = vld [vmem:[%s1 + $0xd38] sm:$0xff]
  %v455 = vld [vmem:[%s1 + $0xd40] sm:$0xff]
  %v456 = vld [vmem:[%s1 + $0xd48] sm:$0xff]
  %v457 = vld [vmem:[%s1 + $0xd50] sm:$0xff]
  %v458 = vld [vmem:[%s1 + $0xd58] sm:$0xff]
  %v459 = vld [vmem:[%s1 + $0xd60] sm:$0xff]
  %v460 = vld [vmem:[%s1 + $0xd68] sm:$0xff]
  %v461 = vld [vmem:[%s1 + $0xd70] sm:$0xff]
  %v462 = vld [vmem:[%s1 + $0xd78] sm:$0xff]
  %v463 = vld [vmem:[%s1 + $0xd80] sm:$0xff]
  %v464 = vld [vmem:[%s1 + $0xd88] sm:$0xff]
  %v465 = vld [vmem:[%s1 + $0xd90] sm:$0xff]
  %v466 = vld [vmem:[%s1 + $0xd98] sm:$0xff]
  %v467 = vld [vmem:[%s1 + $0xda0] sm:$0xff]
  %v468 = vld [vmem:[%s1 + $0xda8] sm:$0xff]
  %v469 = vld [vmem:[%s1 + $0xdb0] sm:$0xff]
  %v470 = vld [vmem:[%s1 + $0xdb8] sm:$0xff]
  %v471 = vld [vmem:[%s1 + $0xdc0] sm:$0xff]
  %v472 = vld [vmem:[%s1 + $0xdc8] sm:$0xff]
  %v473 = vld [vmem:[%s1 + $0xdd0] sm:$0xff]
  %v474 = vld [vmem:[%s1 + $0xdd8] sm:$0xff]
  %v475 = vld [vmem:[%s1 + $0xde0] sm:$0xff]
  %v476 = vld [vmem:[%s1 + $0xde8] sm:$0xff]
  %v477 = vld [vmem:[%s1 + $0xdf0] sm:$0xff]
  %v478 = vld [vmem:[%s1 + $0xdf8] sm:$0xff]
  %v479 = vld [vmem:[%s2] sm:$0xff]
  %v481 = vlaneseq
  %v482 = vshrl.u32 %v481, 7
  %v483 = vsub.s32 0, %v482
  %v484 = vrot.slane %v479, %v483
  %v485 = vlaneseq
  %v486 = vshrl.u32 %v485, 7
  %v487 = vsub.s32 1, %v486
  %v488 = vrot.slane %v479, %v487
  %v489 = vlaneseq
  %v490 = vshrl.u32 %v489, 7
  %v491 = vsub.s32 2, %v490
  %v492 = vrot.slane %v479, %v491
  %v493 = vlaneseq
  %v494 = vshrl.u32 %v493, 7
  %v495 = vsub.s32 3, %v494
  %v496 = vrot.slane %v479, %v495
  %v497 = vlaneseq
  %v498 = vshrl.u32 %v497, 7
  %v499 = vsub.s32 4, %v498
  %v500 = vrot.slane %v479, %v499
  %v501 = vlaneseq
  %v502 = vshrl.u32 %v501, 7
  %v503 = vsub.s32 5, %v502
  %v504 = vrot.slane %v479, %v503
  %v505 = vlaneseq
  %v506 = vshrl.u32 %v505, 7
  %v507 = vsub.s32 6, %v506
  %v508 = vrot.slane %v479, %v507
  %v509 = vlaneseq
  %v510 = vshrl.u32 %v509, 7
  %v511 = vsub.s32 7, %v510
  %v512 = vrot.slane %v479, %v511
  %v525 = vunpack.c.l.b16 %v27
  %v526 = vunpack.c.h.b16 %v27
  %v527 = vunpack.c.l.b16 %v28
  %v528 = vunpack.c.h.b16 %v28
  %v529 = vunpack.c.l.b16 %v29
  %v530 = vunpack.c.h.b16 %v29
  %v531 = vunpack.c.l.b16 %v30
  %v532 = vpack.c.b16 %v525, %v525
  %v533 = vpack.c.b16 %v526, %v526
  %v534 = vpack.c.b16 %v527, %v527
  %v535 = vpack.c.b16 %v528, %v528
  %v536 = vpack.c.b16 %v529, %v529
  %v537 = vpack.c.b16 %v530, %v530
  %v538 = vpack.c.b16 %v531, %v531
  %v994 = vunpack.c.l.b16 %v31
  %v995 = vunpack.c.h.b16 %v31
  %v996 = vunpack.c.l.b16 %v32
  %v997 = vunpack.c.h.b16 %v32
  %v998 = vunpack.c.l.b16 %v33
  %v999 = vunpack.c.h.b16 %v33
  %v1000 = vunpack.c.l.b16 %v34
  %v1001 = vunpack.c.h.b16 %v34
  %v1002 = vunpack.c.l.b16 %v35
  %v1003 = vunpack.c.h.b16 %v35
  %v1004 = vunpack.c.l.b16 %v36
  %v1005 = vunpack.c.h.b16 %v36
  %v1006 = vunpack.c.l.b16 %v37
  %v1007 = vunpack.c.h.b16 %v37
  %v1008 = vunpack.c.l.b16 %v38
  %v1009 = vunpack.c.h.b16 %v38
  %v1010 = vunpack.c.l.b16 %v39
  %v1011 = vunpack.c.h.b16 %v39
  %v1012 = vunpack.c.l.b16 %v40
  %v1013 = vunpack.c.h.b16 %v40
  %v1014 = vunpack.c.l.b16 %v41
  %v1015 = vunpack.c.h.b16 %v41
  %v1016 = vunpack.c.l.b16 %v42
  %v1017 = vunpack.c.h.b16 %v42
  %v1018 = vunpack.c.l.b16 %v43
  %v1019 = vunpack.c.h.b16 %v43
  %v1020 = vunpack.c.l.b16 %v44
  %v1021 = vunpack.c.h.b16 %v44
  %v1022 = vunpack.c.l.b16 %v45
  %v1023 = vunpack.c.h.b16 %v45
  %v1024 = vunpack.c.l.b16 %v46
  %v1025 = vunpack.c.h.b16 %v46
  %v1026 = vunpack.c.l.b16 %v47
  %v1027 = vunpack.c.h.b16 %v47
  %v1028 = vunpack.c.l.b16 %v48
  %v1029 = vunpack.c.h.b16 %v48
  %v1030 = vunpack.c.l.b16 %v49
  %v1031 = vunpack.c.h.b16 %v49
  %v1032 = vunpack.c.l.b16 %v50
  %v1033 = vunpack.c.h.b16 %v50
  %v1034 = vunpack.c.l.b16 %v51
  %v1035 = vunpack.c.h.b16 %v51
  %v1036 = vunpack.c.l.b16 %v52
  %v1037 = vunpack.c.h.b16 %v52
  %v1038 = vunpack.c.l.b16 %v53
  %v1039 = vunpack.c.h.b16 %v53
  %v1040 = vunpack.c.l.b16 %v54
  %v1041 = vunpack.c.h.b16 %v54
  %v1042 = vunpack.c.l.b16 %v55
  %v1043 = vunpack.c.h.b16 %v55
  %v1044 = vunpack.c.l.b16 %v56
  %v1045 = vunpack.c.h.b16 %v56
  %v1046 = vunpack.c.l.b16 %v57
  %v1047 = vunpack.c.h.b16 %v57
  %v1048 = vunpack.c.l.b16 %v58
  %v1049 = vunpack.c.h.b16 %v58
  %v1050 = vunpack.c.l.b16 %v59
  %v1051 = vunpack.c.h.b16 %v59
  %v1052 = vunpack.c.l.b16 %v60
  %v1053 = vunpack.c.h.b16 %v60
  %v1054 = vunpack.c.l.b16 %v61
  %v1055 = vunpack.c.h.b16 %v61
  %v1056 = vunpack.c.l.b16 %v62
  %v1057 = vunpack.c.h.b16 %v62
  %v1058 = vunpack.c.l.b16 %v63
  %v1059 = vunpack.c.h.b16 %v63
  %v1060 = vunpack.c.l.b16 %v64
  %v1061 = vunpack.c.h.b16 %v64
  %v1062 = vunpack.c.l.b16 %v65
  %v1063 = vunpack.c.h.b16 %v65
  %v1064 = vunpack.c.l.b16 %v66
  %v1065 = vunpack.c.h.b16 %v66
  %v1066 = vunpack.c.l.b16 %v67
  %v1067 = vunpack.c.h.b16 %v67
  %v1068 = vunpack.c.l.b16 %v68
  %v1069 = vunpack.c.h.b16 %v68
  %v1070 = vunpack.c.l.b16 %v69
  %v1071 = vunpack.c.h.b16 %v69
  %v1072 = vunpack.c.l.b16 %v70
  %v1073 = vunpack.c.h.b16 %v70
  %v1074 = vunpack.c.l.b16 %v71
  %v1075 = vunpack.c.h.b16 %v71
  %v1076 = vunpack.c.l.b16 %v72
  %v1077 = vunpack.c.h.b16 %v72
  %v1078 = vunpack.c.l.b16 %v73
  %v1079 = vunpack.c.h.b16 %v73
  %v1080 = vunpack.c.l.b16 %v74
  %v1081 = vunpack.c.h.b16 %v74
  %v1082 = vunpack.c.l.b16 %v75
  %v1083 = vunpack.c.h.b16 %v75
  %v1084 = vunpack.c.l.b16 %v76
  %v1085 = vunpack.c.h.b16 %v76
  %v1086 = vunpack.c.l.b16 %v77
  %v1087 = vunpack.c.h.b16 %v77
  %v1088 = vunpack.c.l.b16 %v78
  %v1089 = vunpack.c.h.b16 %v78
  %v1090 = vunpack.c.l.b16 %v79
  %v1091 = vunpack.c.h.b16 %v79
  %v1092 = vunpack.c.l.b16 %v80
  %v1093 = vunpack.c.h.b16 %v80
  %v1094 = vunpack.c.l.b16 %v81
  %v1095 = vunpack.c.h.b16 %v81
  %v1096 = vunpack.c.l.b16 %v82
  %v1097 = vunpack.c.h.b16 %v82
  %v1098 = vunpack.c.l.b16 %v83
  %v1099 = vunpack.c.h.b16 %v83
  %v1100 = vunpack.c.l.b16 %v84
  %v1101 = vunpack.c.h.b16 %v84
  %v1102 = vunpack.c.l.b16 %v85
  %v1103 = vunpack.c.h.b16 %v85
  %v1104 = vunpack.c.l.b16 %v86
  %v1105 = vunpack.c.h.b16 %v86
  %v1106 = vunpack.c.l.b16 %v87
  %v1107 = vunpack.c.h.b16 %v87
  %v1108 = vunpack.c.l.b16 %v88
  %v1109 = vunpack.c.h.b16 %v88
  %v1110 = vunpack.c.l.b16 %v89
  %v1111 = vunpack.c.h.b16 %v89
  %v1112 = vunpack.c.l.b16 %v90
  %v1113 = vunpack.c.h.b16 %v90
  %v1114 = vunpack.c.l.b16 %v91
  %v1115 = vunpack.c.h.b16 %v91
  %v1116 = vunpack.c.l.b16 %v92
  %v1117 = vunpack.c.h.b16 %v92
  %v1118 = vunpack.c.l.b16 %v93
  %v1119 = vunpack.c.h.b16 %v93
  %v1120 = vunpack.c.l.b16 %v94
  %v1121 = vunpack.c.h.b16 %v94
  %v1122 = vunpack.c.l.b16 %v95
  %v1123 = vunpack.c.h.b16 %v95
  %v1124 = vunpack.c.l.b16 %v96
  %v1125 = vunpack.c.h.b16 %v96
  %v1126 = vunpack.c.l.b16 %v97
  %v1127 = vunpack.c.h.b16 %v97
  %v1128 = vunpack.c.l.b16 %v98
  %v1129 = vunpack.c.h.b16 %v98
  %v1130 = vunpack.c.l.b16 %v99
  %v1131 = vunpack.c.h.b16 %v99
  %v1132 = vunpack.c.l.b16 %v100
  %v1133 = vunpack.c.h.b16 %v100
  %v1134 = vunpack.c.l.b16 %v101
  %v1135 = vunpack.c.h.b16 %v101
  %v1136 = vunpack.c.l.b16 %v102
  %v1137 = vunpack.c.h.b16 %v102
  %v1138 = vunpack.c.l.b16 %v103
  %v1139 = vunpack.c.h.b16 %v103
  %v1140 = vunpack.c.l.b16 %v104
  %v1141 = vunpack.c.h.b16 %v104
  %v1142 = vunpack.c.l.b16 %v105
  %v1143 = vunpack.c.h.b16 %v105
  %v1144 = vunpack.c.l.b16 %v106
  %v1145 = vunpack.c.h.b16 %v106
  %v1146 = vunpack.c.l.b16 %v107
  %v1147 = vunpack.c.h.b16 %v107
  %v1148 = vunpack.c.l.b16 %v108
  %v1149 = vunpack.c.h.b16 %v108
  %v1150 = vunpack.c.l.b16 %v109
  %v1151 = vunpack.c.h.b16 %v109
  %v1152 = vunpack.c.l.b16 %v110
  %v1153 = vunpack.c.h.b16 %v110
  %v1154 = vunpack.c.l.b16 %v111
  %v1155 = vunpack.c.h.b16 %v111
  %v1156 = vunpack.c.l.b16 %v112
  %v1157 = vunpack.c.h.b16 %v112
  %v1158 = vunpack.c.l.b16 %v113
  %v1159 = vunpack.c.h.b16 %v113
  %v1160 = vunpack.c.l.b16 %v114
  %v1161 = vunpack.c.h.b16 %v114
  %v1162 = vunpack.c.l.b16 %v115
  %v1163 = vunpack.c.h.b16 %v115
  %v1164 = vunpack.c.l.b16 %v116
  %v1165 = vunpack.c.h.b16 %v116
  %v1166 = vunpack.c.l.b16 %v117
  %v1167 = vunpack.c.h.b16 %v117
  %v1168 = vunpack.c.l.b16 %v118
  %v1169 = vunpack.c.h.b16 %v118
  %v1170 = vunpack.c.l.b16 %v119
  %v1171 = vunpack.c.h.b16 %v119
  %v1172 = vunpack.c.l.b16 %v120
  %v1173 = vunpack.c.h.b16 %v120
  %v1174 = vunpack.c.l.b16 %v121
  %v1175 = vunpack.c.h.b16 %v121
  %v1176 = vunpack.c.l.b16 %v122
  %v1177 = vunpack.c.h.b16 %v122
  %v1178 = vunpack.c.l.b16 %v123
  %v1179 = vunpack.c.h.b16 %v123
  %v1180 = vunpack.c.l.b16 %v124
  %v1181 = vunpack.c.h.b16 %v124
  %v1182 = vunpack.c.l.b16 %v125
  %v1183 = vunpack.c.h.b16 %v125
  %v1184 = vunpack.c.l.b16 %v126
  %v1185 = vunpack.c.h.b16 %v126
  %v1186 = vunpack.c.l.b16 %v127
  %v1187 = vunpack.c.h.b16 %v127
  %v1188 = vunpack.c.l.b16 %v128
  %v1189 = vunpack.c.h.b16 %v128
  %v1190 = vunpack.c.l.b16 %v129
  %v1191 = vunpack.c.h.b16 %v129
  %v1192 = vunpack.c.l.b16 %v130
  %v1193 = vunpack.c.h.b16 %v130
  %v1194 = vunpack.c.l.b16 %v131
  %v1195 = vunpack.c.h.b16 %v131
  %v1196 = vunpack.c.l.b16 %v132
  %v1197 = vunpack.c.h.b16 %v132
  %v1198 = vunpack.c.l.b16 %v133
  %v1199 = vunpack.c.h.b16 %v133
  %v1200 = vunpack.c.l.b16 %v134
  %v1201 = vunpack.c.h.b16 %v134
  %v1202 = vunpack.c.l.b16 %v135
  %v1203 = vunpack.c.h.b16 %v135
  %v1204 = vunpack.c.l.b16 %v136
  %v1205 = vunpack.c.h.b16 %v136
  %v1206 = vunpack.c.l.b16 %v137
  %v1207 = vunpack.c.h.b16 %v137
  %v1208 = vunpack.c.l.b16 %v138
  %v1209 = vunpack.c.h.b16 %v138
  %v1210 = vunpack.c.l.b16 %v139
  %v1211 = vunpack.c.h.b16 %v139
  %v1212 = vunpack.c.l.b16 %v140
  %v1213 = vunpack.c.h.b16 %v140
  %v1214 = vunpack.c.l.b16 %v141
  %v1215 = vunpack.c.h.b16 %v141
  %v1216 = vunpack.c.l.b16 %v142
  %v1217 = vunpack.c.h.b16 %v142
  %v1218 = vunpack.c.l.b16 %v143
  %v1219 = vunpack.c.h.b16 %v143
  %v1220 = vunpack.c.l.b16 %v144
  %v1221 = vunpack.c.h.b16 %v144
  %v1222 = vunpack.c.l.b16 %v145
  %v1223 = vunpack.c.h.b16 %v145
  %v1224 = vunpack.c.l.b16 %v146
  %v1225 = vunpack.c.h.b16 %v146
  %v1226 = vunpack.c.l.b16 %v147
  %v1227 = vunpack.c.h.b16 %v147
  %v1228 = vunpack.c.l.b16 %v148
  %v1229 = vunpack.c.h.b16 %v148
  %v1230 = vunpack.c.l.b16 %v149
  %v1231 = vunpack.c.h.b16 %v149
  %v1232 = vunpack.c.l.b16 %v150
  %v1233 = vunpack.c.h.b16 %v150
  %v1234 = vunpack.c.l.b16 %v151
  %v1235 = vunpack.c.h.b16 %v151
  %v1236 = vunpack.c.l.b16 %v152
  %v1237 = vunpack.c.h.b16 %v152
  %v1238 = vunpack.c.l.b16 %v153
  %v1239 = vunpack.c.h.b16 %v153
  %v1240 = vunpack.c.l.b16 %v154
  %v1241 = vunpack.c.h.b16 %v154
  %v1242 = vunpack.c.l.b16 %v155
  %v1243 = vunpack.c.h.b16 %v155
  %v1244 = vunpack.c.l.b16 %v156
  %v1245 = vunpack.c.h.b16 %v156
  %v1246 = vunpack.c.l.b16 %v157
  %v1247 = vunpack.c.h.b16 %v157
  %v1248 = vunpack.c.l.b16 %v158
  %v1249 = vunpack.c.h.b16 %v158
  %v1250 = vunpack.c.l.b16 %v159
  %v1251 = vunpack.c.h.b16 %v159
  %v1252 = vunpack.c.l.b16 %v160
  %v1253 = vunpack.c.h.b16 %v160
  %v1254 = vunpack.c.l.b16 %v161
  %v1255 = vunpack.c.h.b16 %v161
  %v1256 = vunpack.c.l.b16 %v162
  %v1257 = vunpack.c.h.b16 %v162
  %v1258 = vunpack.c.l.b16 %v163
  %v1259 = vunpack.c.h.b16 %v163
  %v1260 = vunpack.c.l.b16 %v164
  %v1261 = vunpack.c.h.b16 %v164
  %v1262 = vunpack.c.l.b16 %v165
  %v1263 = vunpack.c.h.b16 %v165
  %v1264 = vunpack.c.l.b16 %v166
  %v1265 = vunpack.c.h.b16 %v166
  %v1266 = vunpack.c.l.b16 %v167
  %v1267 = vunpack.c.h.b16 %v167
  %v1268 = vunpack.c.l.b16 %v168
  %v1269 = vunpack.c.h.b16 %v168
  %v1270 = vunpack.c.l.b16 %v169
  %v1271 = vunpack.c.h.b16 %v169
  %v1272 = vunpack.c.l.b16 %v170
  %v1273 = vunpack.c.h.b16 %v170
  %v1274 = vunpack.c.l.b16 %v171
  %v1275 = vunpack.c.h.b16 %v171
  %v1276 = vunpack.c.l.b16 %v172
  %v1277 = vunpack.c.h.b16 %v172
  %v1278 = vunpack.c.l.b16 %v173
  %v1279 = vunpack.c.h.b16 %v173
  %v1280 = vunpack.c.l.b16 %v174
  %v1281 = vunpack.c.h.b16 %v174
  %v1282 = vunpack.c.l.b16 %v175
  %v1283 = vunpack.c.h.b16 %v175
  %v1284 = vunpack.c.l.b16 %v176
  %v1285 = vunpack.c.h.b16 %v176
  %v1286 = vunpack.c.l.b16 %v177
  %v1287 = vunpack.c.h.b16 %v177
  %v1288 = vunpack.c.l.b16 %v178
  %v1289 = vunpack.c.h.b16 %v178
  %v1290 = vunpack.c.l.b16 %v179
  %v1291 = vunpack.c.h.b16 %v179
  %v1292 = vunpack.c.l.b16 %v180
  %v1293 = vunpack.c.h.b16 %v180
  %v1294 = vunpack.c.l.b16 %v181
  %v1295 = vunpack.c.h.b16 %v181
  %v1296 = vunpack.c.l.b16 %v182
  %v1297 = vunpack.c.h.b16 %v182
  %v1298 = vunpack.c.l.b16 %v183
  %v1299 = vunpack.c.h.b16 %v183
  %v1300 = vunpack.c.l.b16 %v184
  %v1301 = vunpack.c.h.b16 %v184
  %v1302 = vunpack.c.l.b16 %v185
  %v1303 = vunpack.c.h.b16 %v185
  %v1304 = vunpack.c.l.b16 %v186
  %v1305 = vunpack.c.h.b16 %v186
  %v1306 = vunpack.c.l.b16 %v187
  %v1307 = vunpack.c.h.b16 %v187
  %v1308 = vunpack.c.l.b16 %v188
  %v1309 = vunpack.c.h.b16 %v188
  %v1310 = vunpack.c.l.b16 %v189
  %v1311 = vunpack.c.h.b16 %v189
  %v1312 = vunpack.c.l.b16 %v190
  %v1313 = vunpack.c.h.b16 %v190
  %v1314 = vunpack.c.l.b16 %v191
  %v1315 = vunpack.c.h.b16 %v191
  %v1316 = vunpack.c.l.b16 %v192
  %v1317 = vunpack.c.h.b16 %v192
  %v1318 = vunpack.c.l.b16 %v193
  %v1319 = vunpack.c.h.b16 %v193
  %v1320 = vunpack.c.l.b16 %v194
  %v1321 = vunpack.c.h.b16 %v194
  %v1322 = vunpack.c.l.b16 %v195
  %v1323 = vunpack.c.h.b16 %v195
  %v1324 = vunpack.c.l.b16 %v196
  %v1325 = vunpack.c.h.b16 %v196
  %v1326 = vunpack.c.l.b16 %v197
  %v1327 = vunpack.c.h.b16 %v197
  %v1328 = vunpack.c.l.b16 %v198
  %v1329 = vunpack.c.h.b16 %v198
  %v1330 = vunpack.c.l.b16 %v199
  %v1331 = vunpack.c.h.b16 %v199
  %v1332 = vunpack.c.l.b16 %v200
  %v1333 = vunpack.c.h.b16 %v200
  %v1334 = vunpack.c.l.b16 %v201
  %v1335 = vunpack.c.h.b16 %v201
  %v1336 = vunpack.c.l.b16 %v202
  %v1337 = vunpack.c.h.b16 %v202
  %v1338 = vunpack.c.l.b16 %v203
  %v1339 = vunpack.c.h.b16 %v203
  %v1340 = vunpack.c.l.b16 %v204
  %v1341 = vunpack.c.h.b16 %v204
  %v1342 = vunpack.c.l.b16 %v205
  %v1343 = vunpack.c.h.b16 %v205
  %v1344 = vunpack.c.l.b16 %v206
  %v1345 = vunpack.c.h.b16 %v206
  %v1346 = vunpack.c.l.b16 %v207
  %v1347 = vunpack.c.h.b16 %v207
  %v1348 = vunpack.c.l.b16 %v208
  %v1349 = vunpack.c.h.b16 %v208
  %v1350 = vunpack.c.l.b16 %v209
  %v1351 = vunpack.c.h.b16 %v209
  %v1352 = vunpack.c.l.b16 %v210
  %v1353 = vunpack.c.h.b16 %v210
  %v1354 = vunpack.c.l.b16 %v211
  %v1355 = vunpack.c.h.b16 %v211
  %v1356 = vunpack.c.l.b16 %v212
  %v1357 = vunpack.c.h.b16 %v212
  %v1358 = vunpack.c.l.b16 %v213
  %v1359 = vunpack.c.h.b16 %v213
  %v1360 = vunpack.c.l.b16 %v214
  %v1361 = vunpack.c.h.b16 %v214
  %v1362 = vunpack.c.l.b16 %v215
  %v1363 = vunpack.c.h.b16 %v215
  %v1364 = vunpack.c.l.b16 %v216
  %v1365 = vunpack.c.h.b16 %v216
  %v1366 = vunpack.c.l.b16 %v217
  %v1367 = vunpack.c.h.b16 %v217
  %v1368 = vunpack.c.l.b16 %v218
  %v1369 = vunpack.c.h.b16 %v218
  %v1370 = vunpack.c.l.b16 %v219
  %v1371 = vunpack.c.h.b16 %v219
  %v1372 = vunpack.c.l.b16 %v220
  %v1373 = vunpack.c.h.b16 %v220
  %v1374 = vunpack.c.l.b16 %v221
  %v1375 = vunpack.c.h.b16 %v221
  %v1376 = vunpack.c.l.b16 %v222
  %v1377 = vunpack.c.h.b16 %v222
  %v1378 = vunpack.c.l.b16 %v223
  %v1379 = vunpack.c.h.b16 %v223
  %v1380 = vunpack.c.l.b16 %v224
  %v1381 = vunpack.c.h.b16 %v224
  %v1382 = vunpack.c.l.b16 %v225
  %v1383 = vunpack.c.h.b16 %v225
  %v1384 = vunpack.c.l.b16 %v226
  %v1385 = vunpack.c.h.b16 %v226
  %v1386 = vunpack.c.l.b16 %v227
  %v1387 = vunpack.c.h.b16 %v227
  %v1388 = vunpack.c.l.b16 %v228
  %v1389 = vunpack.c.h.b16 %v228
  %v1390 = vunpack.c.l.b16 %v229
  %v1391 = vunpack.c.h.b16 %v229
  %v1392 = vunpack.c.l.b16 %v230
  %v1393 = vunpack.c.h.b16 %v230
  %v1394 = vunpack.c.l.b16 %v231
  %v1395 = vunpack.c.h.b16 %v231
  %v1396 = vunpack.c.l.b16 %v232
  %v1397 = vunpack.c.h.b16 %v232
  %v1398 = vunpack.c.l.b16 %v233
  %v1399 = vunpack.c.h.b16 %v233
  %v1400 = vunpack.c.l.b16 %v234
  %v1401 = vunpack.c.h.b16 %v234
  %v1402 = vunpack.c.l.b16 %v235
  %v1403 = vunpack.c.h.b16 %v235
  %v1404 = vunpack.c.l.b16 %v236
  %v1405 = vunpack.c.h.b16 %v236
  %v1406 = vunpack.c.l.b16 %v237
  %v1407 = vunpack.c.h.b16 %v237
  %v1408 = vunpack.c.l.b16 %v238
  %v1409 = vunpack.c.h.b16 %v238
  %v1410 = vunpack.c.l.b16 %v239
  %v1411 = vunpack.c.h.b16 %v239
  %v1412 = vunpack.c.l.b16 %v240
  %v1413 = vunpack.c.h.b16 %v240
  %v1414 = vunpack.c.l.b16 %v241
  %v1415 = vunpack.c.h.b16 %v241
  %v1416 = vunpack.c.l.b16 %v242
  %v1417 = vunpack.c.h.b16 %v242
  %v1418 = vunpack.c.l.b16 %v243
  %v1419 = vunpack.c.h.b16 %v243
  %v1420 = vunpack.c.l.b16 %v244
  %v1421 = vunpack.c.h.b16 %v244
  %v1422 = vunpack.c.l.b16 %v245
  %v1423 = vunpack.c.h.b16 %v245
  %v1424 = vunpack.c.l.b16 %v246
  %v1425 = vunpack.c.h.b16 %v246
  %v1426 = vunpack.c.l.b16 %v247
  %v1427 = vunpack.c.h.b16 %v247
  %v1428 = vunpack.c.l.b16 %v248
  %v1429 = vunpack.c.h.b16 %v248
  %v1430 = vunpack.c.l.b16 %v249
  %v1431 = vunpack.c.h.b16 %v249
  %v1432 = vunpack.c.l.b16 %v250
  %v1433 = vunpack.c.h.b16 %v250
  %v1434 = vunpack.c.l.b16 %v251
  %v1435 = vunpack.c.h.b16 %v251
  %v1436 = vunpack.c.l.b16 %v252
  %v1437 = vunpack.c.h.b16 %v252
  %v1438 = vunpack.c.l.b16 %v253
  %v1439 = vunpack.c.h.b16 %v253
  %v1440 = vunpack.c.l.b16 %v254
  %v1441 = vunpack.c.h.b16 %v254
  %v1442 = vunpack.c.l.b16 %v255
  %v1443 = vunpack.c.h.b16 %v255
  %v1444 = vunpack.c.l.b16 %v256
  %v1445 = vunpack.c.h.b16 %v256
  %v1446 = vunpack.c.l.b16 %v257
  %v1447 = vunpack.c.h.b16 %v257
  %v1448 = vunpack.c.l.b16 %v258
  %v1449 = vunpack.c.h.b16 %v258
  %v1450 = vunpack.c.l.b16 %v259
  %v1451 = vunpack.c.h.b16 %v259
  %v1452 = vunpack.c.l.b16 %v260
  %v1453 = vunpack.c.h.b16 %v260
  %v1454 = vunpack.c.l.b16 %v261
  %v1455 = vunpack.c.h.b16 %v261
  %v1456 = vunpack.c.l.b16 %v262
  %v1457 = vunpack.c.h.b16 %v262
  %v1458 = vunpack.c.l.b16 %v263
  %v1459 = vunpack.c.h.b16 %v263
  %v1460 = vunpack.c.l.b16 %v264
  %v1461 = vunpack.c.h.b16 %v264
  %v1462 = vunpack.c.l.b16 %v265
  %v1463 = vunpack.c.h.b16 %v265
  %v1464 = vunpack.c.l.b16 %v266
  %v1465 = vunpack.c.h.b16 %v266
  %v1466 = vunpack.c.l.b16 %v267
  %v1467 = vunpack.c.h.b16 %v267
  %v1468 = vunpack.c.l.b16 %v268
  %v1469 = vunpack.c.h.b16 %v268
  %v1470 = vunpack.c.l.b16 %v269
  %v1471 = vunpack.c.h.b16 %v269
  %v1472 = vunpack.c.l.b16 %v270
  %v1473 = vunpack.c.h.b16 %v270
  %v1474 = vunpack.c.l.b16 %v271
  %v1475 = vunpack.c.h.b16 %v271
  %v1476 = vunpack.c.l.b16 %v272
  %v1477 = vunpack.c.h.b16 %v272
  %v1478 = vunpack.c.l.b16 %v273
  %v1479 = vunpack.c.h.b16 %v273
  %v1480 = vunpack.c.l.b16 %v274
  %v1481 = vunpack.c.h.b16 %v274
  %v1482 = vunpack.c.l.b16 %v275
  %v1483 = vunpack.c.h.b16 %v275
  %v1484 = vunpack.c.l.b16 %v276
  %v1485 = vunpack.c.h.b16 %v276
  %v1486 = vunpack.c.l.b16 %v277
  %v1487 = vunpack.c.h.b16 %v277
  %v1488 = vunpack.c.l.b16 %v278
  %v1489 = vunpack.c.h.b16 %v278
  %v1490 = vunpack.c.l.b16 %v279
  %v1491 = vunpack.c.h.b16 %v279
  %v1492 = vunpack.c.l.b16 %v280
  %v1493 = vunpack.c.h.b16 %v280
  %v1494 = vunpack.c.l.b16 %v281
  %v1495 = vunpack.c.h.b16 %v281
  %v1496 = vunpack.c.l.b16 %v282
  %v1497 = vunpack.c.h.b16 %v282
  %v1498 = vunpack.c.l.b16 %v283
  %v1499 = vunpack.c.h.b16 %v283
  %v1500 = vunpack.c.l.b16 %v284
  %v1501 = vunpack.c.h.b16 %v284
  %v1502 = vunpack.c.l.b16 %v285
  %v1503 = vunpack.c.h.b16 %v285
  %v1504 = vunpack.c.l.b16 %v286
  %v1505 = vunpack.c.h.b16 %v286
  %v1506 = vunpack.c.l.b16 %v287
  %v1507 = vunpack.c.h.b16 %v287
  %v1508 = vunpack.c.l.b16 %v288
  %v1509 = vunpack.c.h.b16 %v288
  %v1510 = vunpack.c.l.b16 %v289
  %v1511 = vunpack.c.h.b16 %v289
  %v1512 = vunpack.c.l.b16 %v290
  %v1513 = vunpack.c.h.b16 %v290
  %v1514 = vunpack.c.l.b16 %v291
  %v1515 = vunpack.c.h.b16 %v291
  %v1516 = vunpack.c.l.b16 %v292
  %v1517 = vunpack.c.h.b16 %v292
  %v1518 = vunpack.c.l.b16 %v293
  %v1519 = vunpack.c.h.b16 %v293
  %v1520 = vunpack.c.l.b16 %v294
  %v1521 = vunpack.c.h.b16 %v294
  %v1522 = vunpack.c.l.b16 %v295
  %v1523 = vunpack.c.h.b16 %v295
  %v1524 = vunpack.c.l.b16 %v296
  %v1525 = vunpack.c.h.b16 %v296
  %v1526 = vunpack.c.l.b16 %v297
  %v1527 = vunpack.c.h.b16 %v297
  %v1528 = vunpack.c.l.b16 %v298
  %v1529 = vunpack.c.h.b16 %v298
  %v1530 = vunpack.c.l.b16 %v299
  %v1531 = vunpack.c.h.b16 %v299
  %v1532 = vunpack.c.l.b16 %v300
  %v1533 = vunpack.c.h.b16 %v300
  %v1534 = vunpack.c.l.b16 %v301
  %v1535 = vunpack.c.h.b16 %v301
  %v1536 = vunpack.c.l.b16 %v302
  %v1537 = vunpack.c.h.b16 %v302
  %v1538 = vunpack.c.l.b16 %v303
  %v1539 = vunpack.c.h.b16 %v303
  %v1540 = vunpack.c.l.b16 %v304
  %v1541 = vunpack.c.h.b16 %v304
  %v1542 = vunpack.c.l.b16 %v305
  %v1543 = vunpack.c.h.b16 %v305
  %v1544 = vunpack.c.l.b16 %v306
  %v1545 = vunpack.c.h.b16 %v306
  %v1546 = vunpack.c.l.b16 %v307
  %v1547 = vunpack.c.h.b16 %v307
  %v1548 = vunpack.c.l.b16 %v308
  %v1549 = vunpack.c.h.b16 %v308
  %v1550 = vunpack.c.l.b16 %v309
  %v1551 = vunpack.c.h.b16 %v309
  %v1552 = vunpack.c.l.b16 %v310
  %v1553 = vunpack.c.h.b16 %v310
  %v1554 = vunpack.c.l.b16 %v311
  %v1555 = vunpack.c.h.b16 %v311
  %v1556 = vunpack.c.l.b16 %v312
  %v1557 = vunpack.c.h.b16 %v312
  %v1558 = vunpack.c.l.b16 %v313
  %v1559 = vunpack.c.h.b16 %v313
  %v1560 = vunpack.c.l.b16 %v314
  %v1561 = vunpack.c.h.b16 %v314
  %v1562 = vunpack.c.l.b16 %v315
  %v1563 = vunpack.c.h.b16 %v315
  %v1564 = vunpack.c.l.b16 %v316
  %v1565 = vunpack.c.h.b16 %v316
  %v1566 = vunpack.c.l.b16 %v317
  %v1567 = vunpack.c.h.b16 %v317
  %v1568 = vunpack.c.l.b16 %v318
  %v1569 = vunpack.c.h.b16 %v318
  %v1570 = vunpack.c.l.b16 %v319
  %v1571 = vunpack.c.h.b16 %v319
  %v1572 = vunpack.c.l.b16 %v320
  %v1573 = vunpack.c.h.b16 %v320
  %v1574 = vunpack.c.l.b16 %v321
  %v1575 = vunpack.c.h.b16 %v321
  %v1576 = vunpack.c.l.b16 %v322
  %v1577 = vunpack.c.h.b16 %v322
  %v1578 = vunpack.c.l.b16 %v323
  %v1579 = vunpack.c.h.b16 %v323
  %v1580 = vunpack.c.l.b16 %v324
  %v1581 = vunpack.c.h.b16 %v324
  %v1582 = vunpack.c.l.b16 %v325
  %v1583 = vunpack.c.h.b16 %v325
  %v1584 = vunpack.c.l.b16 %v326
  %v1585 = vunpack.c.h.b16 %v326
  %v1586 = vunpack.c.l.b16 %v327
  %v1587 = vunpack.c.h.b16 %v327
  %v1588 = vunpack.c.l.b16 %v328
  %v1589 = vunpack.c.h.b16 %v328
  %v1590 = vunpack.c.l.b16 %v329
  %v1591 = vunpack.c.h.b16 %v329
  %v1592 = vunpack.c.l.b16 %v330
  %v1593 = vunpack.c.h.b16 %v330
  %v1594 = vunpack.c.l.b16 %v331
  %v1595 = vunpack.c.h.b16 %v331
  %v1596 = vunpack.c.l.b16 %v332
  %v1597 = vunpack.c.h.b16 %v332
  %v1598 = vunpack.c.l.b16 %v333
  %v1599 = vunpack.c.h.b16 %v333
  %v1600 = vunpack.c.l.b16 %v334
  %v1601 = vunpack.c.h.b16 %v334
  %v1602 = vunpack.c.l.b16 %v335
  %v1603 = vunpack.c.h.b16 %v335
  %v1604 = vunpack.c.l.b16 %v336
  %v1605 = vunpack.c.h.b16 %v336
  %v1606 = vunpack.c.l.b16 %v337
  %v1607 = vunpack.c.h.b16 %v337
  %v1608 = vunpack.c.l.b16 %v338
  %v1609 = vunpack.c.h.b16 %v338
  %v1610 = vunpack.c.l.b16 %v339
  %v1611 = vunpack.c.h.b16 %v339
  %v1612 = vunpack.c.l.b16 %v340
  %v1613 = vunpack.c.h.b16 %v340
  %v1614 = vunpack.c.l.b16 %v341
  %v1615 = vunpack.c.h.b16 %v341
  %v1616 = vunpack.c.l.b16 %v342
  %v1617 = vunpack.c.h.b16 %v342
  %v1618 = vunpack.c.l.b16 %v343
  %v1619 = vunpack.c.h.b16 %v343
  %v1620 = vunpack.c.l.b16 %v344
  %v1621 = vunpack.c.h.b16 %v344
  %v1622 = vunpack.c.l.b16 %v345
  %v1623 = vunpack.c.h.b16 %v345
  %v1624 = vunpack.c.l.b16 %v346
  %v1625 = vunpack.c.h.b16 %v346
  %v1626 = vunpack.c.l.b16 %v347
  %v1627 = vunpack.c.h.b16 %v347
  %v1628 = vunpack.c.l.b16 %v348
  %v1629 = vunpack.c.h.b16 %v348
  %v1630 = vunpack.c.l.b16 %v349
  %v1631 = vunpack.c.h.b16 %v349
  %v1632 = vunpack.c.l.b16 %v350
  %v1633 = vunpack.c.h.b16 %v350
  %v1634 = vunpack.c.l.b16 %v351
  %v1635 = vunpack.c.h.b16 %v351
  %v1636 = vunpack.c.l.b16 %v352
  %v1637 = vunpack.c.h.b16 %v352
  %v1638 = vunpack.c.l.b16 %v353
  %v1639 = vunpack.c.h.b16 %v353
  %v1640 = vunpack.c.l.b16 %v354
  %v1641 = vunpack.c.h.b16 %v354
  %v1642 = vunpack.c.l.b16 %v355
  %v1643 = vunpack.c.h.b16 %v355
  %v1644 = vunpack.c.l.b16 %v356
  %v1645 = vunpack.c.h.b16 %v356
  %v1646 = vunpack.c.l.b16 %v357
  %v1647 = vunpack.c.h.b16 %v357
  %v1648 = vunpack.c.l.b16 %v358
  %v1649 = vunpack.c.h.b16 %v358
  %v1650 = vunpack.c.l.b16 %v359
  %v1651 = vunpack.c.h.b16 %v359
  %v1652 = vunpack.c.l.b16 %v360
  %v1653 = vunpack.c.h.b16 %v360
  %v1654 = vunpack.c.l.b16 %v361
  %v1655 = vunpack.c.h.b16 %v361
  %v1656 = vunpack.c.l.b16 %v362
  %v1657 = vunpack.c.h.b16 %v362
  %v1658 = vunpack.c.l.b16 %v363
  %v1659 = vunpack.c.h.b16 %v363
  %v1660 = vunpack.c.l.b16 %v364
  %v1661 = vunpack.c.h.b16 %v364
  %v1662 = vunpack.c.l.b16 %v365
  %v1663 = vunpack.c.h.b16 %v365
  %v1664 = vunpack.c.l.b16 %v366
  %v1665 = vunpack.c.h.b16 %v366
  %v1666 = vunpack.c.l.b16 %v367
  %v1667 = vunpack.c.h.b16 %v367
  %v1668 = vunpack.c.l.b16 %v368
  %v1669 = vunpack.c.h.b16 %v368
  %v1670 = vunpack.c.l.b16 %v369
  %v1671 = vunpack.c.h.b16 %v369
  %v1672 = vunpack.c.l.b16 %v370
  %v1673 = vunpack.c.h.b16 %v370
  %v1674 = vunpack.c.l.b16 %v371
  %v1675 = vunpack.c.h.b16 %v371
  %v1676 = vunpack.c.l.b16 %v372
  %v1677 = vunpack.c.h.b16 %v372
  %v1678 = vunpack.c.l.b16 %v373
  %v1679 = vunpack.c.h.b16 %v373
  %v1680 = vunpack.c.l.b16 %v374
  %v1681 = vunpack.c.h.b16 %v374
  %v1682 = vunpack.c.l.b16 %v375
  %v1683 = vunpack.c.h.b16 %v375
  %v1684 = vunpack.c.l.b16 %v376
  %v1685 = vunpack.c.h.b16 %v376
  %v1686 = vunpack.c.l.b16 %v377
  %v1687 = vunpack.c.h.b16 %v377
  %v1688 = vunpack.c.l.b16 %v378
  %v1689 = vunpack.c.h.b16 %v378
  %v1690 = vunpack.c.l.b16 %v379
  %v1691 = vunpack.c.h.b16 %v379
  %v1692 = vunpack.c.l.b16 %v380
  %v1693 = vunpack.c.h.b16 %v380
  %v1694 = vunpack.c.l.b16 %v381
  %v1695 = vunpack.c.h.b16 %v381
  %v1696 = vunpack.c.l.b16 %v382
  %v1697 = vunpack.c.h.b16 %v382
  %v1698 = vunpack.c.l.b16 %v383
  %v1699 = vunpack.c.h.b16 %v383
  %v1700 = vunpack.c.l.b16 %v384
  %v1701 = vunpack.c.h.b16 %v384
  %v1702 = vunpack.c.l.b16 %v385
  %v1703 = vunpack.c.h.b16 %v385
  %v1704 = vunpack.c.l.b16 %v386
  %v1705 = vunpack.c.h.b16 %v386
  %v1706 = vunpack.c.l.b16 %v387
  %v1707 = vunpack.c.h.b16 %v387
  %v1708 = vunpack.c.l.b16 %v388
  %v1709 = vunpack.c.h.b16 %v388
  %v1710 = vunpack.c.l.b16 %v389
  %v1711 = vunpack.c.h.b16 %v389
  %v1712 = vunpack.c.l.b16 %v390
  %v1713 = vunpack.c.h.b16 %v390
  %v1714 = vunpack.c.l.b16 %v391
  %v1715 = vunpack.c.h.b16 %v391
  %v1716 = vunpack.c.l.b16 %v392
  %v1717 = vunpack.c.h.b16 %v392
  %v1718 = vunpack.c.l.b16 %v393
  %v1719 = vunpack.c.h.b16 %v393
  %v1720 = vunpack.c.l.b16 %v394
  %v1721 = vunpack.c.h.b16 %v394
  %v1722 = vunpack.c.l.b16 %v395
  %v1723 = vunpack.c.h.b16 %v395
  %v1724 = vunpack.c.l.b16 %v396
  %v1725 = vunpack.c.h.b16 %v396
  %v1726 = vunpack.c.l.b16 %v397
  %v1727 = vunpack.c.h.b16 %v397
  %v1728 = vunpack.c.l.b16 %v398
  %v1729 = vunpack.c.h.b16 %v398
  %v1730 = vunpack.c.l.b16 %v399
  %v1731 = vunpack.c.h.b16 %v399
  %v1732 = vunpack.c.l.b16 %v400
  %v1733 = vunpack.c.h.b16 %v400
  %v1734 = vunpack.c.l.b16 %v401
  %v1735 = vunpack.c.h.b16 %v401
  %v1736 = vunpack.c.l.b16 %v402
  %v1737 = vunpack.c.h.b16 %v402
  %v1738 = vunpack.c.l.b16 %v403
  %v1739 = vunpack.c.h.b16 %v403
  %v1740 = vunpack.c.l.b16 %v404
  %v1741 = vunpack.c.h.b16 %v404
  %v1742 = vunpack.c.l.b16 %v405
  %v1743 = vunpack.c.h.b16 %v405
  %v1744 = vunpack.c.l.b16 %v406
  %v1745 = vunpack.c.h.b16 %v406
  %v1746 = vunpack.c.l.b16 %v407
  %v1747 = vunpack.c.h.b16 %v407
  %v1748 = vunpack.c.l.b16 %v408
  %v1749 = vunpack.c.h.b16 %v408
  %v1750 = vunpack.c.l.b16 %v409
  %v1751 = vunpack.c.h.b16 %v409
  %v1752 = vunpack.c.l.b16 %v410
  %v1753 = vunpack.c.h.b16 %v410
  %v1754 = vunpack.c.l.b16 %v411
  %v1755 = vunpack.c.h.b16 %v411
  %v1756 = vunpack.c.l.b16 %v412
  %v1757 = vunpack.c.h.b16 %v412
  %v1758 = vunpack.c.l.b16 %v413
  %v1759 = vunpack.c.h.b16 %v413
  %v1760 = vunpack.c.l.b16 %v414
  %v1761 = vunpack.c.h.b16 %v414
  %v1762 = vunpack.c.l.b16 %v415
  %v1763 = vunpack.c.h.b16 %v415
  %v1764 = vunpack.c.l.b16 %v416
  %v1765 = vunpack.c.h.b16 %v416
  %v1766 = vunpack.c.l.b16 %v417
  %v1767 = vunpack.c.h.b16 %v417
  %v1768 = vunpack.c.l.b16 %v418
  %v1769 = vunpack.c.h.b16 %v418
  %v1770 = vunpack.c.l.b16 %v419
  %v1771 = vunpack.c.h.b16 %v419
  %v1772 = vunpack.c.l.b16 %v420
  %v1773 = vunpack.c.h.b16 %v420
  %v1774 = vunpack.c.l.b16 %v421
  %v1775 = vunpack.c.h.b16 %v421
  %v1776 = vunpack.c.l.b16 %v422
  %v1777 = vunpack.c.h.b16 %v422
  %v1778 = vunpack.c.l.b16 %v423
  %v1779 = vunpack.c.h.b16 %v423
  %v1780 = vunpack.c.l.b16 %v424
  %v1781 = vunpack.c.h.b16 %v424
  %v1782 = vunpack.c.l.b16 %v425
  %v1783 = vunpack.c.h.b16 %v425
  %v1784 = vunpack.c.l.b16 %v426
  %v1785 = vunpack.c.h.b16 %v426
  %v1786 = vunpack.c.l.b16 %v427
  %v1787 = vunpack.c.h.b16 %v427
  %v1788 = vunpack.c.l.b16 %v428
  %v1789 = vunpack.c.h.b16 %v428
  %v1790 = vunpack.c.l.b16 %v429
  %v1791 = vunpack.c.h.b16 %v429
  %v1792 = vunpack.c.l.b16 %v430
  %v1793 = vunpack.c.h.b16 %v430
  %v1794 = vunpack.c.l.b16 %v431
  %v1795 = vunpack.c.h.b16 %v431
  %v1796 = vunpack.c.l.b16 %v432
  %v1797 = vunpack.c.h.b16 %v432
  %v1798 = vunpack.c.l.b16 %v433
  %v1799 = vunpack.c.h.b16 %v433
  %v1800 = vunpack.c.l.b16 %v434
  %v1801 = vunpack.c.h.b16 %v434
  %v1802 = vunpack.c.l.b16 %v435
  %v1803 = vunpack.c.h.b16 %v435
  %v1804 = vunpack.c.l.b16 %v436
  %v1805 = vunpack.c.h.b16 %v436
  %v1806 = vunpack.c.l.b16 %v437
  %v1807 = vunpack.c.h.b16 %v437
  %v1808 = vunpack.c.l.b16 %v438
  %v1809 = vunpack.c.h.b16 %v438
  %v1810 = vunpack.c.l.b16 %v439
  %v1811 = vunpack.c.h.b16 %v439
  %v1812 = vunpack.c.l.b16 %v440
  %v1813 = vunpack.c.h.b16 %v440
  %v1814 = vunpack.c.l.b16 %v441
  %v1815 = vunpack.c.h.b16 %v441
  %v1816 = vunpack.c.l.b16 %v442
  %v1817 = vunpack.c.h.b16 %v442
  %v1818 = vunpack.c.l.b16 %v443
  %v1819 = vunpack.c.h.b16 %v443
  %v1820 = vunpack.c.l.b16 %v444
  %v1821 = vunpack.c.h.b16 %v444
  %v1822 = vunpack.c.l.b16 %v445
  %v1823 = vunpack.c.h.b16 %v445
  %v1824 = vunpack.c.l.b16 %v446
  %v1825 = vunpack.c.h.b16 %v446
  %v1826 = vunpack.c.l.b16 %v447
  %v1827 = vunpack.c.h.b16 %v447
  %v1828 = vunpack.c.l.b16 %v448
  %v1829 = vunpack.c.h.b16 %v448
  %v1830 = vunpack.c.l.b16 %v449
  %v1831 = vunpack.c.h.b16 %v449
  %v1832 = vunpack.c.l.b16 %v450
  %v1833 = vunpack.c.h.b16 %v450
  %v1834 = vunpack.c.l.b16 %v451
  %v1835 = vunpack.c.h.b16 %v451
  %v1836 = vunpack.c.l.b16 %v452
  %v1837 = vunpack.c.h.b16 %v452
  %v1838 = vunpack.c.l.b16 %v453
  %v1839 = vunpack.c.h.b16 %v453
  %v1840 = vunpack.c.l.b16 %v454
  %v1841 = vunpack.c.h.b16 %v454
  %v1842 = vunpack.c.l.b16 %v455
  %v1843 = vunpack.c.h.b16 %v455
  %v1844 = vunpack.c.l.b16 %v456
  %v1845 = vunpack.c.h.b16 %v456
  %v1846 = vunpack.c.l.b16 %v457
  %v1847 = vunpack.c.h.b16 %v457
  %v1848 = vunpack.c.l.b16 %v458
  %v1849 = vunpack.c.h.b16 %v458
  %v1850 = vunpack.c.l.b16 %v459
  %v1851 = vunpack.c.h.b16 %v459
  %v1852 = vunpack.c.l.b16 %v460
  %v1853 = vunpack.c.h.b16 %v460
  %v1854 = vunpack.c.l.b16 %v461
  %v1855 = vunpack.c.h.b16 %v461
  %v1856 = vunpack.c.l.b16 %v462
  %v1857 = vunpack.c.h.b16 %v462
  %v1858 = vunpack.c.l.b16 %v463
  %v1859 = vunpack.c.h.b16 %v463
  %v1860 = vunpack.c.l.b16 %v464
  %v1861 = vunpack.c.h.b16 %v464
  %v1862 = vunpack.c.l.b16 %v465
  %v1863 = vunpack.c.h.b16 %v465
  %v1864 = vunpack.c.l.b16 %v466
  %v1865 = vunpack.c.h.b16 %v466
  %v1866 = vunpack.c.l.b16 %v467
  %v1867 = vunpack.c.h.b16 %v467
  %v1868 = vunpack.c.l.b16 %v468
  %v1869 = vunpack.c.h.b16 %v468
  %v1870 = vunpack.c.l.b16 %v469
  %v1871 = vunpack.c.h.b16 %v469
  %v1872 = vunpack.c.l.b16 %v470
  %v1873 = vunpack.c.h.b16 %v470
  %v1874 = vunpack.c.l.b16 %v471
  %v1875 = vunpack.c.h.b16 %v471
  %v1876 = vunpack.c.l.b16 %v472
  %v1877 = vunpack.c.h.b16 %v472
  %v1878 = vunpack.c.l.b16 %v473
  %v1879 = vunpack.c.h.b16 %v473
  %v1880 = vunpack.c.l.b16 %v474
  %v1881 = vunpack.c.h.b16 %v474
  %v1882 = vunpack.c.l.b16 %v475
  %v1883 = vunpack.c.h.b16 %v475
  %v1884 = vunpack.c.l.b16 %v476
  %v1885 = vunpack.c.h.b16 %v476
  %v1886 = vunpack.c.l.b16 %v477
  %v1887 = vunpack.c.h.b16 %v477
  %v1888 = vunpack.c.l.b16 %v478
  %v1889 = vunpack.c.h.b16 %v478
  %v1890 = vpack.c.b16 %v1002, %v994
  %v1891 = vpack.c.b16 %v1003, %v995
  %v1892 = vpack.c.b16 %v1004, %v996
  %v1893 = vpack.c.b16 %v1005, %v997
  %v1894 = vpack.c.b16 %v1006, %v998
  %v1895 = vpack.c.b16 %v1007, %v999
  %v1896 = vpack.c.b16 %v1008, %v1000
  %v1897 = vpack.c.b16 %v1009, %v1001
  %v1898 = vpack.c.b16 %v1018, %v1010
  %v1899 = vpack.c.b16 %v1019, %v1011
  %v1900 = vpack.c.b16 %v1020, %v1012
  %v1901 = vpack.c.b16 %v1021, %v1013
  %v1902 = vpack.c.b16 %v1022, %v1014
  %v1903 = vpack.c.b16 %v1023, %v1015
  %v1904 = vpack.c.b16 %v1024, %v1016
  %v1905 = vpack.c.b16 %v1025, %v1017
  %v1906 = vpack.c.b16 %v1034, %v1026
  %v1907 = vpack.c.b16 %v1035, %v1027
  %v1908 = vpack.c.b16 %v1036, %v1028
  %v1909 = vpack.c.b16 %v1037, %v1029
  %v1910 = vpack.c.b16 %v1038, %v1030
  %v1911 = vpack.c.b16 %v1039, %v1031
  %v1912 = vpack.c.b16 %v1040, %v1032
  %v1913 = vpack.c.b16 %v1041, %v1033
  %v1914 = vpack.c.b16 %v1050, %v1042
  %v1915 = vpack.c.b16 %v1051, %v1043
  %v1916 = vpack.c.b16 %v1052, %v1044
  %v1917 = vpack.c.b16 %v1053, %v1045
  %v1918 = vpack.c.b16 %v1054, %v1046
  %v1919 = vpack.c.b16 %v1055, %v1047
  %v1920 = vpack.c.b16 %v1056, %v1048
  %v1921 = vpack.c.b16 %v1057, %v1049
  %v1922 = vpack.c.b16 %v1066, %v1058
  %v1923 = vpack.c.b16 %v1067, %v1059
  %v1924 = vpack.c.b16 %v1068, %v1060
  %v1925 = vpack.c.b16 %v1069, %v1061
  %v1926 = vpack.c.b16 %v1070, %v1062
  %v1927 = vpack.c.b16 %v1071, %v1063
  %v1928 = vpack.c.b16 %v1072, %v1064
  %v1929 = vpack.c.b16 %v1073, %v1065
  %v1930 = vpack.c.b16 %v1082, %v1074
  %v1931 = vpack.c.b16 %v1083, %v1075
  %v1932 = vpack.c.b16 %v1084, %v1076
  %v1933 = vpack.c.b16 %v1085, %v1077
  %v1934 = vpack.c.b16 %v1086, %v1078
  %v1935 = vpack.c.b16 %v1087, %v1079
  %v1936 = vpack.c.b16 %v1088, %v1080
  %v1937 = vpack.c.b16 %v1089, %v1081
  %v1938 = vpack.c.b16 %v1098, %v1090
  %v1939 = vpack.c.b16 %v1099, %v1091
  %v1940 = vpack.c.b16 %v1100, %v1092
  %v1941 = vpack.c.b16 %v1101, %v1093
  %v1942 = vpack.c.b16 %v1102, %v1094
  %v1943 = vpack.c.b16 %v1103, %v1095
  %v1944 = vpack.c.b16 %v1104, %v1096
  %v1945 = vpack.c.b16 %v1105, %v1097
  %v1946 = vpack.c.b16 %v1114, %v1106
  %v1947 = vpack.c.b16 %v1115, %v1107
  %v1948 = vpack.c.b16 %v1116, %v1108
  %v1949 = vpack.c.b16 %v1117, %v1109
  %v1950 = vpack.c.b16 %v1118, %v1110
  %v1951 = vpack.c.b16 %v1119, %v1111
  %v1952 = vpack.c.b16 %v1120, %v1112
  %v1953 = vpack.c.b16 %v1121, %v1113
  %v1954 = vpack.c.b16 %v1130, %v1122
  %v1955 = vpack.c.b16 %v1131, %v1123
  %v1956 = vpack.c.b16 %v1132, %v1124
  %v1957 = vpack.c.b16 %v1133, %v1125
  %v1958 = vpack.c.b16 %v1134, %v1126
  %v1959 = vpack.c.b16 %v1135, %v1127
  %v1960 = vpack.c.b16 %v1136, %v1128
  %v1961 = vpack.c.b16 %v1137, %v1129
  %v1962 = vpack.c.b16 %v1146, %v1138
  %v1963 = vpack.c.b16 %v1147, %v1139
  %v1964 = vpack.c.b16 %v1148, %v1140
  %v1965 = vpack.c.b16 %v1149, %v1141
  %v1966 = vpack.c.b16 %v1150, %v1142
  %v1967 = vpack.c.b16 %v1151, %v1143
  %v1968 = vpack.c.b16 %v1152, %v1144
  %v1969 = vpack.c.b16 %v1153, %v1145
  %v1970 = vpack.c.b16 %v1162, %v1154
  %v1971 = vpack.c.b16 %v1163, %v1155
  %v1972 = vpack.c.b16 %v1164, %v1156
  %v1973 = vpack.c.b16 %v1165, %v1157
  %v1974 = vpack.c.b16 %v1166, %v1158
  %v1975 = vpack.c.b16 %v1167, %v1159
  %v1976 = vpack.c.b16 %v1168, %v1160
  %v1977 = vpack.c.b16 %v1169, %v1161
  %v1978 = vpack.c.b16 %v1178, %v1170
  %v1979 = vpack.c.b16 %v1179, %v1171
  %v1980 = vpack.c.b16 %v1180, %v1172
  %v1981 = vpack.c.b16 %v1181, %v1173
  %v1982 = vpack.c.b16 %v1182, %v1174
  %v1983 = vpack.c.b16 %v1183, %v1175
  %v1984 = vpack.c.b16 %v1184, %v1176
  %v1985 = vpack.c.b16 %v1185, %v1177
  %v1986 = vpack.c.b16 %v1194, %v1186
  %v1987 = vpack.c.b16 %v1195, %v1187
  %v1988 = vpack.c.b16 %v1196, %v1188
  %v1989 = vpack.c.b16 %v1197, %v1189
  %v1990 = vpack.c.b16 %v1198, %v1190
  %v1991 = vpack.c.b16 %v1199, %v1191
  %v1992 = vpack.c.b16 %v1200, %v1192
  %v1993 = vpack.c.b16 %v1201, %v1193
  %v1994 = vpack.c.b16 %v1210, %v1202
  %v1995 = vpack.c.b16 %v1211, %v1203
  %v1996 = vpack.c.b16 %v1212, %v1204
  %v1997 = vpack.c.b16 %v1213, %v1205
  %v1998 = vpack.c.b16 %v1214, %v1206
  %v1999 = vpack.c.b16 %v1215, %v1207
  %v2000 = vpack.c.b16 %v1216, %v1208
  %v2001 = vpack.c.b16 %v1217, %v1209
  %v2002 = vpack.c.b16 %v1226, %v1218
  %v2003 = vpack.c.b16 %v1227, %v1219
  %v2004 = vpack.c.b16 %v1228, %v1220
  %v2005 = vpack.c.b16 %v1229, %v1221
  %v2006 = vpack.c.b16 %v1230, %v1222
  %v2007 = vpack.c.b16 %v1231, %v1223
  %v2008 = vpack.c.b16 %v1232, %v1224
  %v2009 = vpack.c.b16 %v1233, %v1225
  %v2010 = vpack.c.b16 %v1242, %v1234
  %v2011 = vpack.c.b16 %v1243, %v1235
  %v2012 = vpack.c.b16 %v1244, %v1236
  %v2013 = vpack.c.b16 %v1245, %v1237
  %v2014 = vpack.c.b16 %v1246, %v1238
  %v2015 = vpack.c.b16 %v1247, %v1239
  %v2016 = vpack.c.b16 %v1248, %v1240
  %v2017 = vpack.c.b16 %v1249, %v1241
  %v2018 = vpack.c.b16 %v1258, %v1250
  %v2019 = vpack.c.b16 %v1259, %v1251
  %v2020 = vpack.c.b16 %v1260, %v1252
  %v2021 = vpack.c.b16 %v1261, %v1253
  %v2022 = vpack.c.b16 %v1262, %v1254
  %v2023 = vpack.c.b16 %v1263, %v1255
  %v2024 = vpack.c.b16 %v1264, %v1256
  %v2025 = vpack.c.b16 %v1265, %v1257
  %v2026 = vpack.c.b16 %v1274, %v1266
  %v2027 = vpack.c.b16 %v1275, %v1267
  %v2028 = vpack.c.b16 %v1276, %v1268
  %v2029 = vpack.c.b16 %v1277, %v1269
  %v2030 = vpack.c.b16 %v1278, %v1270
  %v2031 = vpack.c.b16 %v1279, %v1271
  %v2032 = vpack.c.b16 %v1280, %v1272
  %v2033 = vpack.c.b16 %v1281, %v1273
  %v2034 = vpack.c.b16 %v1290, %v1282
  %v2035 = vpack.c.b16 %v1291, %v1283
  %v2036 = vpack.c.b16 %v1292, %v1284
  %v2037 = vpack.c.b16 %v1293, %v1285
  %v2038 = vpack.c.b16 %v1294, %v1286
  %v2039 = vpack.c.b16 %v1295, %v1287
  %v2040 = vpack.c.b16 %v1296, %v1288
  %v2041 = vpack.c.b16 %v1297, %v1289
  %v2042 = vpack.c.b16 %v1306, %v1298
  %v2043 = vpack.c.b16 %v1307, %v1299
  %v2044 = vpack.c.b16 %v1308, %v1300
  %v2045 = vpack.c.b16 %v1309, %v1301
  %v2046 = vpack.c.b16 %v1310, %v1302
  %v2047 = vpack.c.b16 %v1311, %v1303
  %v2048 = vpack.c.b16 %v1312, %v1304
  %v2049 = vpack.c.b16 %v1313, %v1305
  %v2050 = vpack.c.b16 %v1322, %v1314
  %v2051 = vpack.c.b16 %v1323, %v1315
  %v2052 = vpack.c.b16 %v1324, %v1316
  %v2053 = vpack.c.b16 %v1325, %v1317
  %v2054 = vpack.c.b16 %v1326, %v1318
  %v2055 = vpack.c.b16 %v1327, %v1319
  %v2056 = vpack.c.b16 %v1328, %v1320
  %v2057 = vpack.c.b16 %v1329, %v1321
  %v2058 = vpack.c.b16 %v1338, %v1330
  %v2059 = vpack.c.b16 %v1339, %v1331
  %v2060 = vpack.c.b16 %v1340, %v1332
  %v2061 = vpack.c.b16 %v1341, %v1333
  %v2062 = vpack.c.b16 %v1342, %v1334
  %v2063 = vpack.c.b16 %v1343, %v1335
  %v2064 = vpack.c.b16 %v1344, %v1336
  %v2065 = vpack.c.b16 %v1345, %v1337
  %v2066 = vpack.c.b16 %v1354, %v1346
  %v2067 = vpack.c.b16 %v1355, %v1347
  %v2068 = vpack.c.b16 %v1356, %v1348
  %v2069 = vpack.c.b16 %v1357, %v1349
  %v2070 = vpack.c.b16 %v1358, %v1350
  %v2071 = vpack.c.b16 %v1359, %v1351
  %v2072 = vpack.c.b16 %v1360, %v1352
  %v2073 = vpack.c.b16 %v1361, %v1353
  %v2074 = vpack.c.b16 %v1370, %v1362
  %v2075 = vpack.c.b16 %v1371, %v1363
  %v2076 = vpack.c.b16 %v1372, %v1364
  %v2077 = vpack.c.b16 %v1373, %v1365
  %v2078 = vpack.c.b16 %v1374, %v1366
  %v2079 = vpack.c.b16 %v1375, %v1367
  %v2080 = vpack.c.b16 %v1376, %v1368
  %v2081 = vpack.c.b16 %v1377, %v1369
  %v2082 = vpack.c.b16 %v1386, %v1378
  %v2083 = vpack.c.b16 %v1387, %v1379
  %v2084 = vpack.c.b16 %v1388, %v1380
  %v2085 = vpack.c.b16 %v1389, %v1381
  %v2086 = vpack.c.b16 %v1390, %v1382
  %v2087 = vpack.c.b16 %v1391, %v1383
  %v2088 = vpack.c.b16 %v1392, %v1384
  %v2089 = vpack.c.b16 %v1393, %v1385
  %v2090 = vpack.c.b16 %v1402, %v1394
  %v2091 = vpack.c.b16 %v1403, %v1395
  %v2092 = vpack.c.b16 %v1404, %v1396
  %v2093 = vpack.c.b16 %v1405, %v1397
  %v2094 = vpack.c.b16 %v1406, %v1398
  %v2095 = vpack.c.b16 %v1407, %v1399
  %v2096 = vpack.c.b16 %v1408, %v1400
  %v2097 = vpack.c.b16 %v1409, %v1401
  %v2098 = vpack.c.b16 %v1418, %v1410
  %v2099 = vpack.c.b16 %v1419, %v1411
  %v2100 = vpack.c.b16 %v1420, %v1412
  %v2101 = vpack.c.b16 %v1421, %v1413
  %v2102 = vpack.c.b16 %v1422, %v1414
  %v2103 = vpack.c.b16 %v1423, %v1415
  %v2104 = vpack.c.b16 %v1424, %v1416
  %v2105 = vpack.c.b16 %v1425, %v1417
  %v2106 = vpack.c.b16 %v1434, %v1426
  %v2107 = vpack.c.b16 %v1435, %v1427
  %v2108 = vpack.c.b16 %v1436, %v1428
  %v2109 = vpack.c.b16 %v1437, %v1429
  %v2110 = vpack.c.b16 %v1438, %v1430
  %v2111 = vpack.c.b16 %v1439, %v1431
  %v2112 = vpack.c.b16 %v1440, %v1432
  %v2113 = vpack.c.b16 %v1441, %v1433
  %v2114 = vpack.c.b16 %v1450, %v1442
  %v2115 = vpack.c.b16 %v1451, %v1443
  %v2116 = vpack.c.b16 %v1452, %v1444
  %v2117 = vpack.c.b16 %v1453, %v1445
  %v2118 = vpack.c.b16 %v1454, %v1446
  %v2119 = vpack.c.b16 %v1455, %v1447
  %v2120 = vpack.c.b16 %v1456, %v1448
  %v2121 = vpack.c.b16 %v1457, %v1449
  %v2122 = vpack.c.b16 %v1466, %v1458
  %v2123 = vpack.c.b16 %v1467, %v1459
  %v2124 = vpack.c.b16 %v1468, %v1460
  %v2125 = vpack.c.b16 %v1469, %v1461
  %v2126 = vpack.c.b16 %v1470, %v1462
  %v2127 = vpack.c.b16 %v1471, %v1463
  %v2128 = vpack.c.b16 %v1472, %v1464
  %v2129 = vpack.c.b16 %v1473, %v1465
  %v2130 = vpack.c.b16 %v1482, %v1474
  %v2131 = vpack.c.b16 %v1483, %v1475
  %v2132 = vpack.c.b16 %v1484, %v1476
  %v2133 = vpack.c.b16 %v1485, %v1477
  %v2134 = vpack.c.b16 %v1486, %v1478
  %v2135 = vpack.c.b16 %v1487, %v1479
  %v2136 = vpack.c.b16 %v1488, %v1480
  %v2137 = vpack.c.b16 %v1489, %v1481
  %v2138 = vpack.c.b16 %v1498, %v1490
  %v2139 = vpack.c.b16 %v1499, %v1491
  %v2140 = vpack.c.b16 %v1500, %v1492
  %v2141 = vpack.c.b16 %v1501, %v1493
  %v2142 = vpack.c.b16 %v1502, %v1494
  %v2143 = vpack.c.b16 %v1503, %v1495
  %v2144 = vpack.c.b16 %v1504, %v1496
  %v2145 = vpack.c.b16 %v1505, %v1497
  %v2146 = vpack.c.b16 %v1514, %v1506
  %v2147 = vpack.c.b16 %v1515, %v1507
  %v2148 = vpack.c.b16 %v1516, %v1508
  %v2149 = vpack.c.b16 %v1517, %v1509
  %v2150 = vpack.c.b16 %v1518, %v1510
  %v2151 = vpack.c.b16 %v1519, %v1511
  %v2152 = vpack.c.b16 %v1520, %v1512
  %v2153 = vpack.c.b16 %v1521, %v1513
  %v2154 = vpack.c.b16 %v1530, %v1522
  %v2155 = vpack.c.b16 %v1531, %v1523
  %v2156 = vpack.c.b16 %v1532, %v1524
  %v2157 = vpack.c.b16 %v1533, %v1525
  %v2158 = vpack.c.b16 %v1534, %v1526
  %v2159 = vpack.c.b16 %v1535, %v1527
  %v2160 = vpack.c.b16 %v1536, %v1528
  %v2161 = vpack.c.b16 %v1537, %v1529
  %v2162 = vpack.c.b16 %v1546, %v1538
  %v2163 = vpack.c.b16 %v1547, %v1539
  %v2164 = vpack.c.b16 %v1548, %v1540
  %v2165 = vpack.c.b16 %v1549, %v1541
  %v2166 = vpack.c.b16 %v1550, %v1542
  %v2167 = vpack.c.b16 %v1551, %v1543
  %v2168 = vpack.c.b16 %v1552, %v1544
  %v2169 = vpack.c.b16 %v1553, %v1545
  %v2170 = vpack.c.b16 %v1562, %v1554
  %v2171 = vpack.c.b16 %v1563, %v1555
  %v2172 = vpack.c.b16 %v1564, %v1556
  %v2173 = vpack.c.b16 %v1565, %v1557
  %v2174 = vpack.c.b16 %v1566, %v1558
  %v2175 = vpack.c.b16 %v1567, %v1559
  %v2176 = vpack.c.b16 %v1568, %v1560
  %v2177 = vpack.c.b16 %v1569, %v1561
  %v2178 = vpack.c.b16 %v1578, %v1570
  %v2179 = vpack.c.b16 %v1579, %v1571
  %v2180 = vpack.c.b16 %v1580, %v1572
  %v2181 = vpack.c.b16 %v1581, %v1573
  %v2182 = vpack.c.b16 %v1582, %v1574
  %v2183 = vpack.c.b16 %v1583, %v1575
  %v2184 = vpack.c.b16 %v1584, %v1576
  %v2185 = vpack.c.b16 %v1585, %v1577
  %v2186 = vpack.c.b16 %v1594, %v1586
  %v2187 = vpack.c.b16 %v1595, %v1587
  %v2188 = vpack.c.b16 %v1596, %v1588
  %v2189 = vpack.c.b16 %v1597, %v1589
  %v2190 = vpack.c.b16 %v1598, %v1590
  %v2191 = vpack.c.b16 %v1599, %v1591
  %v2192 = vpack.c.b16 %v1600, %v1592
  %v2193 = vpack.c.b16 %v1601, %v1593
  %v2194 = vpack.c.b16 %v1610, %v1602
  %v2195 = vpack.c.b16 %v1611, %v1603
  %v2196 = vpack.c.b16 %v1612, %v1604
  %v2197 = vpack.c.b16 %v1613, %v1605
  %v2198 = vpack.c.b16 %v1614, %v1606
  %v2199 = vpack.c.b16 %v1615, %v1607
  %v2200 = vpack.c.b16 %v1616, %v1608
  %v2201 = vpack.c.b16 %v1617, %v1609
  %v2202 = vpack.c.b16 %v1626, %v1618
  %v2203 = vpack.c.b16 %v1627, %v1619
  %v2204 = vpack.c.b16 %v1628, %v1620
  %v2205 = vpack.c.b16 %v1629, %v1621
  %v2206 = vpack.c.b16 %v1630, %v1622
  %v2207 = vpack.c.b16 %v1631, %v1623
  %v2208 = vpack.c.b16 %v1632, %v1624
  %v2209 = vpack.c.b16 %v1633, %v1625
  %v2210 = vpack.c.b16 %v1642, %v1634
  %v2211 = vpack.c.b16 %v1643, %v1635
  %v2212 = vpack.c.b16 %v1644, %v1636
  %v2213 = vpack.c.b16 %v1645, %v1637
  %v2214 = vpack.c.b16 %v1646, %v1638
  %v2215 = vpack.c.b16 %v1647, %v1639
  %v2216 = vpack.c.b16 %v1648, %v1640
  %v2217 = vpack.c.b16 %v1649, %v1641
  %v2218 = vpack.c.b16 %v1658, %v1650
  %v2219 = vpack.c.b16 %v1659, %v1651
  %v2220 = vpack.c.b16 %v1660, %v1652
  %v2221 = vpack.c.b16 %v1661, %v1653
  %v2222 = vpack.c.b16 %v1662, %v1654
  %v2223 = vpack.c.b16 %v1663, %v1655
  %v2224 = vpack.c.b16 %v1664, %v1656
  %v2225 = vpack.c.b16 %v1665, %v1657
  %v2226 = vpack.c.b16 %v1674, %v1666
  %v2227 = vpack.c.b16 %v1675, %v1667
  %v2228 = vpack.c.b16 %v1676, %v1668
  %v2229 = vpack.c.b16 %v1677, %v1669
  %v2230 = vpack.c.b16 %v1678, %v1670
  %v2231 = vpack.c.b16 %v1679, %v1671
  %v2232 = vpack.c.b16 %v1680, %v1672
  %v2233 = vpack.c.b16 %v1681, %v1673
  %v2234 = vpack.c.b16 %v1690, %v1682
  %v2235 = vpack.c.b16 %v1691, %v1683
  %v2236 = vpack.c.b16 %v1692, %v1684
  %v2237 = vpack.c.b16 %v1693, %v1685
  %v2238 = vpack.c.b16 %v1694, %v1686
  %v2239 = vpack.c.b16 %v1695, %v1687
  %v2240 = vpack.c.b16 %v1696, %v1688
  %v2241 = vpack.c.b16 %v1697, %v1689
  %v2242 = vpack.c.b16 %v1706, %v1698
  %v2243 = vpack.c.b16 %v1707, %v1699
  %v2244 = vpack.c.b16 %v1708, %v1700
  %v2245 = vpack.c.b16 %v1709, %v1701
  %v2246 = vpack.c.b16 %v1710, %v1702
  %v2247 = vpack.c.b16 %v1711, %v1703
  %v2248 = vpack.c.b16 %v1712, %v1704
  %v2249 = vpack.c.b16 %v1713, %v1705
  %v2250 = vpack.c.b16 %v1722, %v1714
  %v2251 = vpack.c.b16 %v1723, %v1715
  %v2252 = vpack.c.b16 %v1724, %v1716
  %v2253 = vpack.c.b16 %v1725, %v1717
  %v2254 = vpack.c.b16 %v1726, %v1718
  %v2255 = vpack.c.b16 %v1727, %v1719
  %v2256 = vpack.c.b16 %v1728, %v1720
  %v2257 = vpack.c.b16 %v1729, %v1721
  %v2258 = vpack.c.b16 %v1738, %v1730
  %v2259 = vpack.c.b16 %v1739, %v1731
  %v2260 = vpack.c.b16 %v1740, %v1732
  %v2261 = vpack.c.b16 %v1741, %v1733
  %v2262 = vpack.c.b16 %v1742, %v1734
  %v2263 = vpack.c.b16 %v1743, %v1735
  %v2264 = vpack.c.b16 %v1744, %v1736
  %v2265 = vpack.c.b16 %v1745, %v1737
  %v2266 = vpack.c.b16 %v1754, %v1746
  %v2267 = vpack.c.b16 %v1755, %v1747
  %v2268 = vpack.c.b16 %v1756, %v1748
  %v2269 = vpack.c.b16 %v1757, %v1749
  %v2270 = vpack.c.b16 %v1758, %v1750
  %v2271 = vpack.c.b16 %v1759, %v1751
  %v2272 = vpack.c.b16 %v1760, %v1752
  %v2273 = vpack.c.b16 %v1761, %v1753
  %v2274 = vpack.c.b16 %v1770, %v1762
  %v2275 = vpack.c.b16 %v1771, %v1763
  %v2276 = vpack.c.b16 %v1772, %v1764
  %v2277 = vpack.c.b16 %v1773, %v1765
  %v2278 = vpack.c.b16 %v1774, %v1766
  %v2279 = vpack.c.b16 %v1775, %v1767
  %v2280 = vpack.c.b16 %v1776, %v1768
  %v2281 = vpack.c.b16 %v1777, %v1769
  %v2282 = vpack.c.b16 %v1786, %v1778
  %v2283 = vpack.c.b16 %v1787, %v1779
  %v2284 = vpack.c.b16 %v1788, %v1780
  %v2285 = vpack.c.b16 %v1789, %v1781
  %v2286 = vpack.c.b16 %v1790, %v1782
  %v2287 = vpack.c.b16 %v1791, %v1783
  %v2288 = vpack.c.b16 %v1792, %v1784
  %v2289 = vpack.c.b16 %v1793, %v1785
  %v2290 = vpack.c.b16 %v1802, %v1794
  %v2291 = vpack.c.b16 %v1803, %v1795
  %v2292 = vpack.c.b16 %v1804, %v1796
  %v2293 = vpack.c.b16 %v1805, %v1797
  %v2294 = vpack.c.b16 %v1806, %v1798
  %v2295 = vpack.c.b16 %v1807, %v1799
  %v2296 = vpack.c.b16 %v1808, %v1800
  %v2297 = vpack.c.b16 %v1809, %v1801
  %v2298 = vpack.c.b16 %v1818, %v1810
  %v2299 = vpack.c.b16 %v1819, %v1811
  %v2300 = vpack.c.b16 %v1820, %v1812
  %v2301 = vpack.c.b16 %v1821, %v1813
  %v2302 = vpack.c.b16 %v1822, %v1814
  %v2303 = vpack.c.b16 %v1823, %v1815
  %v2304 = vpack.c.b16 %v1824, %v1816
  %v2305 = vpack.c.b16 %v1825, %v1817
  %v2306 = vpack.c.b16 %v1834, %v1826
  %v2307 = vpack.c.b16 %v1835, %v1827
  %v2308 = vpack.c.b16 %v1836, %v1828
  %v2309 = vpack.c.b16 %v1837, %v1829
  %v2310 = vpack.c.b16 %v1838, %v1830
  %v2311 = vpack.c.b16 %v1839, %v1831
  %v2312 = vpack.c.b16 %v1840, %v1832
  %v2313 = vpack.c.b16 %v1841, %v1833
  %v2314 = vpack.c.b16 %v1850, %v1842
  %v2315 = vpack.c.b16 %v1851, %v1843
  %v2316 = vpack.c.b16 %v1852, %v1844
  %v2317 = vpack.c.b16 %v1853, %v1845
  %v2318 = vpack.c.b16 %v1854, %v1846
  %v2319 = vpack.c.b16 %v1855, %v1847
  %v2320 = vpack.c.b16 %v1856, %v1848
  %v2321 = vpack.c.b16 %v1857, %v1849
  %v2322 = vpack.c.b16 %v1866, %v1858
  %v2323 = vpack.c.b16 %v1867, %v1859
  %v2324 = vpack.c.b16 %v1868, %v1860
  %v2325 = vpack.c.b16 %v1869, %v1861
  %v2326 = vpack.c.b16 %v1870, %v1862
  %v2327 = vpack.c.b16 %v1871, %v1863
  %v2328 = vpack.c.b16 %v1872, %v1864
  %v2329 = vpack.c.b16 %v1873, %v1865
  %v2330 = vpack.c.b16 %v1882, %v1874
  %v2331 = vpack.c.b16 %v1883, %v1875
  %v2332 = vpack.c.b16 %v1884, %v1876
  %v2333 = vpack.c.b16 %v1885, %v1877
  %v2334 = vpack.c.b16 %v1886, %v1878
  %v2335 = vpack.c.b16 %v1887, %v1879
  %v2336 = vpack.c.b16 %v1888, %v1880
  %v2337 = vpack.c.b16 %v1889, %v1881
  %2786 = vmatprep.subr.bf16.mxu0 %v1891
  %2787 = vmatpush1.bf16.msra.mxu0 %v1890
  %2788 = vmatprep.subr.bf16.mxu0 %v1899
  %2789 = vmatpush1.bf16.msra.mxu0 %v1898
  %2790 = vmatprep.subr.bf16.mxu0 %v1907
  %2791 = vmatpush1.bf16.msra.mxu0 %v1906
  %2792 = vmatprep.subr.bf16.mxu0 %v1915
  %2793 = vmatpush1.bf16.msra.mxu0 %v1914
  %2794 = vmatprep.subr.bf16.mxu0 %v1923
  %2795 = vmatpush1.bf16.msra.mxu0 %v1922
  %2796 = vmatprep.subr.bf16.mxu0 %v1931
  %2797 = vmatpush1.bf16.msra.mxu0 %v1930
  %2798 = vmatprep.subr.bf16.mxu0 %v1939
  %2799 = vmatpush1.bf16.msra.mxu0 %v1938
  %2800 = vmatprep.subr.bf16.mxu0 %v1947
  %2801 = vmatpush1.bf16.msra.mxu0 %v1946
  %2802 = vmatprep.subr.bf16.mxu0 %v1955
  %2803 = vmatpush1.bf16.msra.mxu0 %v1954
  %2804 = vmatprep.subr.bf16.mxu0 %v1963
  %2805 = vmatpush1.bf16.msra.mxu0 %v1962
  %2806 = vmatprep.subr.bf16.mxu0 %v1971
  %2807 = vmatpush1.bf16.msra.mxu0 %v1970
  %2808 = vmatprep.subr.bf16.mxu0 %v1979
  %2809 = vmatpush1.bf16.msra.mxu0 %v1978
  %2810 = vmatprep.subr.bf16.mxu0 %v1987
  %2811 = vmatpush1.bf16.msra.mxu0 %v1986
  %2812 = vmatprep.subr.bf16.mxu0 %v1995
  %2813 = vmatpush1.bf16.msra.mxu0 %v1994
  %2814 = vmatprep.subr.bf16.mxu0 %v2003
  %2815 = vmatpush1.bf16.msra.mxu0 %v2002
  %2816 = vmatprep.subr.bf16.mxu0 %v2011
  %2817 = vmatpush1.bf16.msra.mxu0 %v2010
  %2818 = vmatprep.mubr.bf16.mxu0 %v533
  %2819 = vmatmul.mubr.bf16.gmra.mrb[0].mxu0 %v532
  %v2820 = vpop.f32.mrb[0].mxu0
  %v2821 = vadd.f32 %v484, %v2820
  %v2822 = vpop.f32.mrb[0].mxu0
  %v2823 = vadd.f32 %v488, %v2822
  %v2824 = vpop.f32.mrb[0].mxu0
  %v2825 = vpop.f32.mrb[0].mxu0
  %2826 = vdwg.mxu0
  %2827 = vmatprep.subr.bf16.mxu0 %v2019
  %2828 = vmatpush1.bf16.msra.mxu0 %v2018
  %2829 = vmatprep.subr.bf16.mxu0 %v2027
  %2830 = vmatpush1.bf16.msra.mxu0 %v2026
  %2831 = vmatprep.subr.bf16.mxu0 %v2035
  %2832 = vmatpush1.bf16.msra.mxu0 %v2034
  %2833 = vmatprep.subr.bf16.mxu0 %v2043
  %2834 = vmatpush1.bf16.msra.mxu0 %v2042
  %2835 = vmatprep.subr.bf16.mxu0 %v2051
  %2836 = vmatpush1.bf16.msra.mxu0 %v2050
  %2837 = vmatprep.subr.bf16.mxu0 %v2059
  %2838 = vmatpush1.bf16.msra.mxu0 %v2058
  %2839 = vmatprep.subr.bf16.mxu0 %v2067
  %2840 = vmatpush1.bf16.msra.mxu0 %v2066
  %2841 = vmatprep.subr.bf16.mxu0 %v2075
  %2842 = vmatpush1.bf16.msra.mxu0 %v2074
  %2843 = vmatprep.subr.bf16.mxu0 %v2083
  %2844 = vmatpush1.bf16.msra.mxu0 %v2082
  %2845 = vmatprep.subr.bf16.mxu0 %v2091
  %2846 = vmatpush1.bf16.msra.mxu0 %v2090
  %2847 = vmatprep.subr.bf16.mxu0 %v2099
  %2848 = vmatpush1.bf16.msra.mxu0 %v2098
  %2849 = vmatprep.subr.bf16.mxu0 %v2107
  %2850 = vmatpush1.bf16.msra.mxu0 %v2106
  %2851 = vmatprep.subr.bf16.mxu0 %v2115
  %2852 = vmatpush1.bf16.msra.mxu0 %v2114
  %2853 = vmatprep.subr.bf16.mxu0 %v2123
  %2854 = vmatpush1.bf16.msra.mxu0 %v2122
  %2855 = vmatprep.subr.bf16.mxu0 %v2131
  %2856 = vmatpush1.bf16.msra.mxu0 %v2130
  %2857 = vmatprep.subr.bf16.mxu0 %v2139
  %2858 = vmatpush1.bf16.msra.mxu0 %v2138
  %2859 = vmatprep.mubr.bf16.mxu0 %v535
  %2860 = vmatmul.mubr.bf16.gmra.mrb[0].mxu0 %v534
  %v2861 = vpop.f32.mrb[0].mxu0
  %v2862 = vadd.f32 %v2821, %v2861
  %v2863 = vpop.f32.mrb[0].mxu0
  %v2864 = vadd.f32 %v2823, %v2863
  %v2865 = vpop.f32.mrb[0].mxu0
  %v2866 = vpop.f32.mrb[0].mxu0
  %2867 = vdwg.mxu0
  %2868 = vmatprep.subr.bf16.mxu0 %v2147
  %2869 = vmatpush1.bf16.msra.mxu0 %v2146
  %2870 = vmatprep.subr.bf16.mxu0 %v2155
  %2871 = vmatpush1.bf16.msra.mxu0 %v2154
  %2872 = vmatprep.subr.bf16.mxu0 %v2163
  %2873 = vmatpush1.bf16.msra.mxu0 %v2162
  %2874 = vmatprep.subr.bf16.mxu0 %v2171
  %2875 = vmatpush1.bf16.msra.mxu0 %v2170
  %2876 = vmatprep.subr.bf16.mxu0 %v2179
  %2877 = vmatpush1.bf16.msra.mxu0 %v2178
  %2878 = vmatprep.subr.bf16.mxu0 %v2187
  %2879 = vmatpush1.bf16.msra.mxu0 %v2186
  %2880 = vmatprep.subr.bf16.mxu0 %v2195
  %2881 = vmatpush1.bf16.msra.mxu0 %v2194
  %2882 = vmatprep.subr.bf16.mxu0 %v2203
  %2883 = vmatpush1.bf16.msra.mxu0 %v2202
  %2884 = vmatprep.subr.bf16.mxu0 %v2211
  %2885 = vmatpush1.bf16.msra.mxu0 %v2210
  %2886 = vmatprep.subr.bf16.mxu0 %v2219
  %2887 = vmatpush1.bf16.msra.mxu0 %v2218
  %2888 = vmatprep.subr.bf16.mxu0 %v2227
  %2889 = vmatpush1.bf16.msra.mxu0 %v2226
  %2890 = vmatprep.subr.bf16.mxu0 %v2235
  %2891 = vmatpush1.bf16.msra.mxu0 %v2234
  %2892 = vmatprep.subr.bf16.mxu0 %v2243
  %2893 = vmatpush1.bf16.msra.mxu0 %v2242
  %2894 = vmatprep.subr.bf16.mxu0 %v2251
  %2895 = vmatpush1.bf16.msra.mxu0 %v2250
  %2896 = vmatprep.subr.bf16.mxu0 %v2259
  %2897 = vmatpush1.bf16.msra.mxu0 %v2258
  %2898 = vmatprep.subr.bf16.mxu0 %v2267
  %2899 = vmatpush1.bf16.msra.mxu0 %v2266
  %2900 = vmatprep.mubr.bf16.mxu0 %v537
  %2901 = vmatmul.mubr.bf16.gmra.mrb[0].mxu0 %v536
  %v2902 = vpop.f32.mrb[0].mxu0
  %v2903 = vadd.f32 %v2862, %v2902
  %v2904 = vpop.f32.mrb[0].mxu0
  %v2905 = vadd.f32 %v2864, %v2904
  %v2906 = vpop.f32.mrb[0].mxu0
  %v2907 = vpop.f32.mrb[0].mxu0
  %2908 = vdwg.mxu0
  %2909 = vmatprep.subr.bf16.mxu0 %v2275
  %2910 = vmatpush1.bf16.msra.mxu0 %v2274
  %2911 = vmatprep.subr.bf16.mxu0 %v2283
  %2912 = vmatpush1.bf16.msra.mxu0 %v2282
  %2913 = vmatprep.subr.bf16.mxu0 %v2291
  %2914 = vmatpush1.bf16.msra.mxu0 %v2290
  %2915 = vmatprep.subr.bf16.mxu0 %v2299
  %2916 = vmatpush1.bf16.msra.mxu0 %v2298
  %2917 = vmatprep.subr.bf16.mxu0 %v2307
  %2918 = vmatpush1.bf16.msra.mxu0 %v2306
  %2919 = vmatprep.subr.bf16.mxu0 %v2315
  %2920 = vmatpush1.bf16.msra.mxu0 %v2314
  %2921 = vmatprep.subr.bf16.mxu0 %v2323
  %2922 = vmatpush1.bf16.msra.mxu0 %v2322
  %2923 = vmatprep.subr.bf16.mxu0 %v2331
  %2924 = vmatpush1.bf16.msra.mxu0 %v2330
  %2925 = vmatprep.subr.bf16.mxu0 0
  %2926 = vmatpush1.bf16.msra.mxu0 0
  %2927 = vmatprep.subr.bf16.mxu0 0
  %2928 = vmatpush1.bf16.msra.mxu0 0
  %2929 = vmatprep.subr.bf16.mxu0 0
  %2930 = vmatpush1.bf16.msra.mxu0 0
  %2931 = vmatprep.subr.bf16.mxu0 0
  %2932 = vmatpush1.bf16.msra.mxu0 0
  %2933 = vmatprep.subr.bf16.mxu0 0
  %2934 = vmatpush1.bf16.msra.mxu0 0
  %2935 = vmatprep.subr.bf16.mxu0 0
  %2936 = vmatpush1.bf16.msra.mxu0 0
  %2937 = vmatprep.subr.bf16.mxu0 0
  %2938 = vmatpush1.bf16.msra.mxu0 0
  %2939 = vmatprep.subr.bf16.mxu0 0
  %2940 = vmatpush1.bf16.msra.mxu0 0
  %2941 = vmatprep.mubr.bf16.mxu0 0
  %2942 = vmatmul.mubr.bf16.gmra.mrb[0].mxu0 %v538
  %v2943 = vpop.f32.mrb[0].mxu0
  %v2944 = vadd.f32 %v2903, %v2943
  %v2945 = vpop.f32.mrb[0].mxu0
  %v2946 = vadd.f32 %v2905, %v2945
  %v2947 = vpop.f32.mrb[0].mxu0
  %v2948 = vpop.f32.mrb[0].mxu0
  %2949 = vdwg.mxu0
  %2950 = vmatprep.subr.bf16.mxu0 %v1893
  %2951 = vmatpush1.bf16.msra.mxu0 %v1892
  %2952 = vmatprep.subr.bf16.mxu0 %v1901
  %2953 = vmatpush1.bf16.msra.mxu0 %v1900
  %2954 = vmatprep.subr.bf16.mxu0 %v1909
  %2955 = vmatpush1.bf16.msra.mxu0 %v1908
  %2956 = vmatprep.subr.bf16.mxu0 %v1917
  %2957 = vmatpush1.bf16.msra.mxu0 %v1916
  %2958 = vmatprep.subr.bf16.mxu0 %v1925
  %2959 = vmatpush1.bf16.msra.mxu0 %v1924
  %2960 = vmatprep.subr.bf16.mxu0 %v1933
  %2961 = vmatpush1.bf16.msra.mxu0 %v1932
  %2962 = vmatprep.subr.bf16.mxu0 %v1941
  %2963 = vmatpush1.bf16.msra.mxu0 %v1940
  %2964 = vmatprep.subr.bf16.mxu0 %v1949
  %2965 = vmatpush1.bf16.msra.mxu0 %v1948
  %2966 = vmatprep.subr.bf16.mxu0 %v1957
  %2967 = vmatpush1.bf16.msra.mxu0 %v1956
  %2968 = vmatprep.subr.bf16.mxu0 %v1965
  %2969 = vmatpush1.bf16.msra.mxu0 %v1964
  %2970 = vmatprep.subr.bf16.mxu0 %v1973
  %2971 = vmatpush1.bf16.msra.mxu0 %v1972
  %2972 = vmatprep.subr.bf16.mxu0 %v1981
  %2973 = vmatpush1.bf16.msra.mxu0 %v1980
  %2974 = vmatprep.subr.bf16.mxu0 %v1989
  %2975 = vmatpush1.bf16.msra.mxu0 %v1988
  %2976 = vmatprep.subr.bf16.mxu0 %v1997
  %2977 = vmatpush1.bf16.msra.mxu0 %v1996
  %2978 = vmatprep.subr.bf16.mxu0 %v2005
  %2979 = vmatpush1.bf16.msra.mxu0 %v2004
  %2980 = vmatprep.subr.bf16.mxu0 %v2013
  %2981 = vmatpush1.bf16.msra.mxu0 %v2012
  %2982 = vmatprep.mubr.bf16.mxu0 %v533
  %2983 = vmatmul.mubr.bf16.gmra.mrb[0].mxu0 %v532
  %v2984 = vpop.f32.mrb[0].mxu0
  %v2985 = vadd.f32 %v492, %v2984
  %v2986 = vpop.f32.mrb[0].mxu0
  %v2987 = vadd.f32 %v496, %v2986
  %v2988 = vpop.f32.mrb[0].mxu0
  %v2989 = vpop.f32.mrb[0].mxu0
  %2990 = vdwg.mxu0
  %2991 = vmatprep.subr.bf16.mxu0 %v2021
  %2992 = vmatpush1.bf16.msra.mxu0 %v2020
  %2993 = vmatprep.subr.bf16.mxu0 %v2029
  %2994 = vmatpush1.bf16.msra.mxu0 %v2028
  %2995 = vmatprep.subr.bf16.mxu0 %v2037
  %2996 = vmatpush1.bf16.msra.mxu0 %v2036
  %2997 = vmatprep.subr.bf16.mxu0 %v2045
  %2998 = vmatpush1.bf16.msra.mxu0 %v2044
  %2999 = vmatprep.subr.bf16.mxu0 %v2053
  %3000 = vmatpush1.bf16.msra.mxu0 %v2052
  %3001 = vmatprep.subr.bf16.mxu0 %v2061
  %3002 = vmatpush1.bf16.msra.mxu0 %v2060
  %3003 = vmatprep.subr.bf16.mxu0 %v2069
  %3004 = vmatpush1.bf16.msra.mxu0 %v2068
  %3005 = vmatprep.subr.bf16.mxu0 %v2077
  %3006 = vmatpush1.bf16.msra.mxu0 %v2076
  %3007 = vmatprep.subr.bf16.mxu0 %v2085
  %3008 = vmatpush1.bf16.msra.mxu0 %v2084
  %3009 = vmatprep.subr.bf16.mxu0 %v2093
  %3010 = vmatpush1.bf16.msra.mxu0 %v2092
  %3011 = vmatprep.subr.bf16.mxu0 %v2101
  %3012 = vmatpush1.bf16.msra.mxu0 %v2100
  %3013 = vmatprep.subr.bf16.mxu0 %v2109
  %3014 = vmatpush1.bf16.msra.mxu0 %v2108
  %3015 = vmatprep.subr.bf16.mxu0 %v2117
  %3016 = vmatpush1.bf16.msra.mxu0 %v2116
  %3017 = vmatprep.subr.bf16.mxu0 %v2125
  %3018 = vmatpush1.bf16.msra.mxu0 %v2124
  %3019 = vmatprep.subr.bf16.mxu0 %v2133
  %3020 = vmatpush1.bf16.msra.mxu0 %v2132
  %3021 = vmatprep.subr.bf16.mxu0 %v2141
  %3022 = vmatpush1.bf16.msra.mxu0 %v2140
  %3023 = vmatprep.mubr.bf16.mxu0 %v535
  %3024 = vmatmul.mubr.bf16.gmra.mrb[0].mxu0 %v534
  %v3025 = vpop.f32.mrb[0].mxu0
  %v3026 = vadd.f32 %v2985, %v3025
  %v3027 = vpop.f32.mrb[0].mxu0
  %v3028 = vadd.f32 %v2987, %v3027
  %v3029 = vpop.f32.mrb[0].mxu0
  %v3030 = vpop.f32.mrb[0].mxu0
  %3031 = vdwg.mxu0
  %3032 = vmatprep.subr.bf16.mxu0 %v2149
  %3033 = vmatpush1.bf16.msra.mxu0 %v2148
  %3034 = vmatprep.subr.bf16.mxu0 %v2157
  %3035 = vmatpush1.bf16.msra.mxu0 %v2156
  %3036 = vmatprep.subr.bf16.mxu0 %v2165
  %3037 = vmatpush1.bf16.msra.mxu0 %v2164
  %3038 = vmatprep.subr.bf16.mxu0 %v2173
  %3039 = vmatpush1.bf16.msra.mxu0 %v2172
  %3040 = vmatprep.subr.bf16.mxu0 %v2181
  %3041 = vmatpush1.bf16.msra.mxu0 %v2180
  %3042 = vmatprep.subr.bf16.mxu0 %v2189
  %3043 = vmatpush1.bf16.msra.mxu0 %v2188
  %3044 = vmatprep.subr.bf16.mxu0 %v2197
  %3045 = vmatpush1.bf16.msra.mxu0 %v2196
  %3046 = vmatprep.subr.bf16.mxu0 %v2205
  %3047 = vmatpush1.bf16.msra.mxu0 %v2204
  %3048 = vmatprep.subr.bf16.mxu0 %v2213
  %3049 = vmatpush1.bf16.msra.mxu0 %v2212
  %3050 = vmatprep.subr.bf16.mxu0 %v2221
  %3051 = vmatpush1.bf16.msra.mxu0 %v2220
  %3052 = vmatprep.subr.bf16.mxu0 %v2229
  %3053 = vmatpush1.bf16.msra.mxu0 %v2228
  %3054 = vmatprep.subr.bf16.mxu0 %v2237
  %3055 = vmatpush1.bf16.msra.mxu0 %v2236
  %3056 = vmatprep.subr.bf16.mxu0 %v2245
  %3057 = vmatpush1.bf16.msra.mxu0 %v2244
  %3058 = vmatprep.subr.bf16.mxu0 %v2253
  %3059 = vmatpush1.bf16.msra.mxu0 %v2252
  %3060 = vmatprep.subr.bf16.mxu0 %v2261
  %3061 = vmatpush1.bf16.msra.mxu0 %v2260
  %3062 = vmatprep.subr.bf16.mxu0 %v2269
  %3063 = vmatpush1.bf16.msra.mxu0 %v2268
  %3064 = vmatprep.mubr.bf16.mxu0 %v537
  %3065 = vmatmul.mubr.bf16.gmra.mrb[0].mxu0 %v536
  %v3066 = vpop.f32.mrb[0].mxu0
  %v3067 = vadd.f32 %v3026, %v3066
  %v3068 = vpop.f32.mrb[0].mxu0
  %v3069 = vadd.f32 %v3028, %v3068
  %v3070 = vpop.f32.mrb[0].mxu0
  %v3071 = vpop.f32.mrb[0].mxu0
  %3072 = vdwg.mxu0
  %3073 = vmatprep.subr.bf16.mxu0 %v2277
  %3074 = vmatpush1.bf16.msra.mxu0 %v2276
  %3075 = vmatprep.subr.bf16.mxu0 %v2285
  %3076 = vmatpush1.bf16.msra.mxu0 %v2284
  %3077 = vmatprep.subr.bf16.mxu0 %v2293
  %3078 = vmatpush1.bf16.msra.mxu0 %v2292
  %3079 = vmatprep.subr.bf16.mxu0 %v2301
  %3080 = vmatpush1.bf16.msra.mxu0 %v2300
  %3081 = vmatprep.subr.bf16.mxu0 %v2309
  %3082 = vmatpush1.bf16.msra.mxu0 %v2308
  %3083 = vmatprep.subr.bf16.mxu0 %v2317
  %3084 = vmatpush1.bf16.msra.mxu0 %v2316
  %3085 = vmatprep.subr.bf16.mxu0 %v2325
  %3086 = vmatpush1.bf16.msra.mxu0 %v2324
  %3087 = vmatprep.subr.bf16.mxu0 %v2333
  %3088 = vmatpush1.bf16.msra.mxu0 %v2332
  %3089 = vmatprep.subr.bf16.mxu0 0
  %3090 = vmatpush1.bf16.msra.mxu0 0
  %3091 = vmatprep.subr.bf16.mxu0 0
  %3092 = vmatpush1.bf16.msra.mxu0 0
  %3093 = vmatprep.subr.bf16.mxu0 0
  %3094 = vmatpush1.bf16.msra.mxu0 0
  %3095 = vmatprep.subr.bf16.mxu0 0
  %3096 = vmatpush1.bf16.msra.mxu0 0
  %3097 = vmatprep.subr.bf16.mxu0 0
  %3098 = vmatpush1.bf16.msra.mxu0 0
  %3099 = vmatprep.subr.bf16.mxu0 0
  %3100 = vmatpush1.bf16.msra.mxu0 0
  %3101 = vmatprep.subr.bf16.mxu0 0
  %3102 = vmatpush1.bf16.msra.mxu0 0
  %3103 = vmatprep.subr.bf16.mxu0 0
  %3104 = vmatpush1.bf16.msra.mxu0 0
  %3105 = vmatprep.mubr.bf16.mxu0 0
  %3106 = vmatmul.mubr.bf16.gmra.mrb[0].mxu0 %v538
  %v3107 = vpop.f32.mrb[0].mxu0
  %v3108 = vadd.f32 %v3067, %v3107
  %v3109 = vpop.f32.mrb[0].mxu0
  %v3110 = vadd.f32 %v3069, %v3109
  %v3111 = vpop.f32.mrb[0].mxu0
  %v3112 = vpop.f32.mrb[0].mxu0
  %3113 = vdwg.mxu0
  %3114 = vmatprep.subr.bf16.mxu0 %v1895
  %3115 = vmatpush1.bf16.msra.mxu0 %v1894
  %3116 = vmatprep.subr.bf16.mxu0 %v1903
  %3117 = vmatpush1.bf16.msra.mxu0 %v1902
  %3118 = vmatprep.subr.bf16.mxu0 %v1911
  %3119 = vmatpush1.bf16.msra.mxu0 %v1910
  %3120 = vmatprep.subr.bf16.mxu0 %v1919
  %3121 = vmatpush1.bf16.msra.mxu0 %v1918
  %3122 = vmatprep.subr.bf16.mxu0 %v1927
  %3123 = vmatpush1.bf16.msra.mxu0 %v1926
  %3124 = vmatprep.subr.bf16.mxu0 %v1935
  %3125 = vmatpush1.bf16.msra.mxu0 %v1934
  %3126 = vmatprep.subr.bf16.mxu0 %v1943
  %3127 = vmatpush1.bf16.msra.mxu0 %v1942
  %3128 = vmatprep.subr.bf16.mxu0 %v1951
  %3129 = vmatpush1.bf16.msra.mxu0 %v1950
  %3130 = vmatprep.subr.bf16.mxu0 %v1959
  %3131 = vmatpush1.bf16.msra.mxu0 %v1958
  %3132 = vmatprep.subr.bf16.mxu0 %v1967
  %3133 = vmatpush1.bf16.msra.mxu0 %v1966
  %3134 = vmatprep.subr.bf16.mxu0 %v1975
  %3135 = vmatpush1.bf16.msra.mxu0 %v1974
  %3136 = vmatprep.subr.bf16.mxu0 %v1983
  %3137 = vmatpush1.bf16.msra.mxu0 %v1982
  %3138 = vmatprep.subr.bf16.mxu0 %v1991
  %3139 = vmatpush1.bf16.msra.mxu0 %v1990
  %3140 = vmatprep.subr.bf16.mxu0 %v1999
  %3141 = vmatpush1.bf16.msra.mxu0 %v1998
  %3142 = vmatprep.subr.bf16.mxu0 %v2007
  %3143 = vmatpush1.bf16.msra.mxu0 %v2006
  %3144 = vmatprep.subr.bf16.mxu0 %v2015
  %3145 = vmatpush1.bf16.msra.mxu0 %v2014
  %3146 = vmatprep.mubr.bf16.mxu0 %v533
  %3147 = vmatmul.mubr.bf16.gmra.mrb[0].mxu0 %v532
  %v3148 = vpop.f32.mrb[0].mxu0
  %v3149 = vadd.f32 %v500, %v3148
  %v3150 = vpop.f32.mrb[0].mxu0
  %v3151 = vadd.f32 %v504, %v3150
  %v3152 = vpop.f32.mrb[0].mxu0
  %v3153 = vpop.f32.mrb[0].mxu0
  %3154 = vdwg.mxu0
  %3155 = vmatprep.subr.bf16.mxu0 %v2023
  %3156 = vmatpush1.bf16.msra.mxu0 %v2022
  %3157 = vmatprep.subr.bf16.mxu0 %v2031
  %3158 = vmatpush1.bf16.msra.mxu0 %v2030
  %3159 = vmatprep.subr.bf16.mxu0 %v2039
  %3160 = vmatpush1.bf16.msra.mxu0 %v2038
  %3161 = vmatprep.subr.bf16.mxu0 %v2047
  %3162 = vmatpush1.bf16.msra.mxu0 %v2046
  %3163 = vmatprep.subr.bf16.mxu0 %v2055
  %3164 = vmatpush1.bf16.msra.mxu0 %v2054
  %3165 = vmatprep.subr.bf16.mxu0 %v2063
  %3166 = vmatpush1.bf16.msra.mxu0 %v2062
  %3167 = vmatprep.subr.bf16.mxu0 %v2071
  %3168 = vmatpush1.bf16.msra.mxu0 %v2070
  %3169 = vmatprep.subr.bf16.mxu0 %v2079
  %3170 = vmatpush1.bf16.msra.mxu0 %v2078
  %3171 = vmatprep.subr.bf16.mxu0 %v2087
  %3172 = vmatpush1.bf16.msra.mxu0 %v2086
  %3173 = vmatprep.subr.bf16.mxu0 %v2095
  %3174 = vmatpush1.bf16.msra.mxu0 %v2094
  %3175 = vmatprep.subr.bf16.mxu0 %v2103
  %3176 = vmatpush1.bf16.msra.mxu0 %v2102
  %3177 = vmatprep.subr.bf16.mxu0 %v2111
  %3178 = vmatpush1.bf16.msra.mxu0 %v2110
  %3179 = vmatprep.subr.bf16.mxu0 %v2119
  %3180 = vmatpush1.bf16.msra.mxu0 %v2118
  %3181 = vmatprep.subr.bf16.mxu0 %v2127
  %3182 = vmatpush1.bf16.msra.mxu0 %v2126
  %3183 = vmatprep.subr.bf16.mxu0 %v2135
  %3184 = vmatpush1.bf16.msra.mxu0 %v2134
  %3185 = vmatprep.subr.bf16.mxu0 %v2143
  %3186 = vmatpush1.bf16.msra.mxu0 %v2142
  %3187 = vmatprep.mubr.bf16.mxu0 %v535
  %3188 = vmatmul.mubr.bf16.gmra.mrb[0].mxu0 %v534
  %v3189 = vpop.f32.mrb[0].mxu0
  %v3190 = vadd.f32 %v3149, %v3189
  %v3191 = vpop.f32.mrb[0].mxu0
  %v3192 = vadd.f32 %v3151, %v3191
  %v3193 = vpop.f32.mrb[0].mxu0
  %v3194 = vpop.f32.mrb[0].mxu0
  %3195 = vdwg.mxu0
  %3196 = vmatprep.subr.bf16.mxu0 %v2151
  %3197 = vmatpush1.bf16.msra.mxu0 %v2150
  %3198 = vmatprep.subr.bf16.mxu0 %v2159
  %3199 = vmatpush1.bf16.msra.mxu0 %v2158
  %3200 = vmatprep.subr.bf16.mxu0 %v2167
  %3201 = vmatpush1.bf16.msra.mxu0 %v2166
  %3202 = vmatprep.subr.bf16.mxu0 %v2175
  %3203 = vmatpush1.bf16.msra.mxu0 %v2174
  %3204 = vmatprep.subr.bf16.mxu0 %v2183
  %3205 = vmatpush1.bf16.msra.mxu0 %v2182
  %3206 = vmatprep.subr.bf16.mxu0 %v2191
  %3207 = vmatpush1.bf16.msra.mxu0 %v2190
  %3208 = vmatprep.subr.bf16.mxu0 %v2199
  %3209 = vmatpush1.bf16.msra.mxu0 %v2198
  %3210 = vmatprep.subr.bf16.mxu0 %v2207
  %3211 = vmatpush1.bf16.msra.mxu0 %v2206
  %3212 = vmatprep.subr.bf16.mxu0 %v2215
  %3213 = vmatpush1.bf16.msra.mxu0 %v2214
  %3214 = vmatprep.subr.bf16.mxu0 %v2223
  %3215 = vmatpush1.bf16.msra.mxu0 %v2222
  %3216 = vmatprep.subr.bf16.mxu0 %v2231
  %3217 = vmatpush1.bf16.msra.mxu0 %v2230
  %3218 = vmatprep.subr.bf16.mxu0 %v2239
  %3219 = vmatpush1.bf16.msra.mxu0 %v2238
  %3220 = vmatprep.subr.bf16.mxu0 %v2247
  %3221 = vmatpush1.bf16.msra.mxu0 %v2246
  %3222 = vmatprep.subr.bf16.mxu0 %v2255
  %3223 = vmatpush1.bf16.msra.mxu0 %v2254
  %3224 = vmatprep.subr.bf16.mxu0 %v2263
  %3225 = vmatpush1.bf16.msra.mxu0 %v2262
  %3226 = vmatprep.subr.bf16.mxu0 %v2271
  %3227 = vmatpush1.bf16.msra.mxu0 %v2270
  %3228 = vmatprep.mubr.bf16.mxu0 %v537
  %3229 = vmatmul.mubr.bf16.gmra.mrb[0].mxu0 %v536
  %v3230 = vpop.f32.mrb[0].mxu0
  %v3231 = vadd.f32 %v3190, %v3230
  %v3232 = vpop.f32.mrb[0].mxu0
  %v3233 = vadd.f32 %v3192, %v3232
  %v3234 = vpop.f32.mrb[0].mxu0
  %v3235 = vpop.f32.mrb[0].mxu0
  %3236 = vdwg.mxu0
  %3237 = vmatprep.subr.bf16.mxu0 %v2279
  %3238 = vmatpush1.bf16.msra.mxu0 %v2278
  %3239 = vmatprep.subr.bf16.mxu0 %v2287
  %3240 = vmatpush1.bf16.msra.mxu0 %v2286
  %3241 = vmatprep.subr.bf16.mxu0 %v2295
  %3242 = vmatpush1.bf16.msra.mxu0 %v2294
  %3243 = vmatprep.subr.bf16.mxu0 %v2303
  %3244 = vmatpush1.bf16.msra.mxu0 %v2302
  %3245 = vmatprep.subr.bf16.mxu0 %v2311
  %3246 = vmatpush1.bf16.msra.mxu0 %v2310
  %3247 = vmatprep.subr.bf16.mxu0 %v2319
  %3248 = vmatpush1.bf16.msra.mxu0 %v2318
  %3249 = vmatprep.subr.bf16.mxu0 %v2327
  %3250 = vmatpush1.bf16.msra.mxu0 %v2326
  %3251 = vmatprep.subr.bf16.mxu0 %v2335
  %3252 = vmatpush1.bf16.msra.mxu0 %v2334
  %3253 = vmatprep.subr.bf16.mxu0 0
  %3254 = vmatpush1.bf16.msra.mxu0 0
  %3255 = vmatprep.subr.bf16.mxu0 0
  %3256 = vmatpush1.bf16.msra.mxu0 0
  %3257 = vmatprep.subr.bf16.mxu0 0
  %3258 = vmatpush1.bf16.msra.mxu0 0
  %3259 = vmatprep.subr.bf16.mxu0 0
  %3260 = vmatpush1.bf16.msra.mxu0 0
  %3261 = vmatprep.subr.bf16.mxu0 0
  %3262 = vmatpush1.bf16.msra.mxu0 0
  %3263 = vmatprep.subr.bf16.mxu0 0
  %3264 = vmatpush1.bf16.msra.mxu0 0
  %3265 = vmatprep.subr.bf16.mxu0 0
  %3266 = vmatpush1.bf16.msra.mxu0 0
  %3267 = vmatprep.subr.bf16.mxu0 0
  %3268 = vmatpush1.bf16.msra.mxu0 0
  %3269 = vmatprep.mubr.bf16.mxu0 0
  %3270 = vmatmul.mubr.bf16.gmra.mrb[0].mxu0 %v538
  %v3271 = vpop.f32.mrb[0].mxu0
  %v3272 = vadd.f32 %v3231, %v3271
  %v3273 = vpop.f32.mrb[0].mxu0
  %v3274 = vadd.f32 %v3233, %v3273
  %v3275 = vpop.f32.mrb[0].mxu0
  %v3276 = vpop.f32.mrb[0].mxu0
  %3277 = vdwg.mxu0
  %3278 = vmatprep.subr.bf16.mxu0 %v1897
  %3279 = vmatpush1.bf16.msra.mxu0 %v1896
  %3280 = vmatprep.subr.bf16.mxu0 %v1905
  %3281 = vmatpush1.bf16.msra.mxu0 %v1904
  %3282 = vmatprep.subr.bf16.mxu0 %v1913
  %3283 = vmatpush1.bf16.msra.mxu0 %v1912
  %3284 = vmatprep.subr.bf16.mxu0 %v1921
  %3285 = vmatpush1.bf16.msra.mxu0 %v1920
  %3286 = vmatprep.subr.bf16.mxu0 %v1929
  %3287 = vmatpush1.bf16.msra.mxu0 %v1928
  %3288 = vmatprep.subr.bf16.mxu0 %v1937
  %3289 = vmatpush1.bf16.msra.mxu0 %v1936
  %3290 = vmatprep.subr.bf16.mxu0 %v1945
  %3291 = vmatpush1.bf16.msra.mxu0 %v1944
  %3292 = vmatprep.subr.bf16.mxu0 %v1953
  %3293 = vmatpush1.bf16.msra.mxu0 %v1952
  %3294 = vmatprep.subr.bf16.mxu0 %v1961
  %3295 = vmatpush1.bf16.msra.mxu0 %v1960
  %3296 = vmatprep.subr.bf16.mxu0 %v1969
  %3297 = vmatpush1.bf16.msra.mxu0 %v1968
  %3298 = vmatprep.subr.bf16.mxu0 %v1977
  %3299 = vmatpush1.bf16.msra.mxu0 %v1976
  %3300 = vmatprep.subr.bf16.mxu0 %v1985
  %3301 = vmatpush1.bf16.msra.mxu0 %v1984
  %3302 = vmatprep.subr.bf16.mxu0 %v1993
  %3303 = vmatpush1.bf16.msra.mxu0 %v1992
  %3304 = vmatprep.subr.bf16.mxu0 %v2001
  %3305 = vmatpush1.bf16.msra.mxu0 %v2000
  %3306 = vmatprep.subr.bf16.mxu0 %v2009
  %3307 = vmatpush1.bf16.msra.mxu0 %v2008
  %3308 = vmatprep.subr.bf16.mxu0 %v2017
  %3309 = vmatpush1.bf16.msra.mxu0 %v2016
  %3310 = vmatprep.mubr.bf16.mxu0 %v533
  %3311 = vmatmul.mubr.bf16.gmra.mrb[0].mxu0 %v532
  %v3312 = vpop.f32.mrb[0].mxu0
  %v3313 = vadd.f32 %v508, %v3312
  %v3314 = vpop.f32.mrb[0].mxu0
  %v3315 = vadd.f32 %v512, %v3314
  %v3316 = vpop.f32.mrb[0].mxu0
  %v3317 = vpop.f32.mrb[0].mxu0
  %3318 = vdwg.mxu0
  %3319 = vmatprep.subr.bf16.mxu0 %v2025
  %3320 = vmatpush1.bf16.msra.mxu0 %v2024
  %3321 = vmatprep.subr.bf16.mxu0 %v2033
  %3322 = vmatpush1.bf16.msra.mxu0 %v2032
  %3323 = vmatprep.subr.bf16.mxu0 %v2041
  %3324 = vmatpush1.bf16.msra.mxu0 %v2040
  %3325 = vmatprep.subr.bf16.mxu0 %v2049
  %3326 = vmatpush1.bf16.msra.mxu0 %v2048
  %3327 = vmatprep.subr.bf16.mxu0 %v2057
  %3328 = vmatpush1.bf16.msra.mxu0 %v2056
  %3329 = vmatprep.subr.bf16.mxu0 %v2065
  %3330 = vmatpush1.bf16.msra.mxu0 %v2064
  %3331 = vmatprep.subr.bf16.mxu0 %v2073
  %3332 = vmatpush1.bf16.msra.mxu0 %v2072
  %3333 = vmatprep.subr.bf16.mxu0 %v2081
  %3334 = vmatpush1.bf16.msra.mxu0 %v2080
  %3335 = vmatprep.subr.bf16.mxu0 %v2089
  %3336 = vmatpush1.bf16.msra.mxu0 %v2088
  %3337 = vmatprep.subr.bf16.mxu0 %v2097
  %3338 = vmatpush1.bf16.msra.mxu0 %v2096
  %3339 = vmatprep.subr.bf16.mxu0 %v2105
  %3340 = vmatpush1.bf16.msra.mxu0 %v2104
  %3341 = vmatprep.subr.bf16.mxu0 %v2113
  %3342 = vmatpush1.bf16.msra.mxu0 %v2112
  %3343 = vmatprep.subr.bf16.mxu0 %v2121
  %3344 = vmatpush1.bf16.msra.mxu0 %v2120
  %3345 = vmatprep.subr.bf16.mxu0 %v2129
  %3346 = vmatpush1.bf16.msra.mxu0 %v2128
  %3347 = vmatprep.subr.bf16.mxu0 %v2137
  %3348 = vmatpush1.bf16.msra.mxu0 %v2136
  %3349 = vmatprep.subr.bf16.mxu0 %v2145
  %3350 = vmatpush1.bf16.msra.mxu0 %v2144
  %3351 = vmatprep.mubr.bf16.mxu0 %v535
  %3352 = vmatmul.mubr.bf16.gmra.mrb[0].mxu0 %v534
  %v3353 = vpop.f32.mrb[0].mxu0
  %v3354 = vadd.f32 %v3313, %v3353
  %v3355 = vpop.f32.mrb[0].mxu0
  %v3356 = vadd.f32 %v3315, %v3355
  %v3357 = vpop.f32.mrb[0].mxu0
  %v3358 = vpop.f32.mrb[0].mxu0
  %3359 = vdwg.mxu0
  %3360 = vmatprep.subr.bf16.mxu0 %v2153
  %3361 = vmatpush1.bf16.msra.mxu0 %v2152
  %3362 = vmatprep.subr.bf16.mxu0 %v2161
  %3363 = vmatpush1.bf16.msra.mxu0 %v2160
  %3364 = vmatprep.subr.bf16.mxu0 %v2169
  %3365 = vmatpush1.bf16.msra.mxu0 %v2168
  %3366 = vmatprep.subr.bf16.mxu0 %v2177
  %3367 = vmatpush1.bf16.msra.mxu0 %v2176
  %3368 = vmatprep.subr.bf16.mxu0 %v2185
  %3369 = vmatpush1.bf16.msra.mxu0 %v2184
  %3370 = vmatprep.subr.bf16.mxu0 %v2193
  %3371 = vmatpush1.bf16.msra.mxu0 %v2192
  %3372 = vmatprep.subr.bf16.mxu0 %v2201
  %3373 = vmatpush1.bf16.msra.mxu0 %v2200
  %3374 = vmatprep.subr.bf16.mxu0 %v2209
  %3375 = vmatpush1.bf16.msra.mxu0 %v2208
  %3376 = vmatprep.subr.bf16.mxu0 %v2217
  %3377 = vmatpush1.bf16.msra.mxu0 %v2216
  %3378 = vmatprep.subr.bf16.mxu0 %v2225
  %3379 = vmatpush1.bf16.msra.mxu0 %v2224
  %3380 = vmatprep.subr.bf16.mxu0 %v2233
  %3381 = vmatpush1.bf16.msra.mxu0 %v2232
  %3382 = vmatprep.subr.bf16.mxu0 %v2241
  %3383 = vmatpush1.bf16.msra.mxu0 %v2240
  %3384 = vmatprep.subr.bf16.mxu0 %v2249
  %3385 = vmatpush1.bf16.msra.mxu0 %v2248
  %3386 = vmatprep.subr.bf16.mxu0 %v2257
  %3387 = vmatpush1.bf16.msra.mxu0 %v2256
  %3388 = vmatprep.subr.bf16.mxu0 %v2265
  %3389 = vmatpush1.bf16.msra.mxu0 %v2264
  %3390 = vmatprep.subr.bf16.mxu0 %v2273
  %3391 = vmatpush1.bf16.msra.mxu0 %v2272
  %3392 = vmatprep.mubr.bf16.mxu0 %v537
  %3393 = vmatmul.mubr.bf16.gmra.mrb[0].mxu0 %v536
  %v3394 = vpop.f32.mrb[0].mxu0
  %v3395 = vadd.f32 %v3354, %v3394
  %v3396 = vpop.f32.mrb[0].mxu0
  %v3397 = vadd.f32 %v3356, %v3396
  %v3398 = vpop.f32.mrb[0].mxu0
  %v3399 = vpop.f32.mrb[0].mxu0
  %3400 = vdwg.mxu0
  %3401 = vmatprep.subr.bf16.mxu0 %v2281
  %3402 = vmatpush1.bf16.msra.mxu0 %v2280
  %3403 = vmatprep.subr.bf16.mxu0 %v2289
  %3404 = vmatpush1.bf16.msra.mxu0 %v2288
  %3405 = vmatprep.subr.bf16.mxu0 %v2297
  %3406 = vmatpush1.bf16.msra.mxu0 %v2296
  %3407 = vmatprep.subr.bf16.mxu0 %v2305
  %3408 = vmatpush1.bf16.msra.mxu0 %v2304
  %3409 = vmatprep.subr.bf16.mxu0 %v2313
  %3410 = vmatpush1.bf16.msra.mxu0 %v2312
  %3411 = vmatprep.subr.bf16.mxu0 %v2321
  %3412 = vmatpush1.bf16.msra.mxu0 %v2320
  %3413 = vmatprep.subr.bf16.mxu0 %v2329
  %3414 = vmatpush1.bf16.msra.mxu0 %v2328
  %3415 = vmatprep.subr.bf16.mxu0 %v2337
  %3416 = vmatpush1.bf16.msra.mxu0 %v2336
  %3417 = vmatprep.subr.bf16.mxu0 0
  %3418 = vmatpush1.bf16.msra.mxu0 0
  %3419 = vmatprep.subr.bf16.mxu0 0
  %3420 = vmatpush1.bf16.msra.mxu0 0
  %3421 = vmatprep.subr.bf16.mxu0 0
  %3422 = vmatpush1.bf16.msra.mxu0 0
  %3423 = vmatprep.subr.bf16.mxu0 0
  %3424 = vmatpush1.bf16.msra.mxu0 0
  %3425 = vmatprep.subr.bf16.mxu0 0
  %3426 = vmatpush1.bf16.msra.mxu0 0
  %3427 = vmatprep.subr.bf16.mxu0 0
  %3428 = vmatpush1.bf16.msra.mxu0 0
  %3429 = vmatprep.subr.bf16.mxu0 0
  %3430 = vmatpush1.bf16.msra.mxu0 0
  %3431 = vmatprep.subr.bf16.mxu0 0
  %3432 = vmatpush1.bf16.msra.mxu0 0
  %3433 = vmatprep.mubr.bf16.mxu0 0
  %3434 = vmatmul.mubr.bf16.gmra.mrb[0].mxu0 %v538
  %v3435 = vpop.f32.mrb[0].mxu0
  %v3436 = vadd.f32 %v3395, %v3435
  %v3437 = vpop.f32.mrb[0].mxu0
  %v3438 = vadd.f32 %v3397, %v3437
  %v3439 = vpop.f32.mrb[0].mxu0
  %v3440 = vpop.f32.mrb[0].mxu0
  %3441 = vdwg.mxu0
  %v3442 = vtanh.pop %v2944
  %v3443 = vtanh.pop %v2946
  %v3444 = vtanh.pop %v3108
  %v3445 = vtanh.pop %v3110
  %v3446 = vtanh.pop %v3272
  %v3447 = vtanh.pop %v3274
  %v3448 = vtanh.pop %v3436
  %v3449 = vtanh.pop %v3438
  %v3450 = vpack.c.bf16 %v3442, %v3442
  %v3451 = vpack.c.bf16 %v3443, %v3443
  %v3452 = vpack.c.bf16 %v3444, %v3444
  %v3453 = vpack.c.bf16 %v3445, %v3445
  %v3454 = vpack.c.bf16 %v3446, %v3446
  %v3455 = vpack.c.bf16 %v3447, %v3447
  %v3456 = vpack.c.bf16 %v3448, %v3448
  %v3457 = vpack.c.bf16 %v3449, %v3449
  %v3458 = vld [vmem:[%s3] sm:$0xff]
  %v3459 = vld [vmem:[%s3 + $0x8] sm:$0xff]
  %v3460 = vld [vmem:[%s3 + $0x10] sm:$0xff]
  %v3461 = vld [vmem:[%s3 + $0x18] sm:$0xff]
  %v3462 = vld [vmem:[%s3 + $0x20] sm:$0xff]
  %v3463 = vld [vmem:[%s3 + $0x28] sm:$0xff]
  %v3464 = vld [vmem:[%s3 + $0x30] sm:$0xff]
  %v3465 = vld [vmem:[%s3 + $0x38] sm:$0xff]
  %v3466 = vld [vmem:[%s3 + $0x40] sm:$0xff]
  %v3467 = vld [vmem:[%s3 + $0x48] sm:$0xff]
  %v3468 = vld [vmem:[%s3 + $0x50] sm:$0xff]
  %v3469 = vld [vmem:[%s3 + $0x58] sm:$0xff]
  %v3470 = vld [vmem:[%s3 + $0x60] sm:$0xff]
  %v3471 = vld [vmem:[%s3 + $0x68] sm:$0xff]
  %v3472 = vld [vmem:[%s3 + $0x70] sm:$0xff]
  %v3473 = vld [vmem:[%s3 + $0x78] sm:$0xff]
  %v3474 = vld [vmem:[%s3 + $0x80] sm:$0xff]
  %v3475 = vld [vmem:[%s3 + $0x88] sm:$0xff]
  %v3476 = vld [vmem:[%s3 + $0x90] sm:$0xff]
  %v3477 = vld [vmem:[%s3 + $0x98] sm:$0xff]
  %v3478 = vld [vmem:[%s3 + $0xa0] sm:$0xff]
  %v3479 = vld [vmem:[%s3 + $0xa8] sm:$0xff]
  %v3480 = vld [vmem:[%s3 + $0xb0] sm:$0xff]
  %v3481 = vld [vmem:[%s3 + $0xb8] sm:$0xff]
  %v3482 = vld [vmem:[%s3 + $0xc0] sm:$0xff]
  %v3483 = vld [vmem:[%s3 + $0xc8] sm:$0xff]
  %v3484 = vld [vmem:[%s3 + $0xd0] sm:$0xff]
  %v3485 = vld [vmem:[%s3 + $0xd8] sm:$0xff]
  %v3486 = vld [vmem:[%s3 + $0xe0] sm:$0xff]
  %v3487 = vld [vmem:[%s3 + $0xe8] sm:$0xff]
  %v3488 = vld [vmem:[%s3 + $0xf0] sm:$0xff]
  %v3489 = vld [vmem:[%s3 + $0xf8] sm:$0xff]
  %v3490 = vld [vmem:[%s3 + $0x100] sm:$0xff]
  %v3491 = vld [vmem:[%s3 + $0x108] sm:$0xff]
  %v3492 = vld [vmem:[%s3 + $0x110] sm:$0xff]
  %v3493 = vld [vmem:[%s3 + $0x118] sm:$0xff]
  %v3494 = vld [vmem:[%s3 + $0x120] sm:$0xff]
  %v3495 = vld [vmem:[%s3 + $0x128] sm:$0xff]
  %v3496 = vld [vmem:[%s3 + $0x130] sm:$0xff]
  %v3497 = vld [vmem:[%s3 + $0x138] sm:$0xff]
  %v3498 = vld [vmem:[%s3 + $0x140] sm:$0xff]
  %v3499 = vld [vmem:[%s3 + $0x148] sm:$0xff]
  %v3500 = vld [vmem:[%s3 + $0x150] sm:$0xff]
  %v3501 = vld [vmem:[%s3 + $0x158] sm:$0xff]
  %v3502 = vld [vmem:[%s3 + $0x160] sm:$0xff]
  %v3503 = vld [vmem:[%s3 + $0x168] sm:$0xff]
  %v3504 = vld [vmem:[%s3 + $0x170] sm:$0xff]
  %v3505 = vld [vmem:[%s3 + $0x178] sm:$0xff]
  %v3506 = vld [vmem:[%s3 + $0x180] sm:$0xff]
  %v3507 = vld [vmem:[%s3 + $0x188] sm:$0xff]
  %v3508 = vld [vmem:[%s3 + $0x190] sm:$0xff]
  %v3509 = vld [vmem:[%s3 + $0x198] sm:$0xff]
  %v3510 = vld [vmem:[%s3 + $0x1a0] sm:$0xff]
  %v3511 = vld [vmem:[%s3 + $0x1a8] sm:$0xff]
  %v3512 = vld [vmem:[%s3 + $0x1b0] sm:$0xff]
  %v3513 = vld [vmem:[%s3 + $0x1b8] sm:$0xff]
  %v3514 = vld [vmem:[%s3 + $0x1c0] sm:$0xff]
  %v3515 = vld [vmem:[%s3 + $0x1c8] sm:$0xff]
  %v3516 = vld [vmem:[%s3 + $0x1d0] sm:$0xff]
  %v3517 = vld [vmem:[%s3 + $0x1d8] sm:$0xff]
  %v3518 = vld [vmem:[%s3 + $0x1e0] sm:$0xff]
  %v3519 = vld [vmem:[%s3 + $0x1e8] sm:$0xff]
  %v3520 = vld [vmem:[%s3 + $0x1f0] sm:$0xff]
  %v3521 = vld [vmem:[%s3 + $0x1f8] sm:$0xff]
  %v3522 = vld [vmem:[%s3 + $0x200] sm:$0xff]
  %v3523 = vld [vmem:[%s3 + $0x208] sm:$0xff]
  %v3524 = vld [vmem:[%s3 + $0x210] sm:$0xff]
  %v3525 = vld [vmem:[%s3 + $0x218] sm:$0xff]
  %v3526 = vld [vmem:[%s3 + $0x220] sm:$0xff]
  %v3527 = vld [vmem:[%s3 + $0x228] sm:$0xff]
  %v3528 = vld [vmem:[%s3 + $0x230] sm:$0xff]
  %v3529 = vld [vmem:[%s3 + $0x238] sm:$0xff]
  %v3530 = vld [vmem:[%s3 + $0x240] sm:$0xff]
  %v3531 = vld [vmem:[%s3 + $0x248] sm:$0xff]
  %v3532 = vld [vmem:[%s3 + $0x250] sm:$0xff]
  %v3533 = vld [vmem:[%s3 + $0x258] sm:$0xff]
  %v3534 = vld [vmem:[%s3 + $0x260] sm:$0xff]
  %v3535 = vld [vmem:[%s3 + $0x268] sm:$0xff]
  %v3536 = vld [vmem:[%s3 + $0x270] sm:$0xff]
  %v3537 = vld [vmem:[%s3 + $0x278] sm:$0xff]
  %v3538 = vld [vmem:[%s3 + $0x280] sm:$0xff]
  %v3539 = vld [vmem:[%s3 + $0x288] sm:$0xff]
  %v3540 = vld [vmem:[%s3 + $0x290] sm:$0xff]
  %v3541 = vld [vmem:[%s3 + $0x298] sm:$0xff]
  %v3542 = vld [vmem:[%s3 + $0x2a0] sm:$0xff]
  %v3543 = vld [vmem:[%s3 + $0x2a8] sm:$0xff]
  %v3544 = vld [vmem:[%s3 + $0x2b0] sm:$0xff]
  %v3545 = vld [vmem:[%s3 + $0x2b8] sm:$0xff]
  %v3546 = vld [vmem:[%s3 + $0x2c0] sm:$0xff]
  %v3547 = vld [vmem:[%s3 + $0x2c8] sm:$0xff]
  %v3548 = vld [vmem:[%s3 + $0x2d0] sm:$0xff]
  %v3549 = vld [vmem:[%s3 + $0x2d8] sm:$0xff]
  %v3550 = vld [vmem:[%s3 + $0x2e0] sm:$0xff]
  %v3551 = vld [vmem:[%s3 + $0x2e8] sm:$0xff]
  %v3552 = vld [vmem:[%s3 + $0x2f0] sm:$0xff]
  %v3553 = vld [vmem:[%s3 + $0x2f8] sm:$0xff]
  %v3554 = vld [vmem:[%s3 + $0x300] sm:$0xff]
  %v3555 = vld [vmem:[%s3 + $0x308] sm:$0xff]
  %v3556 = vld [vmem:[%s3 + $0x310] sm:$0xff]
  %v3557 = vld [vmem:[%s3 + $0x318] sm:$0xff]
  %v3558 = vld [vmem:[%s3 + $0x320] sm:$0xff]
  %v3559 = vld [vmem:[%s3 + $0x328] sm:$0xff]
  %v3560 = vld [vmem:[%s3 + $0x330] sm:$0xff]
  %v3561 = vld [vmem:[%s3 + $0x338] sm:$0xff]
  %v3562 = vld [vmem:[%s3 + $0x340] sm:$0xff]
  %v3563 = vld [vmem:[%s3 + $0x348] sm:$0xff]
  %v3564 = vld [vmem:[%s3 + $0x350] sm:$0xff]
  %v3565 = vld [vmem:[%s3 + $0x358] sm:$0xff]
  %v3566 = vld [vmem:[%s3 + $0x360] sm:$0xff]
  %v3567 = vld [vmem:[%s3 + $0x368] sm:$0xff]
  %v3568 = vld [vmem:[%s3 + $0x370] sm:$0xff]
  %v3569 = vld [vmem:[%s3 + $0x378] sm:$0xff]
  %v3570 = vld [vmem:[%s3 + $0x380] sm:$0xff]
  %v3571 = vld [vmem:[%s3 + $0x388] sm:$0xff]
  %v3572 = vld [vmem:[%s3 + $0x390] sm:$0xff]
  %v3573 = vld [vmem:[%s3 + $0x398] sm:$0xff]
  %v3574 = vld [vmem:[%s3 + $0x3a0] sm:$0xff]
  %v3575 = vld [vmem:[%s3 + $0x3a8] sm:$0xff]
  %v3576 = vld [vmem:[%s3 + $0x3b0] sm:$0xff]
  %v3577 = vld [vmem:[%s3 + $0x3b8] sm:$0xff]
  %v3578 = vld [vmem:[%s3 + $0x3c0] sm:$0xff]
  %v3579 = vld [vmem:[%s3 + $0x3c8] sm:$0xff]
  %v3580 = vld [vmem:[%s3 + $0x3d0] sm:$0xff]
  %v3581 = vld [vmem:[%s3 + $0x3d8] sm:$0xff]
  %v3582 = vld [vmem:[%s3 + $0x3e0] sm:$0xff]
  %v3583 = vld [vmem:[%s3 + $0x3e8] sm:$0xff]
  %v3584 = vld [vmem:[%s3 + $0x3f0] sm:$0xff]
  %v3585 = vld [vmem:[%s3 + $0x3f8] sm:$0xff]
  %v3586 = vld [vmem:[%s3 + $0x400] sm:$0xff]
  %v3587 = vld [vmem:[%s3 + $0x408] sm:$0xff]
  %v3588 = vld [vmem:[%s3 + $0x410] sm:$0xff]
  %v3589 = vld [vmem:[%s3 + $0x418] sm:$0xff]
  %v3590 = vld [vmem:[%s3 + $0x420] sm:$0xff]
  %v3591 = vld [vmem:[%s3 + $0x428] sm:$0xff]
  %v3592 = vld [vmem:[%s3 + $0x430] sm:$0xff]
  %v3593 = vld [vmem:[%s3 + $0x438] sm:$0xff]
  %v3594 = vld [vmem:[%s3 + $0x440] sm:$0xff]
  %v3595 = vld [vmem:[%s3 + $0x448] sm:$0xff]
  %v3596 = vld [vmem:[%s3 + $0x450] sm:$0xff]
  %v3597 = vld [vmem:[%s3 + $0x458] sm:$0xff]
  %v3598 = vld [vmem:[%s3 + $0x460] sm:$0xff]
  %v3599 = vld [vmem:[%s3 + $0x468] sm:$0xff]
  %v3600 = vld [vmem:[%s3 + $0x470] sm:$0xff]
  %v3601 = vld [vmem:[%s3 + $0x478] sm:$0xff]
  %v3602 = vld [vmem:[%s3 + $0x480] sm:$0xff]
  %v3603 = vld [vmem:[%s3 + $0x488] sm:$0xff]
  %v3604 = vld [vmem:[%s3 + $0x490] sm:$0xff]
  %v3605 = vld [vmem:[%s3 + $0x498] sm:$0xff]
  %v3606 = vld [vmem:[%s3 + $0x4a0] sm:$0xff]
  %v3607 = vld [vmem:[%s3 + $0x4a8] sm:$0xff]
  %v3608 = vld [vmem:[%s3 + $0x4b0] sm:$0xff]
  %v3609 = vld [vmem:[%s3 + $0x4b8] sm:$0xff]
  %v3610 = vld [vmem:[%s3 + $0x4c0] sm:$0xff]
  %v3611 = vld [vmem:[%s3 + $0x4c8] sm:$0xff]
  %v3612 = vld [vmem:[%s3 + $0x4d0] sm:$0xff]
  %v3613 = vld [vmem:[%s3 + $0x4d8] sm:$0xff]
  %v3614 = vld [vmem:[%s3 + $0x4e0] sm:$0xff]
  %v3615 = vld [vmem:[%s3 + $0x4e8] sm:$0xff]
  %v3616 = vld [vmem:[%s3 + $0x4f0] sm:$0xff]
  %v3617 = vld [vmem:[%s3 + $0x4f8] sm:$0xff]
  %v3618 = vld [vmem:[%s3 + $0x500] sm:$0xff]
  %v3619 = vld [vmem:[%s3 + $0x508] sm:$0xff]
  %v3620 = vld [vmem:[%s3 + $0x510] sm:$0xff]
  %v3621 = vld [vmem:[%s3 + $0x518] sm:$0xff]
  %v3622 = vld [vmem:[%s3 + $0x520] sm:$0xff]
  %v3623 = vld [vmem:[%s3 + $0x528] sm:$0xff]
  %v3624 = vld [vmem:[%s3 + $0x530] sm:$0xff]
  %v3625 = vld [vmem:[%s3 + $0x538] sm:$0xff]
  %v3626 = vld [vmem:[%s3 + $0x540] sm:$0xff]
  %v3627 = vld [vmem:[%s3 + $0x548] sm:$0xff]
  %v3628 = vld [vmem:[%s3 + $0x550] sm:$0xff]
  %v3629 = vld [vmem:[%s3 + $0x558] sm:$0xff]
  %v3630 = vld [vmem:[%s3 + $0x560] sm:$0xff]
  %v3631 = vld [vmem:[%s3 + $0x568] sm:$0xff]
  %v3632 = vld [vmem:[%s3 + $0x570] sm:$0xff]
  %v3633 = vld [vmem:[%s3 + $0x578] sm:$0xff]
  %v3634 = vld [vmem:[%s3 + $0x580] sm:$0xff]
  %v3635 = vld [vmem:[%s3 + $0x588] sm:$0xff]
  %v3636 = vld [vmem:[%s3 + $0x590] sm:$0xff]
  %v3637 = vld [vmem:[%s3 + $0x598] sm:$0xff]
  %v3638 = vld [vmem:[%s3 + $0x5a0] sm:$0xff]
  %v3639 = vld [vmem:[%s3 + $0x5a8] sm:$0xff]
  %v3640 = vld [vmem:[%s3 + $0x5b0] sm:$0xff]
  %v3641 = vld [vmem:[%s3 + $0x5b8] sm:$0xff]
  %v3642 = vld [vmem:[%s3 + $0x5c0] sm:$0xff]
  %v3643 = vld [vmem:[%s3 + $0x5c8] sm:$0xff]
  %v3644 = vld [vmem:[%s3 + $0x5d0] sm:$0xff]
  %v3645 = vld [vmem:[%s3 + $0x5d8] sm:$0xff]
  %v3646 = vld [vmem:[%s3 + $0x5e0] sm:$0xff]
  %v3647 = vld [vmem:[%s3 + $0x5e8] sm:$0xff]
  %v3648 = vld [vmem:[%s3 + $0x5f0] sm:$0xff]
  %v3649 = vld [vmem:[%s3 + $0x5f8] sm:$0xff]
  %v3650 = vld [vmem:[%s3 + $0x600] sm:$0xff]
  %v3651 = vld [vmem:[%s3 + $0x608] sm:$0xff]
  %v3652 = vld [vmem:[%s3 + $0x610] sm:$0xff]
  %v3653 = vld [vmem:[%s3 + $0x618] sm:$0xff]
  %v3654 = vld [vmem:[%s3 + $0x620] sm:$0xff]
  %v3655 = vld [vmem:[%s3 + $0x628] sm:$0xff]
  %v3656 = vld [vmem:[%s3 + $0x630] sm:$0xff]
  %v3657 = vld [vmem:[%s3 + $0x638] sm:$0xff]
  %v3658 = vld [vmem:[%s3 + $0x640] sm:$0xff]
  %v3659 = vld [vmem:[%s3 + $0x648] sm:$0xff]
  %v3660 = vld [vmem:[%s3 + $0x650] sm:$0xff]
  %v3661 = vld [vmem:[%s3 + $0x658] sm:$0xff]
  %v3662 = vld [vmem:[%s3 + $0x660] sm:$0xff]
  %v3663 = vld [vmem:[%s3 + $0x668] sm:$0xff]
  %v3664 = vld [vmem:[%s3 + $0x670] sm:$0xff]
  %v3665 = vld [vmem:[%s3 + $0x678] sm:$0xff]
  %v3666 = vld [vmem:[%s3 + $0x680] sm:$0xff]
  %v3667 = vld [vmem:[%s3 + $0x688] sm:$0xff]
  %v3668 = vld [vmem:[%s3 + $0x690] sm:$0xff]
  %v3669 = vld [vmem:[%s3 + $0x698] sm:$0xff]
  %v3670 = vld [vmem:[%s3 + $0x6a0] sm:$0xff]
  %v3671 = vld [vmem:[%s3 + $0x6a8] sm:$0xff]
  %v3672 = vld [vmem:[%s3 + $0x6b0] sm:$0xff]
  %v3673 = vld [vmem:[%s3 + $0x6b8] sm:$0xff]
  %v3674 = vld [vmem:[%s3 + $0x6c0] sm:$0xff]
  %v3675 = vld [vmem:[%s3 + $0x6c8] sm:$0xff]
  %v3676 = vld [vmem:[%s3 + $0x6d0] sm:$0xff]
  %v3677 = vld [vmem:[%s3 + $0x6d8] sm:$0xff]
  %v3678 = vld [vmem:[%s3 + $0x6e0] sm:$0xff]
  %v3679 = vld [vmem:[%s3 + $0x6e8] sm:$0xff]
  %v3680 = vld [vmem:[%s3 + $0x6f0] sm:$0xff]
  %v3681 = vld [vmem:[%s3 + $0x6f8] sm:$0xff]
  %v3682 = vld [vmem:[%s3 + $0x700] sm:$0xff]
  %v3683 = vld [vmem:[%s3 + $0x708] sm:$0xff]
  %v3684 = vld [vmem:[%s3 + $0x710] sm:$0xff]
  %v3685 = vld [vmem:[%s3 + $0x718] sm:$0xff]
  %v3686 = vld [vmem:[%s3 + $0x720] sm:$0xff]
  %v3687 = vld [vmem:[%s3 + $0x728] sm:$0xff]
  %v3688 = vld [vmem:[%s3 + $0x730] sm:$0xff]
  %v3689 = vld [vmem:[%s3 + $0x738] sm:$0xff]
  %v3690 = vld [vmem:[%s3 + $0x740] sm:$0xff]
  %v3691 = vld [vmem:[%s3 + $0x748] sm:$0xff]
  %v3692 = vld [vmem:[%s3 + $0x750] sm:$0xff]
  %v3693 = vld [vmem:[%s3 + $0x758] sm:$0xff]
  %v3694 = vld [vmem:[%s3 + $0x760] sm:$0xff]
  %v3695 = vld [vmem:[%s3 + $0x768] sm:$0xff]
  %v3696 = vld [vmem:[%s3 + $0x770] sm:$0xff]
  %v3697 = vld [vmem:[%s3 + $0x778] sm:$0xff]
  %v3698 = vld [vmem:[%s3 + $0x780] sm:$0xff]
  %v3699 = vld [vmem:[%s3 + $0x788] sm:$0xff]
  %v3700 = vld [vmem:[%s3 + $0x790] sm:$0xff]
  %v3701 = vld [vmem:[%s3 + $0x798] sm:$0xff]
  %v3702 = vld [vmem:[%s3 + $0x7a0] sm:$0xff]
  %v3703 = vld [vmem:[%s3 + $0x7a8] sm:$0xff]
  %v3704 = vld [vmem:[%s3 + $0x7b0] sm:$0xff]
  %v3705 = vld [vmem:[%s3 + $0x7b8] sm:$0xff]
  %v3706 = vld [vmem:[%s3 + $0x7c0] sm:$0xff]
  %v3707 = vld [vmem:[%s3 + $0x7c8] sm:$0xff]
  %v3708 = vld [vmem:[%s3 + $0x7d0] sm:$0xff]
  %v3709 = vld [vmem:[%s3 + $0x7d8] sm:$0xff]
  %v3710 = vld [vmem:[%s3 + $0x7e0] sm:$0xff]
  %v3711 = vld [vmem:[%s3 + $0x7e8] sm:$0xff]
  %v3712 = vld [vmem:[%s3 + $0x7f0] sm:$0xff]
  %v3713 = vld [vmem:[%s3 + $0x7f8] sm:$0xff]
  %v3714 = vld [vmem:[%s4] sm:$0xf]
  %v3716 = vlaneseq
  %v3717 = vshrl.u32 %v3716, 7
  %v3718 = vsub.s32 0, %v3717
  %v3719 = vrot.slane %v3714, %v3718
  %v3720 = vlaneseq
  %v3721 = vshrl.u32 %v3720, 7
  %v3722 = vsub.s32 1, %v3721
  %v3723 = vrot.slane %v3714, %v3722
  %v3724 = vlaneseq
  %v3725 = vshrl.u32 %v3724, 7
  %v3726 = vsub.s32 2, %v3725
  %v3727 = vrot.slane %v3714, %v3726
  %v3728 = vlaneseq
  %v3729 = vshrl.u32 %v3728, 7
  %v3730 = vsub.s32 3, %v3729
  %v3731 = vrot.slane %v3714, %v3730
  %v3992 = vunpack.c.l.b16 %v3458
  %v3993 = vunpack.c.h.b16 %v3458
  %v3994 = vunpack.c.l.b16 %v3459
  %v3995 = vunpack.c.h.b16 %v3459
  %v3996 = vunpack.c.l.b16 %v3460
  %v3997 = vunpack.c.h.b16 %v3460
  %v3998 = vunpack.c.l.b16 %v3461
  %v3999 = vunpack.c.h.b16 %v3461
  %v4000 = vunpack.c.l.b16 %v3462
  %v4001 = vunpack.c.h.b16 %v3462
  %v4002 = vunpack.c.l.b16 %v3463
  %v4003 = vunpack.c.h.b16 %v3463
  %v4004 = vunpack.c.l.b16 %v3464
  %v4005 = vunpack.c.h.b16 %v3464
  %v4006 = vunpack.c.l.b16 %v3465
  %v4007 = vunpack.c.h.b16 %v3465
  %v4008 = vunpack.c.l.b16 %v3466
  %v4009 = vunpack.c.h.b16 %v3466
  %v4010 = vunpack.c.l.b16 %v3467
  %v4011 = vunpack.c.h.b16 %v3467
  %v4012 = vunpack.c.l.b16 %v3468
  %v4013 = vunpack.c.h.b16 %v3468
  %v4014 = vunpack.c.l.b16 %v3469
  %v4015 = vunpack.c.h.b16 %v3469
  %v4016 = vunpack.c.l.b16 %v3470
  %v4017 = vunpack.c.h.b16 %v3470
  %v4018 = vunpack.c.l.b16 %v3471
  %v4019 = vunpack.c.h.b16 %v3471
  %v4020 = vunpack.c.l.b16 %v3472
  %v4021 = vunpack.c.h.b16 %v3472
  %v4022 = vunpack.c.l.b16 %v3473
  %v4023 = vunpack.c.h.b16 %v3473
  %v4024 = vunpack.c.l.b16 %v3474
  %v4025 = vunpack.c.h.b16 %v3474
  %v4026 = vunpack.c.l.b16 %v3475
  %v4027 = vunpack.c.h.b16 %v3475
  %v4028 = vunpack.c.l.b16 %v3476
  %v4029 = vunpack.c.h.b16 %v3476
  %v4030 = vunpack.c.l.b16 %v3477
  %v4031 = vunpack.c.h.b16 %v3477
  %v4032 = vunpack.c.l.b16 %v3478
  %v4033 = vunpack.c.h.b16 %v3478
  %v4034 = vunpack.c.l.b16 %v3479
  %v4035 = vunpack.c.h.b16 %v3479
  %v4036 = vunpack.c.l.b16 %v3480
  %v4037 = vunpack.c.h.b16 %v3480
  %v4038 = vunpack.c.l.b16 %v3481
  %v4039 = vunpack.c.h.b16 %v3481
  %v4040 = vunpack.c.l.b16 %v3482
  %v4041 = vunpack.c.h.b16 %v3482
  %v4042 = vunpack.c.l.b16 %v3483
  %v4043 = vunpack.c.h.b16 %v3483
  %v4044 = vunpack.c.l.b16 %v3484
  %v4045 = vunpack.c.h.b16 %v3484
  %v4046 = vunpack.c.l.b16 %v3485
  %v4047 = vunpack.c.h.b16 %v3485
  %v4048 = vunpack.c.l.b16 %v3486
  %v4049 = vunpack.c.h.b16 %v3486
  %v4050 = vunpack.c.l.b16 %v3487
  %v4051 = vunpack.c.h.b16 %v3487
  %v4052 = vunpack.c.l.b16 %v3488
  %v4053 = vunpack.c.h.b16 %v3488
  %v4054 = vunpack.c.l.b16 %v3489
  %v4055 = vunpack.c.h.b16 %v3489
  %v4056 = vunpack.c.l.b16 %v3490
  %v4057 = vunpack.c.h.b16 %v3490
  %v4058 = vunpack.c.l.b16 %v3491
  %v4059 = vunpack.c.h.b16 %v3491
  %v4060 = vunpack.c.l.b16 %v3492
  %v4061 = vunpack.c.h.b16 %v3492
  %v4062 = vunpack.c.l.b16 %v3493
  %v4063 = vunpack.c.h.b16 %v3493
  %v4064 = vunpack.c.l.b16 %v3494
  %v4065 = vunpack.c.h.b16 %v3494
  %v4066 = vunpack.c.l.b16 %v3495
  %v4067 = vunpack.c.h.b16 %v3495
  %v4068 = vunpack.c.l.b16 %v3496
  %v4069 = vunpack.c.h.b16 %v3496
  %v4070 = vunpack.c.l.b16 %v3497
  %v4071 = vunpack.c.h.b16 %v3497
  %v4072 = vunpack.c.l.b16 %v3498
  %v4073 = vunpack.c.h.b16 %v3498
  %v4074 = vunpack.c.l.b16 %v3499
  %v4075 = vunpack.c.h.b16 %v3499
  %v4076 = vunpack.c.l.b16 %v3500
  %v4077 = vunpack.c.h.b16 %v3500
  %v4078 = vunpack.c.l.b16 %v3501
  %v4079 = vunpack.c.h.b16 %v3501
  %v4080 = vunpack.c.l.b16 %v3502
  %v4081 = vunpack.c.h.b16 %v3502
  %v4082 = vunpack.c.l.b16 %v3503
  %v4083 = vunpack.c.h.b16 %v3503
  %v4084 = vunpack.c.l.b16 %v3504
  %v4085 = vunpack.c.h.b16 %v3504
  %v4086 = vunpack.c.l.b16 %v3505
  %v4087 = vunpack.c.h.b16 %v3505
  %v4088 = vunpack.c.l.b16 %v3506
  %v4089 = vunpack.c.h.b16 %v3506
  %v4090 = vunpack.c.l.b16 %v3507
  %v4091 = vunpack.c.h.b16 %v3507
  %v4092 = vunpack.c.l.b16 %v3508
  %v4093 = vunpack.c.h.b16 %v3508
  %v4094 = vunpack.c.l.b16 %v3509
  %v4095 = vunpack.c.h.b16 %v3509
  %v4096 = vunpack.c.l.b16 %v3510
  %v4097 = vunpack.c.h.b16 %v3510
  %v4098 = vunpack.c.l.b16 %v3511
  %v4099 = vunpack.c.h.b16 %v3511
  %v4100 = vunpack.c.l.b16 %v3512
  %v4101 = vunpack.c.h.b16 %v3512
  %v4102 = vunpack.c.l.b16 %v3513
  %v4103 = vunpack.c.h.b16 %v3513
  %v4104 = vunpack.c.l.b16 %v3514
  %v4105 = vunpack.c.h.b16 %v3514
  %v4106 = vunpack.c.l.b16 %v3515
  %v4107 = vunpack.c.h.b16 %v3515
  %v4108 = vunpack.c.l.b16 %v3516
  %v4109 = vunpack.c.h.b16 %v3516
  %v4110 = vunpack.c.l.b16 %v3517
  %v4111 = vunpack.c.h.b16 %v3517
  %v4112 = vunpack.c.l.b16 %v3518
  %v4113 = vunpack.c.h.b16 %v3518
  %v4114 = vunpack.c.l.b16 %v3519
  %v4115 = vunpack.c.h.b16 %v3519
  %v4116 = vunpack.c.l.b16 %v3520
  %v4117 = vunpack.c.h.b16 %v3520
  %v4118 = vunpack.c.l.b16 %v3521
  %v4119 = vunpack.c.h.b16 %v3521
  %v4120 = vunpack.c.l.b16 %v3522
  %v4121 = vunpack.c.h.b16 %v3522
  %v4122 = vunpack.c.l.b16 %v3523
  %v4123 = vunpack.c.h.b16 %v3523
  %v4124 = vunpack.c.l.b16 %v3524
  %v4125 = vunpack.c.h.b16 %v3524
  %v4126 = vunpack.c.l.b16 %v3525
  %v4127 = vunpack.c.h.b16 %v3525
  %v4128 = vunpack.c.l.b16 %v3526
  %v4129 = vunpack.c.h.b16 %v3526
  %v4130 = vunpack.c.l.b16 %v3527
  %v4131 = vunpack.c.h.b16 %v3527
  %v4132 = vunpack.c.l.b16 %v3528
  %v4133 = vunpack.c.h.b16 %v3528
  %v4134 = vunpack.c.l.b16 %v3529
  %v4135 = vunpack.c.h.b16 %v3529
  %v4136 = vunpack.c.l.b16 %v3530
  %v4137 = vunpack.c.h.b16 %v3530
  %v4138 = vunpack.c.l.b16 %v3531
  %v4139 = vunpack.c.h.b16 %v3531
  %v4140 = vunpack.c.l.b16 %v3532
  %v4141 = vunpack.c.h.b16 %v3532
  %v4142 = vunpack.c.l.b16 %v3533
  %v4143 = vunpack.c.h.b16 %v3533
  %v4144 = vunpack.c.l.b16 %v3534
  %v4145 = vunpack.c.h.b16 %v3534
  %v4146 = vunpack.c.l.b16 %v3535
  %v4147 = vunpack.c.h.b16 %v3535
  %v4148 = vunpack.c.l.b16 %v3536
  %v4149 = vunpack.c.h.b16 %v3536
  %v4150 = vunpack.c.l.b16 %v3537
  %v4151 = vunpack.c.h.b16 %v3537
  %v4152 = vunpack.c.l.b16 %v3538
  %v4153 = vunpack.c.h.b16 %v3538
  %v4154 = vunpack.c.l.b16 %v3539
  %v4155 = vunpack.c.h.b16 %v3539
  %v4156 = vunpack.c.l.b16 %v3540
  %v4157 = vunpack.c.h.b16 %v3540
  %v4158 = vunpack.c.l.b16 %v3541
  %v4159 = vunpack.c.h.b16 %v3541
  %v4160 = vunpack.c.l.b16 %v3542
  %v4161 = vunpack.c.h.b16 %v3542
  %v4162 = vunpack.c.l.b16 %v3543
  %v4163 = vunpack.c.h.b16 %v3543
  %v4164 = vunpack.c.l.b16 %v3544
  %v4165 = vunpack.c.h.b16 %v3544
  %v4166 = vunpack.c.l.b16 %v3545
  %v4167 = vunpack.c.h.b16 %v3545
  %v4168 = vunpack.c.l.b16 %v3546
  %v4169 = vunpack.c.h.b16 %v3546
  %v4170 = vunpack.c.l.b16 %v3547
  %v4171 = vunpack.c.h.b16 %v3547
  %v4172 = vunpack.c.l.b16 %v3548
  %v4173 = vunpack.c.h.b16 %v3548
  %v4174 = vunpack.c.l.b16 %v3549
  %v4175 = vunpack.c.h.b16 %v3549
  %v4176 = vunpack.c.l.b16 %v3550
  %v4177 = vunpack.c.h.b16 %v3550
  %v4178 = vunpack.c.l.b16 %v3551
  %v4179 = vunpack.c.h.b16 %v3551
  %v4180 = vunpack.c.l.b16 %v3552
  %v4181 = vunpack.c.h.b16 %v3552
  %v4182 = vunpack.c.l.b16 %v3553
  %v4183 = vunpack.c.h.b16 %v3553
  %v4184 = vunpack.c.l.b16 %v3554
  %v4185 = vunpack.c.h.b16 %v3554
  %v4186 = vunpack.c.l.b16 %v3555
  %v4187 = vunpack.c.h.b16 %v3555
  %v4188 = vunpack.c.l.b16 %v3556
  %v4189 = vunpack.c.h.b16 %v3556
  %v4190 = vunpack.c.l.b16 %v3557
  %v4191 = vunpack.c.h.b16 %v3557
  %v4192 = vunpack.c.l.b16 %v3558
  %v4193 = vunpack.c.h.b16 %v3558
  %v4194 = vunpack.c.l.b16 %v3559
  %v4195 = vunpack.c.h.b16 %v3559
  %v4196 = vunpack.c.l.b16 %v3560
  %v4197 = vunpack.c.h.b16 %v3560
  %v4198 = vunpack.c.l.b16 %v3561
  %v4199 = vunpack.c.h.b16 %v3561
  %v4200 = vunpack.c.l.b16 %v3562
  %v4201 = vunpack.c.h.b16 %v3562
  %v4202 = vunpack.c.l.b16 %v3563
  %v4203 = vunpack.c.h.b16 %v3563
  %v4204 = vunpack.c.l.b16 %v3564
  %v4205 = vunpack.c.h.b16 %v3564
  %v4206 = vunpack.c.l.b16 %v3565
  %v4207 = vunpack.c.h.b16 %v3565
  %v4208 = vunpack.c.l.b16 %v3566
  %v4209 = vunpack.c.h.b16 %v3566
  %v4210 = vunpack.c.l.b16 %v3567
  %v4211 = vunpack.c.h.b16 %v3567
  %v4212 = vunpack.c.l.b16 %v3568
  %v4213 = vunpack.c.h.b16 %v3568
  %v4214 = vunpack.c.l.b16 %v3569
  %v4215 = vunpack.c.h.b16 %v3569
  %v4216 = vunpack.c.l.b16 %v3570
  %v4217 = vunpack.c.h.b16 %v3570
  %v4218 = vunpack.c.l.b16 %v3571
  %v4219 = vunpack.c.h.b16 %v3571
  %v4220 = vunpack.c.l.b16 %v3572
  %v4221 = vunpack.c.h.b16 %v3572
  %v4222 = vunpack.c.l.b16 %v3573
  %v4223 = vunpack.c.h.b16 %v3573
  %v4224 = vunpack.c.l.b16 %v3574
  %v4225 = vunpack.c.h.b16 %v3574
  %v4226 = vunpack.c.l.b16 %v3575
  %v4227 = vunpack.c.h.b16 %v3575
  %v4228 = vunpack.c.l.b16 %v3576
  %v4229 = vunpack.c.h.b16 %v3576
  %v4230 = vunpack.c.l.b16 %v3577
  %v4231 = vunpack.c.h.b16 %v3577
  %v4232 = vunpack.c.l.b16 %v3578
  %v4233 = vunpack.c.h.b16 %v3578
  %v4234 = vunpack.c.l.b16 %v3579
  %v4235 = vunpack.c.h.b16 %v3579
  %v4236 = vunpack.c.l.b16 %v3580
  %v4237 = vunpack.c.h.b16 %v3580
  %v4238 = vunpack.c.l.b16 %v3581
  %v4239 = vunpack.c.h.b16 %v3581
  %v4240 = vunpack.c.l.b16 %v3582
  %v4241 = vunpack.c.h.b16 %v3582
  %v4242 = vunpack.c.l.b16 %v3583
  %v4243 = vunpack.c.h.b16 %v3583
  %v4244 = vunpack.c.l.b16 %v3584
  %v4245 = vunpack.c.h.b16 %v3584
  %v4246 = vunpack.c.l.b16 %v3585
  %v4247 = vunpack.c.h.b16 %v3585
  %v4248 = vunpack.c.l.b16 %v3586
  %v4249 = vunpack.c.h.b16 %v3586
  %v4250 = vunpack.c.l.b16 %v3587
  %v4251 = vunpack.c.h.b16 %v3587
  %v4252 = vunpack.c.l.b16 %v3588
  %v4253 = vunpack.c.h.b16 %v3588
  %v4254 = vunpack.c.l.b16 %v3589
  %v4255 = vunpack.c.h.b16 %v3589
  %v4256 = vunpack.c.l.b16 %v3590
  %v4257 = vunpack.c.h.b16 %v3590
  %v4258 = vunpack.c.l.b16 %v3591
  %v4259 = vunpack.c.h.b16 %v3591
  %v4260 = vunpack.c.l.b16 %v3592
  %v4261 = vunpack.c.h.b16 %v3592
  %v4262 = vunpack.c.l.b16 %v3593
  %v4263 = vunpack.c.h.b16 %v3593
  %v4264 = vunpack.c.l.b16 %v3594
  %v4265 = vunpack.c.h.b16 %v3594
  %v4266 = vunpack.c.l.b16 %v3595
  %v4267 = vunpack.c.h.b16 %v3595
  %v4268 = vunpack.c.l.b16 %v3596
  %v4269 = vunpack.c.h.b16 %v3596
  %v4270 = vunpack.c.l.b16 %v3597
  %v4271 = vunpack.c.h.b16 %v3597
  %v4272 = vunpack.c.l.b16 %v3598
  %v4273 = vunpack.c.h.b16 %v3598
  %v4274 = vunpack.c.l.b16 %v3599
  %v4275 = vunpack.c.h.b16 %v3599
  %v4276 = vunpack.c.l.b16 %v3600
  %v4277 = vunpack.c.h.b16 %v3600
  %v4278 = vunpack.c.l.b16 %v3601
  %v4279 = vunpack.c.h.b16 %v3601
  %v4280 = vunpack.c.l.b16 %v3602
  %v4281 = vunpack.c.h.b16 %v3602
  %v4282 = vunpack.c.l.b16 %v3603
  %v4283 = vunpack.c.h.b16 %v3603
  %v4284 = vunpack.c.l.b16 %v3604
  %v4285 = vunpack.c.h.b16 %v3604
  %v4286 = vunpack.c.l.b16 %v3605
  %v4287 = vunpack.c.h.b16 %v3605
  %v4288 = vunpack.c.l.b16 %v3606
  %v4289 = vunpack.c.h.b16 %v3606
  %v4290 = vunpack.c.l.b16 %v3607
  %v4291 = vunpack.c.h.b16 %v3607
  %v4292 = vunpack.c.l.b16 %v3608
  %v4293 = vunpack.c.h.b16 %v3608
  %v4294 = vunpack.c.l.b16 %v3609
  %v4295 = vunpack.c.h.b16 %v3609
  %v4296 = vunpack.c.l.b16 %v3610
  %v4297 = vunpack.c.h.b16 %v3610
  %v4298 = vunpack.c.l.b16 %v3611
  %v4299 = vunpack.c.h.b16 %v3611
  %v4300 = vunpack.c.l.b16 %v3612
  %v4301 = vunpack.c.h.b16 %v3612
  %v4302 = vunpack.c.l.b16 %v3613
  %v4303 = vunpack.c.h.b16 %v3613
  %v4304 = vunpack.c.l.b16 %v3614
  %v4305 = vunpack.c.h.b16 %v3614
  %v4306 = vunpack.c.l.b16 %v3615
  %v4307 = vunpack.c.h.b16 %v3615
  %v4308 = vunpack.c.l.b16 %v3616
  %v4309 = vunpack.c.h.b16 %v3616
  %v4310 = vunpack.c.l.b16 %v3617
  %v4311 = vunpack.c.h.b16 %v3617
  %v4312 = vunpack.c.l.b16 %v3618
  %v4313 = vunpack.c.h.b16 %v3618
  %v4314 = vunpack.c.l.b16 %v3619
  %v4315 = vunpack.c.h.b16 %v3619
  %v4316 = vunpack.c.l.b16 %v3620
  %v4317 = vunpack.c.h.b16 %v3620
  %v4318 = vunpack.c.l.b16 %v3621
  %v4319 = vunpack.c.h.b16 %v3621
  %v4320 = vunpack.c.l.b16 %v3622
  %v4321 = vunpack.c.h.b16 %v3622
  %v4322 = vunpack.c.l.b16 %v3623
  %v4323 = vunpack.c.h.b16 %v3623
  %v4324 = vunpack.c.l.b16 %v3624
  %v4325 = vunpack.c.h.b16 %v3624
  %v4326 = vunpack.c.l.b16 %v3625
  %v4327 = vunpack.c.h.b16 %v3625
  %v4328 = vunpack.c.l.b16 %v3626
  %v4329 = vunpack.c.h.b16 %v3626
  %v4330 = vunpack.c.l.b16 %v3627
  %v4331 = vunpack.c.h.b16 %v3627
  %v4332 = vunpack.c.l.b16 %v3628
  %v4333 = vunpack.c.h.b16 %v3628
  %v4334 = vunpack.c.l.b16 %v3629
  %v4335 = vunpack.c.h.b16 %v3629
  %v4336 = vunpack.c.l.b16 %v3630
  %v4337 = vunpack.c.h.b16 %v3630
  %v4338 = vunpack.c.l.b16 %v3631
  %v4339 = vunpack.c.h.b16 %v3631
  %v4340 = vunpack.c.l.b16 %v3632
  %v4341 = vunpack.c.h.b16 %v3632
  %v4342 = vunpack.c.l.b16 %v3633
  %v4343 = vunpack.c.h.b16 %v3633
  %v4344 = vunpack.c.l.b16 %v3634
  %v4345 = vunpack.c.h.b16 %v3634
  %v4346 = vunpack.c.l.b16 %v3635
  %v4347 = vunpack.c.h.b16 %v3635
  %v4348 = vunpack.c.l.b16 %v3636
  %v4349 = vunpack.c.h.b16 %v3636
  %v4350 = vunpack.c.l.b16 %v3637
  %v4351 = vunpack.c.h.b16 %v3637
  %v4352 = vunpack.c.l.b16 %v3638
  %v4353 = vunpack.c.h.b16 %v3638
  %v4354 = vunpack.c.l.b16 %v3639
  %v4355 = vunpack.c.h.b16 %v3639
  %v4356 = vunpack.c.l.b16 %v3640
  %v4357 = vunpack.c.h.b16 %v3640
  %v4358 = vunpack.c.l.b16 %v3641
  %v4359 = vunpack.c.h.b16 %v3641
  %v4360 = vunpack.c.l.b16 %v3642
  %v4361 = vunpack.c.h.b16 %v3642
  %v4362 = vunpack.c.l.b16 %v3643
  %v4363 = vunpack.c.h.b16 %v3643
  %v4364 = vunpack.c.l.b16 %v3644
  %v4365 = vunpack.c.h.b16 %v3644
  %v4366 = vunpack.c.l.b16 %v3645
  %v4367 = vunpack.c.h.b16 %v3645
  %v4368 = vunpack.c.l.b16 %v3646
  %v4369 = vunpack.c.h.b16 %v3646
  %v4370 = vunpack.c.l.b16 %v3647
  %v4371 = vunpack.c.h.b16 %v3647
  %v4372 = vunpack.c.l.b16 %v3648
  %v4373 = vunpack.c.h.b16 %v3648
  %v4374 = vunpack.c.l.b16 %v3649
  %v4375 = vunpack.c.h.b16 %v3649
  %v4376 = vunpack.c.l.b16 %v3650
  %v4377 = vunpack.c.h.b16 %v3650
  %v4378 = vunpack.c.l.b16 %v3651
  %v4379 = vunpack.c.h.b16 %v3651
  %v4380 = vunpack.c.l.b16 %v3652
  %v4381 = vunpack.c.h.b16 %v3652
  %v4382 = vunpack.c.l.b16 %v3653
  %v4383 = vunpack.c.h.b16 %v3653
  %v4384 = vunpack.c.l.b16 %v3654
  %v4385 = vunpack.c.h.b16 %v3654
  %v4386 = vunpack.c.l.b16 %v3655
  %v4387 = vunpack.c.h.b16 %v3655
  %v4388 = vunpack.c.l.b16 %v3656
  %v4389 = vunpack.c.h.b16 %v3656
  %v4390 = vunpack.c.l.b16 %v3657
  %v4391 = vunpack.c.h.b16 %v3657
  %v4392 = vunpack.c.l.b16 %v3658
  %v4393 = vunpack.c.h.b16 %v3658
  %v4394 = vunpack.c.l.b16 %v3659
  %v4395 = vunpack.c.h.b16 %v3659
  %v4396 = vunpack.c.l.b16 %v3660
  %v4397 = vunpack.c.h.b16 %v3660
  %v4398 = vunpack.c.l.b16 %v3661
  %v4399 = vunpack.c.h.b16 %v3661
  %v4400 = vunpack.c.l.b16 %v3662
  %v4401 = vunpack.c.h.b16 %v3662
  %v4402 = vunpack.c.l.b16 %v3663
  %v4403 = vunpack.c.h.b16 %v3663
  %v4404 = vunpack.c.l.b16 %v3664
  %v4405 = vunpack.c.h.b16 %v3664
  %v4406 = vunpack.c.l.b16 %v3665
  %v4407 = vunpack.c.h.b16 %v3665
  %v4408 = vunpack.c.l.b16 %v3666
  %v4409 = vunpack.c.h.b16 %v3666
  %v4410 = vunpack.c.l.b16 %v3667
  %v4411 = vunpack.c.h.b16 %v3667
  %v4412 = vunpack.c.l.b16 %v3668
  %v4413 = vunpack.c.h.b16 %v3668
  %v4414 = vunpack.c.l.b16 %v3669
  %v4415 = vunpack.c.h.b16 %v3669
  %v4416 = vunpack.c.l.b16 %v3670
  %v4417 = vunpack.c.h.b16 %v3670
  %v4418 = vunpack.c.l.b16 %v3671
  %v4419 = vunpack.c.h.b16 %v3671
  %v4420 = vunpack.c.l.b16 %v3672
  %v4421 = vunpack.c.h.b16 %v3672
  %v4422 = vunpack.c.l.b16 %v3673
  %v4423 = vunpack.c.h.b16 %v3673
  %v4424 = vunpack.c.l.b16 %v3674
  %v4425 = vunpack.c.h.b16 %v3674
  %v4426 = vunpack.c.l.b16 %v3675
  %v4427 = vunpack.c.h.b16 %v3675
  %v4428 = vunpack.c.l.b16 %v3676
  %v4429 = vunpack.c.h.b16 %v3676
  %v4430 = vunpack.c.l.b16 %v3677
  %v4431 = vunpack.c.h.b16 %v3677
  %v4432 = vunpack.c.l.b16 %v3678
  %v4433 = vunpack.c.h.b16 %v3678
  %v4434 = vunpack.c.l.b16 %v3679
  %v4435 = vunpack.c.h.b16 %v3679
  %v4436 = vunpack.c.l.b16 %v3680
  %v4437 = vunpack.c.h.b16 %v3680
  %v4438 = vunpack.c.l.b16 %v3681
  %v4439 = vunpack.c.h.b16 %v3681
  %v4440 = vunpack.c.l.b16 %v3682
  %v4441 = vunpack.c.h.b16 %v3682
  %v4442 = vunpack.c.l.b16 %v3683
  %v4443 = vunpack.c.h.b16 %v3683
  %v4444 = vunpack.c.l.b16 %v3684
  %v4445 = vunpack.c.h.b16 %v3684
  %v4446 = vunpack.c.l.b16 %v3685
  %v4447 = vunpack.c.h.b16 %v3685
  %v4448 = vunpack.c.l.b16 %v3686
  %v4449 = vunpack.c.h.b16 %v3686
  %v4450 = vunpack.c.l.b16 %v3687
  %v4451 = vunpack.c.h.b16 %v3687
  %v4452 = vunpack.c.l.b16 %v3688
  %v4453 = vunpack.c.h.b16 %v3688
  %v4454 = vunpack.c.l.b16 %v3689
  %v4455 = vunpack.c.h.b16 %v3689
  %v4456 = vunpack.c.l.b16 %v3690
  %v4457 = vunpack.c.h.b16 %v3690
  %v4458 = vunpack.c.l.b16 %v3691
  %v4459 = vunpack.c.h.b16 %v3691
  %v4460 = vunpack.c.l.b16 %v3692
  %v4461 = vunpack.c.h.b16 %v3692
  %v4462 = vunpack.c.l.b16 %v3693
  %v4463 = vunpack.c.h.b16 %v3693
  %v4464 = vunpack.c.l.b16 %v3694
  %v4465 = vunpack.c.h.b16 %v3694
  %v4466 = vunpack.c.l.b16 %v3695
  %v4467 = vunpack.c.h.b16 %v3695
  %v4468 = vunpack.c.l.b16 %v3696
  %v4469 = vunpack.c.h.b16 %v3696
  %v4470 = vunpack.c.l.b16 %v3697
  %v4471 = vunpack.c.h.b16 %v3697
  %v4472 = vunpack.c.l.b16 %v3698
  %v4473 = vunpack.c.h.b16 %v3698
  %v4474 = vunpack.c.l.b16 %v3699
  %v4475 = vunpack.c.h.b16 %v3699
  %v4476 = vunpack.c.l.b16 %v3700
  %v4477 = vunpack.c.h.b16 %v3700
  %v4478 = vunpack.c.l.b16 %v3701
  %v4479 = vunpack.c.h.b16 %v3701
  %v4480 = vunpack.c.l.b16 %v3702
  %v4481 = vunpack.c.h.b16 %v3702
  %v4482 = vunpack.c.l.b16 %v3703
  %v4483 = vunpack.c.h.b16 %v3703
  %v4484 = vunpack.c.l.b16 %v3704
  %v4485 = vunpack.c.h.b16 %v3704
  %v4486 = vunpack.c.l.b16 %v3705
  %v4487 = vunpack.c.h.b16 %v3705
  %v4488 = vunpack.c.l.b16 %v3706
  %v4489 = vunpack.c.h.b16 %v3706
  %v4490 = vunpack.c.l.b16 %v3707
  %v4491 = vunpack.c.h.b16 %v3707
  %v4492 = vunpack.c.l.b16 %v3708
  %v4493 = vunpack.c.h.b16 %v3708
  %v4494 = vunpack.c.l.b16 %v3709
  %v4495 = vunpack.c.h.b16 %v3709
  %v4496 = vunpack.c.l.b16 %v3710
  %v4497 = vunpack.c.h.b16 %v3710
  %v4498 = vunpack.c.l.b16 %v3711
  %v4499 = vunpack.c.h.b16 %v3711
  %v4500 = vunpack.c.l.b16 %v3712
  %v4501 = vunpack.c.h.b16 %v3712
  %v4502 = vunpack.c.l.b16 %v3713
  %v4503 = vunpack.c.h.b16 %v3713
  %v4504 = vpack.c.b16 %v3996, %v3992
  %v4505 = vpack.c.b16 %v3997, %v3993
  %v4506 = vpack.c.b16 %v3998, %v3994
  %v4507 = vpack.c.b16 %v3999, %v3995
  %v4508 = vpack.c.b16 %v4004, %v4000
  %v4509 = vpack.c.b16 %v4005, %v4001
  %v4510 = vpack.c.b16 %v4006, %v4002
  %v4511 = vpack.c.b16 %v4007, %v4003
  %v4512 = vpack.c.b16 %v4012, %v4008
  %v4513 = vpack.c.b16 %v4013, %v4009
  %v4514 = vpack.c.b16 %v4014, %v4010
  %v4515 = vpack.c.b16 %v4015, %v4011
  %v4516 = vpack.c.b16 %v4020, %v4016
  %v4517 = vpack.c.b16 %v4021, %v4017
  %v4518 = vpack.c.b16 %v4022, %v4018
  %v4519 = vpack.c.b16 %v4023, %v4019
  %v4520 = vpack.c.b16 %v4028, %v4024
  %v4521 = vpack.c.b16 %v4029, %v4025
  %v4522 = vpack.c.b16 %v4030, %v4026
  %v4523 = vpack.c.b16 %v4031, %v4027
  %v4524 = vpack.c.b16 %v4036, %v4032
  %v4525 = vpack.c.b16 %v4037, %v4033
  %v4526 = vpack.c.b16 %v4038, %v4034
  %v4527 = vpack.c.b16 %v4039, %v4035
  %v4528 = vpack.c.b16 %v4044, %v4040
  %v4529 = vpack.c.b16 %v4045, %v4041
  %v4530 = vpack.c.b16 %v4046, %v4042
  %v4531 = vpack.c.b16 %v4047, %v4043
  %v4532 = vpack.c.b16 %v4052, %v4048
  %v4533 = vpack.c.b16 %v4053, %v4049
  %v4534 = vpack.c.b16 %v4054, %v4050
  %v4535 = vpack.c.b16 %v4055, %v4051
  %v4536 = vpack.c.b16 %v4060, %v4056
  %v4537 = vpack.c.b16 %v4061, %v4057
  %v4538 = vpack.c.b16 %v4062, %v4058
  %v4539 = vpack.c.b16 %v4063, %v4059
  %v4540 = vpack.c.b16 %v4068, %v4064
  %v4541 = vpack.c.b16 %v4069, %v4065
  %v4542 = vpack.c.b16 %v4070, %v4066
  %v4543 = vpack.c.b16 %v4071, %v4067
  %v4544 = vpack.c.b16 %v4076, %v4072
  %v4545 = vpack.c.b16 %v4077, %v4073
  %v4546 = vpack.c.b16 %v4078, %v4074
  %v4547 = vpack.c.b16 %v4079, %v4075
  %v4548 = vpack.c.b16 %v4084, %v4080
  %v4549 = vpack.c.b16 %v4085, %v4081
  %v4550 = vpack.c.b16 %v4086, %v4082
  %v4551 = vpack.c.b16 %v4087, %v4083
  %v4552 = vpack.c.b16 %v4092, %v4088
  %v4553 = vpack.c.b16 %v4093, %v4089
  %v4554 = vpack.c.b16 %v4094, %v4090
  %v4555 = vpack.c.b16 %v4095, %v4091
  %v4556 = vpack.c.b16 %v4100, %v4096
  %v4557 = vpack.c.b16 %v4101, %v4097
  %v4558 = vpack.c.b16 %v4102, %v4098
  %v4559 = vpack.c.b16 %v4103, %v4099
  %v4560 = vpack.c.b16 %v4108, %v4104
  %v4561 = vpack.c.b16 %v4109, %v4105
  %v4562 = vpack.c.b16 %v4110, %v4106
  %v4563 = vpack.c.b16 %v4111, %v4107
  %v4564 = vpack.c.b16 %v4116, %v4112
  %v4565 = vpack.c.b16 %v4117, %v4113
  %v4566 = vpack.c.b16 %v4118, %v4114
  %v4567 = vpack.c.b16 %v4119, %v4115
  %v4568 = vpack.c.b16 %v4124, %v4120
  %v4569 = vpack.c.b16 %v4125, %v4121
  %v4570 = vpack.c.b16 %v4126, %v4122
  %v4571 = vpack.c.b16 %v4127, %v4123
  %v4572 = vpack.c.b16 %v4132, %v4128
  %v4573 = vpack.c.b16 %v4133, %v4129
  %v4574 = vpack.c.b16 %v4134, %v4130
  %v4575 = vpack.c.b16 %v4135, %v4131
  %v4576 = vpack.c.b16 %v4140, %v4136
  %v4577 = vpack.c.b16 %v4141, %v4137
  %v4578 = vpack.c.b16 %v4142, %v4138
  %v4579 = vpack.c.b16 %v4143, %v4139
  %v4580 = vpack.c.b16 %v4148, %v4144
  %v4581 = vpack.c.b16 %v4149, %v4145
  %v4582 = vpack.c.b16 %v4150, %v4146
  %v4583 = vpack.c.b16 %v4151, %v4147
  %v4584 = vpack.c.b16 %v4156, %v4152
  %v4585 = vpack.c.b16 %v4157, %v4153
  %v4586 = vpack.c.b16 %v4158, %v4154
  %v4587 = vpack.c.b16 %v4159, %v4155
  %v4588 = vpack.c.b16 %v4164, %v4160
  %v4589 = vpack.c.b16 %v4165, %v4161
  %v4590 = vpack.c.b16 %v4166, %v4162
  %v4591 = vpack.c.b16 %v4167, %v4163
  %v4592 = vpack.c.b16 %v4172, %v4168
  %v4593 = vpack.c.b16 %v4173, %v4169
  %v4594 = vpack.c.b16 %v4174, %v4170
  %v4595 = vpack.c.b16 %v4175, %v4171
  %v4596 = vpack.c.b16 %v4180, %v4176
  %v4597 = vpack.c.b16 %v4181, %v4177
  %v4598 = vpack.c.b16 %v4182, %v4178
  %v4599 = vpack.c.b16 %v4183, %v4179
  %v4600 = vpack.c.b16 %v4188, %v4184
  %v4601 = vpack.c.b16 %v4189, %v4185
  %v4602 = vpack.c.b16 %v4190, %v4186
  %v4603 = vpack.c.b16 %v4191, %v4187
  %v4604 = vpack.c.b16 %v4196, %v4192
  %v4605 = vpack.c.b16 %v4197, %v4193
  %v4606 = vpack.c.b16 %v4198, %v4194
  %v4607 = vpack.c.b16 %v4199, %v4195
  %v4608 = vpack.c.b16 %v4204, %v4200
  %v4609 = vpack.c.b16 %v4205, %v4201
  %v4610 = vpack.c.b16 %v4206, %v4202
  %v4611 = vpack.c.b16 %v4207, %v4203
  %v4612 = vpack.c.b16 %v4212, %v4208
  %v4613 = vpack.c.b16 %v4213, %v4209
  %v4614 = vpack.c.b16 %v4214, %v4210
  %v4615 = vpack.c.b16 %v4215, %v4211
  %v4616 = vpack.c.b16 %v4220, %v4216
  %v4617 = vpack.c.b16 %v4221, %v4217
  %v4618 = vpack.c.b16 %v4222, %v4218
  %v4619 = vpack.c.b16 %v4223, %v4219
  %v4620 = vpack.c.b16 %v4228, %v4224
  %v4621 = vpack.c.b16 %v4229, %v4225
  %v4622 = vpack.c.b16 %v4230, %v4226
  %v4623 = vpack.c.b16 %v4231, %v4227
  %v4624 = vpack.c.b16 %v4236, %v4232
  %v4625 = vpack.c.b16 %v4237, %v4233
  %v4626 = vpack.c.b16 %v4238, %v4234
  %v4627 = vpack.c.b16 %v4239, %v4235
  %v4628 = vpack.c.b16 %v4244, %v4240
  %v4629 = vpack.c.b16 %v4245, %v4241
  %v4630 = vpack.c.b16 %v4246, %v4242
  %v4631 = vpack.c.b16 %v4247, %v4243
  %v4632 = vpack.c.b16 %v4252, %v4248
  %v4633 = vpack.c.b16 %v4253, %v4249
  %v4634 = vpack.c.b16 %v4254, %v4250
  %v4635 = vpack.c.b16 %v4255, %v4251
  %v4636 = vpack.c.b16 %v4260, %v4256
  %v4637 = vpack.c.b16 %v4261, %v4257
  %v4638 = vpack.c.b16 %v4262, %v4258
  %v4639 = vpack.c.b16 %v4263, %v4259
  %v4640 = vpack.c.b16 %v4268, %v4264
  %v4641 = vpack.c.b16 %v4269, %v4265
  %v4642 = vpack.c.b16 %v4270, %v4266
  %v4643 = vpack.c.b16 %v4271, %v4267
  %v4644 = vpack.c.b16 %v4276, %v4272
  %v4645 = vpack.c.b16 %v4277, %v4273
  %v4646 = vpack.c.b16 %v4278, %v4274
  %v4647 = vpack.c.b16 %v4279, %v4275
  %v4648 = vpack.c.b16 %v4284, %v4280
  %v4649 = vpack.c.b16 %v4285, %v4281
  %v4650 = vpack.c.b16 %v4286, %v4282
  %v4651 = vpack.c.b16 %v4287, %v4283
  %v4652 = vpack.c.b16 %v4292, %v4288
  %v4653 = vpack.c.b16 %v4293, %v4289
  %v4654 = vpack.c.b16 %v4294, %v4290
  %v4655 = vpack.c.b16 %v4295, %v4291
  %v4656 = vpack.c.b16 %v4300, %v4296
  %v4657 = vpack.c.b16 %v4301, %v4297
  %v4658 = vpack.c.b16 %v4302, %v4298
  %v4659 = vpack.c.b16 %v4303, %v4299
  %v4660 = vpack.c.b16 %v4308, %v4304
  %v4661 = vpack.c.b16 %v4309, %v4305
  %v4662 = vpack.c.b16 %v4310, %v4306
  %v4663 = vpack.c.b16 %v4311, %v4307
  %v4664 = vpack.c.b16 %v4316, %v4312
  %v4665 = vpack.c.b16 %v4317, %v4313
  %v4666 = vpack.c.b16 %v4318, %v4314
  %v4667 = vpack.c.b16 %v4319, %v4315
  %v4668 = vpack.c.b16 %v4324, %v4320
  %v4669 = vpack.c.b16 %v4325, %v4321
  %v4670 = vpack.c.b16 %v4326, %v4322
  %v4671 = vpack.c.b16 %v4327, %v4323
  %v4672 = vpack.c.b16 %v4332, %v4328
  %v4673 = vpack.c.b16 %v4333, %v4329
  %v4674 = vpack.c.b16 %v4334, %v4330
  %v4675 = vpack.c.b16 %v4335, %v4331
  %v4676 = vpack.c.b16 %v4340, %v4336
  %v4677 = vpack.c.b16 %v4341, %v4337
  %v4678 = vpack.c.b16 %v4342, %v4338
  %v4679 = vpack.c.b16 %v4343, %v4339
  %v4680 = vpack.c.b16 %v4348, %v4344
  %v4681 = vpack.c.b16 %v4349, %v4345
  %v4682 = vpack.c.b16 %v4350, %v4346
  %v4683 = vpack.c.b16 %v4351, %v4347
  %v4684 = vpack.c.b16 %v4356, %v4352
  %v4685 = vpack.c.b16 %v4357, %v4353
  %v4686 = vpack.c.b16 %v4358, %v4354
  %v4687 = vpack.c.b16 %v4359, %v4355
  %v4688 = vpack.c.b16 %v4364, %v4360
  %v4689 = vpack.c.b16 %v4365, %v4361
  %v4690 = vpack.c.b16 %v4366, %v4362
  %v4691 = vpack.c.b16 %v4367, %v4363
  %v4692 = vpack.c.b16 %v4372, %v4368
  %v4693 = vpack.c.b16 %v4373, %v4369
  %v4694 = vpack.c.b16 %v4374, %v4370
  %v4695 = vpack.c.b16 %v4375, %v4371
  %v4696 = vpack.c.b16 %v4380, %v4376
  %v4697 = vpack.c.b16 %v4381, %v4377
  %v4698 = vpack.c.b16 %v4382, %v4378
  %v4699 = vpack.c.b16 %v4383, %v4379
  %v4700 = vpack.c.b16 %v4388, %v4384
  %v4701 = vpack.c.b16 %v4389, %v4385
  %v4702 = vpack.c.b16 %v4390, %v4386
  %v4703 = vpack.c.b16 %v4391, %v4387
  %v4704 = vpack.c.b16 %v4396, %v4392
  %v4705 = vpack.c.b16 %v4397, %v4393
  %v4706 = vpack.c.b16 %v4398, %v4394
  %v4707 = vpack.c.b16 %v4399, %v4395
  %v4708 = vpack.c.b16 %v4404, %v4400
  %v4709 = vpack.c.b16 %v4405, %v4401
  %v4710 = vpack.c.b16 %v4406, %v4402
  %v4711 = vpack.c.b16 %v4407, %v4403
  %v4712 = vpack.c.b16 %v4412, %v4408
  %v4713 = vpack.c.b16 %v4413, %v4409
  %v4714 = vpack.c.b16 %v4414, %v4410
  %v4715 = vpack.c.b16 %v4415, %v4411
  %v4716 = vpack.c.b16 %v4420, %v4416
  %v4717 = vpack.c.b16 %v4421, %v4417
  %v4718 = vpack.c.b16 %v4422, %v4418
  %v4719 = vpack.c.b16 %v4423, %v4419
  %v4720 = vpack.c.b16 %v4428, %v4424
  %v4721 = vpack.c.b16 %v4429, %v4425
  %v4722 = vpack.c.b16 %v4430, %v4426
  %v4723 = vpack.c.b16 %v4431, %v4427
  %v4724 = vpack.c.b16 %v4436, %v4432
  %v4725 = vpack.c.b16 %v4437, %v4433
  %v4726 = vpack.c.b16 %v4438, %v4434
  %v4727 = vpack.c.b16 %v4439, %v4435
  %v4728 = vpack.c.b16 %v4444, %v4440
  %v4729 = vpack.c.b16 %v4445, %v4441
  %v4730 = vpack.c.b16 %v4446, %v4442
  %v4731 = vpack.c.b16 %v4447, %v4443
  %v4732 = vpack.c.b16 %v4452, %v4448
  %v4733 = vpack.c.b16 %v4453, %v4449
  %v4734 = vpack.c.b16 %v4454, %v4450
  %v4735 = vpack.c.b16 %v4455, %v4451
  %v4736 = vpack.c.b16 %v4460, %v4456
  %v4737 = vpack.c.b16 %v4461, %v4457
  %v4738 = vpack.c.b16 %v4462, %v4458
  %v4739 = vpack.c.b16 %v4463, %v4459
  %v4740 = vpack.c.b16 %v4468, %v4464
  %v4741 = vpack.c.b16 %v4469, %v4465
  %v4742 = vpack.c.b16 %v4470, %v4466
  %v4743 = vpack.c.b16 %v4471, %v4467
  %v4744 = vpack.c.b16 %v4476, %v4472
  %v4745 = vpack.c.b16 %v4477, %v4473
  %v4746 = vpack.c.b16 %v4478, %v4474
  %v4747 = vpack.c.b16 %v4479, %v4475
  %v4748 = vpack.c.b16 %v4484, %v4480
  %v4749 = vpack.c.b16 %v4485, %v4481
  %v4750 = vpack.c.b16 %v4486, %v4482
  %v4751 = vpack.c.b16 %v4487, %v4483
  %v4752 = vpack.c.b16 %v4492, %v4488
  %v4753 = vpack.c.b16 %v4493, %v4489
  %v4754 = vpack.c.b16 %v4494, %v4490
  %v4755 = vpack.c.b16 %v4495, %v4491
  %v4756 = vpack.c.b16 %v4500, %v4496
  %v4757 = vpack.c.b16 %v4501, %v4497
  %v4758 = vpack.c.b16 %v4502, %v4498
  %v4759 = vpack.c.b16 %v4503, %v4499
  %5016 = vmatprep.subr.bf16.mxu0 %v4505
  %5017 = vmatpush1.bf16.msra.mxu0 %v4504
  %5018 = vmatprep.subr.bf16.mxu0 %v4509
  %5019 = vmatpush1.bf16.msra.mxu0 %v4508
  %5020 = vmatprep.subr.bf16.mxu0 %v4513
  %5021 = vmatpush1.bf16.msra.mxu0 %v4512
  %5022 = vmatprep.subr.bf16.mxu0 %v4517
  %5023 = vmatpush1.bf16.msra.mxu0 %v4516
  %5024 = vmatprep.subr.bf16.mxu0 %v4521
  %5025 = vmatpush1.bf16.msra.mxu0 %v4520
  %5026 = vmatprep.subr.bf16.mxu0 %v4525
  %5027 = vmatpush1.bf16.msra.mxu0 %v4524
  %5028 = vmatprep.subr.bf16.mxu0 %v4529
  %5029 = vmatpush1.bf16.msra.mxu0 %v4528
  %5030 = vmatprep.subr.bf16.mxu0 %v4533
  %5031 = vmatpush1.bf16.msra.mxu0 %v4532
  %5032 = vmatprep.subr.bf16.mxu0 %v4537
  %5033 = vmatpush1.bf16.msra.mxu0 %v4536
  %5034 = vmatprep.subr.bf16.mxu0 %v4541
  %5035 = vmatpush1.bf16.msra.mxu0 %v4540
  %5036 = vmatprep.subr.bf16.mxu0 %v4545
  %5037 = vmatpush1.bf16.msra.mxu0 %v4544
  %5038 = vmatprep.subr.bf16.mxu0 %v4549
  %5039 = vmatpush1.bf16.msra.mxu0 %v4548
  %5040 = vmatprep.subr.bf16.mxu0 %v4553
  %5041 = vmatpush1.bf16.msra.mxu0 %v4552
  %5042 = vmatprep.subr.bf16.mxu0 %v4557
  %5043 = vmatpush1.bf16.msra.mxu0 %v4556
  %5044 = vmatprep.subr.bf16.mxu0 %v4561
  %5045 = vmatpush1.bf16.msra.mxu0 %v4560
  %5046 = vmatprep.subr.bf16.mxu0 %v4565
  %5047 = vmatpush1.bf16.msra.mxu0 %v4564
  %5048 = vmatprep.mubr.bf16.mxu0 %v3451
  %5049 = vmatmul.mubr.bf16.gmra.mrb[0].mxu0 %v3450
  %v5050 = vpop.f32.mrb[0].mxu0
  %v5051 = vadd.f32 %v3719, %v5050
  %v5052 = vpop.f32.mrb[0].mxu0
  %v5053 = vadd.f32 %v3723, %v5052
  %v5054 = vpop.f32.mrb[0].mxu0
  %v5055 = vpop.f32.mrb[0].mxu0
  %5056 = vdwg.mxu0
  %5057 = vmatprep.subr.bf16.mxu0 %v4569
  %5058 = vmatpush1.bf16.msra.mxu0 %v4568
  %5059 = vmatprep.subr.bf16.mxu0 %v4573
  %5060 = vmatpush1.bf16.msra.mxu0 %v4572
  %5061 = vmatprep.subr.bf16.mxu0 %v4577
  %5062 = vmatpush1.bf16.msra.mxu0 %v4576
  %5063 = vmatprep.subr.bf16.mxu0 %v4581
  %5064 = vmatpush1.bf16.msra.mxu0 %v4580
  %5065 = vmatprep.subr.bf16.mxu0 %v4585
  %5066 = vmatpush1.bf16.msra.mxu0 %v4584
  %5067 = vmatprep.subr.bf16.mxu0 %v4589
  %5068 = vmatpush1.bf16.msra.mxu0 %v4588
  %5069 = vmatprep.subr.bf16.mxu0 %v4593
  %5070 = vmatpush1.bf16.msra.mxu0 %v4592
  %5071 = vmatprep.subr.bf16.mxu0 %v4597
  %5072 = vmatpush1.bf16.msra.mxu0 %v4596
  %5073 = vmatprep.subr.bf16.mxu0 %v4601
  %5074 = vmatpush1.bf16.msra.mxu0 %v4600
  %5075 = vmatprep.subr.bf16.mxu0 %v4605
  %5076 = vmatpush1.bf16.msra.mxu0 %v4604
  %5077 = vmatprep.subr.bf16.mxu0 %v4609
  %5078 = vmatpush1.bf16.msra.mxu0 %v4608
  %5079 = vmatprep.subr.bf16.mxu0 %v4613
  %5080 = vmatpush1.bf16.msra.mxu0 %v4612
  %5081 = vmatprep.subr.bf16.mxu0 %v4617
  %5082 = vmatpush1.bf16.msra.mxu0 %v4616
  %5083 = vmatprep.subr.bf16.mxu0 %v4621
  %5084 = vmatpush1.bf16.msra.mxu0 %v4620
  %5085 = vmatprep.subr.bf16.mxu0 %v4625
  %5086 = vmatpush1.bf16.msra.mxu0 %v4624
  %5087 = vmatprep.subr.bf16.mxu0 %v4629
  %5088 = vmatpush1.bf16.msra.mxu0 %v4628
  %5089 = vmatprep.mubr.bf16.mxu0 %v3453
  %5090 = vmatmul.mubr.bf16.gmra.mrb[0].mxu0 %v3452
  %v5091 = vpop.f32.mrb[0].mxu0
  %v5092 = vadd.f32 %v5051, %v5091
  %v5093 = vpop.f32.mrb[0].mxu0
  %v5094 = vadd.f32 %v5053, %v5093
  %v5095 = vpop.f32.mrb[0].mxu0
  %v5096 = vpop.f32.mrb[0].mxu0
  %5097 = vdwg.mxu0
  %5098 = vmatprep.subr.bf16.mxu0 %v4633
  %5099 = vmatpush1.bf16.msra.mxu0 %v4632
  %5100 = vmatprep.subr.bf16.mxu0 %v4637
  %5101 = vmatpush1.bf16.msra.mxu0 %v4636
  %5102 = vmatprep.subr.bf16.mxu0 %v4641
  %5103 = vmatpush1.bf16.msra.mxu0 %v4640
  %5104 = vmatprep.subr.bf16.mxu0 %v4645
  %5105 = vmatpush1.bf16.msra.mxu0 %v4644
  %5106 = vmatprep.subr.bf16.mxu0 %v4649
  %5107 = vmatpush1.bf16.msra.mxu0 %v4648
  %5108 = vmatprep.subr.bf16.mxu0 %v4653
  %5109 = vmatpush1.bf16.msra.mxu0 %v4652
  %5110 = vmatprep.subr.bf16.mxu0 %v4657
  %5111 = vmatpush1.bf16.msra.mxu0 %v4656
  %5112 = vmatprep.subr.bf16.mxu0 %v4661
  %5113 = vmatpush1.bf16.msra.mxu0 %v4660
  %5114 = vmatprep.subr.bf16.mxu0 %v4665
  %5115 = vmatpush1.bf16.msra.mxu0 %v4664
  %5116 = vmatprep.subr.bf16.mxu0 %v4669
  %5117 = vmatpush1.bf16.msra.mxu0 %v4668
  %5118 = vmatprep.subr.bf16.mxu0 %v4673
  %5119 = vmatpush1.bf16.msra.mxu0 %v4672
  %5120 = vmatprep.subr.bf16.mxu0 %v4677
  %5121 = vmatpush1.bf16.msra.mxu0 %v4676
  %5122 = vmatprep.subr.bf16.mxu0 %v4681
  %5123 = vmatpush1.bf16.msra.mxu0 %v4680
  %5124 = vmatprep.subr.bf16.mxu0 %v4685
  %5125 = vmatpush1.bf16.msra.mxu0 %v4684
  %5126 = vmatprep.subr.bf16.mxu0 %v4689
  %5127 = vmatpush1.bf16.msra.mxu0 %v4688
  %5128 = vmatprep.subr.bf16.mxu0 %v4693
  %5129 = vmatpush1.bf16.msra.mxu0 %v4692
  %5130 = vmatprep.mubr.bf16.mxu0 %v3455
  %5131 = vmatmul.mubr.bf16.gmra.mrb[0].mxu0 %v3454
  %v5132 = vpop.f32.mrb[0].mxu0
  %v5133 = vadd.f32 %v5092, %v5132
  %v5134 = vpop.f32.mrb[0].mxu0
  %v5135 = vadd.f32 %v5094, %v5134
  %v5136 = vpop.f32.mrb[0].mxu0
  %v5137 = vpop.f32.mrb[0].mxu0
  %5138 = vdwg.mxu0
  %5139 = vmatprep.subr.bf16.mxu0 %v4697
  %5140 = vmatpush1.bf16.msra.mxu0 %v4696
  %5141 = vmatprep.subr.bf16.mxu0 %v4701
  %5142 = vmatpush1.bf16.msra.mxu0 %v4700
  %5143 = vmatprep.subr.bf16.mxu0 %v4705
  %5144 = vmatpush1.bf16.msra.mxu0 %v4704
  %5145 = vmatprep.subr.bf16.mxu0 %v4709
  %5146 = vmatpush1.bf16.msra.mxu0 %v4708
  %5147 = vmatprep.subr.bf16.mxu0 %v4713
  %5148 = vmatpush1.bf16.msra.mxu0 %v4712
  %5149 = vmatprep.subr.bf16.mxu0 %v4717
  %5150 = vmatpush1.bf16.msra.mxu0 %v4716
  %5151 = vmatprep.subr.bf16.mxu0 %v4721
  %5152 = vmatpush1.bf16.msra.mxu0 %v4720
  %5153 = vmatprep.subr.bf16.mxu0 %v4725
  %5154 = vmatpush1.bf16.msra.mxu0 %v4724
  %5155 = vmatprep.subr.bf16.mxu0 %v4729
  %5156 = vmatpush1.bf16.msra.mxu0 %v4728
  %5157 = vmatprep.subr.bf16.mxu0 %v4733
  %5158 = vmatpush1.bf16.msra.mxu0 %v4732
  %5159 = vmatprep.subr.bf16.mxu0 %v4737
  %5160 = vmatpush1.bf16.msra.mxu0 %v4736
  %5161 = vmatprep.subr.bf16.mxu0 %v4741
  %5162 = vmatpush1.bf16.msra.mxu0 %v4740
  %5163 = vmatprep.subr.bf16.mxu0 %v4745
  %5164 = vmatpush1.bf16.msra.mxu0 %v4744
  %5165 = vmatprep.subr.bf16.mxu0 %v4749
  %5166 = vmatpush1.bf16.msra.mxu0 %v4748
  %5167 = vmatprep.subr.bf16.mxu0 %v4753
  %5168 = vmatpush1.bf16.msra.mxu0 %v4752
  %5169 = vmatprep.subr.bf16.mxu0 %v4757
  %5170 = vmatpush1.bf16.msra.mxu0 %v4756
  %5171 = vmatprep.mubr.bf16.mxu0 %v3457
  %5172 = vmatmul.mubr.bf16.gmra.mrb[0].mxu0 %v3456
  %v5173 = vpop.f32.mrb[0].mxu0
  %v5174 = vadd.f32 %v5133, %v5173
  %v5175 = vpop.f32.mrb[0].mxu0
  %v5176 = vadd.f32 %v5135, %v5175
  %v5177 = vpop.f32.mrb[0].mxu0
  %v5178 = vpop.f32.mrb[0].mxu0
  %5179 = vdwg.mxu0
  %5180 = vmatprep.subr.bf16.mxu0 %v4507
  %5181 = vmatpush1.bf16.msra.mxu0 %v4506
  %5182 = vmatprep.subr.bf16.mxu0 %v4511
  %5183 = vmatpush1.bf16.msra.mxu0 %v4510
  %5184 = vmatprep.subr.bf16.mxu0 %v4515
  %5185 = vmatpush1.bf16.msra.mxu0 %v4514
  %5186 = vmatprep.subr.bf16.mxu0 %v4519
  %5187 = vmatpush1.bf16.msra.mxu0 %v4518
  %5188 = vmatprep.subr.bf16.mxu0 %v4523
  %5189 = vmatpush1.bf16.msra.mxu0 %v4522
  %5190 = vmatprep.subr.bf16.mxu0 %v4527
  %5191 = vmatpush1.bf16.msra.mxu0 %v4526
  %5192 = vmatprep.subr.bf16.mxu0 %v4531
  %5193 = vmatpush1.bf16.msra.mxu0 %v4530
  %5194 = vmatprep.subr.bf16.mxu0 %v4535
  %5195 = vmatpush1.bf16.msra.mxu0 %v4534
  %5196 = vmatprep.subr.bf16.mxu0 %v4539
  %5197 = vmatpush1.bf16.msra.mxu0 %v4538
  %5198 = vmatprep.subr.bf16.mxu0 %v4543
  %5199 = vmatpush1.bf16.msra.mxu0 %v4542
  %5200 = vmatprep.subr.bf16.mxu0 %v4547
  %5201 = vmatpush1.bf16.msra.mxu0 %v4546
  %5202 = vmatprep.subr.bf16.mxu0 %v4551
  %5203 = vmatpush1.bf16.msra.mxu0 %v4550
  %5204 = vmatprep.subr.bf16.mxu0 %v4555
  %5205 = vmatpush1.bf16.msra.mxu0 %v4554
  %5206 = vmatprep.subr.bf16.mxu0 %v4559
  %5207 = vmatpush1.bf16.msra.mxu0 %v4558
  %5208 = vmatprep.subr.bf16.mxu0 %v4563
  %5209 = vmatpush1.bf16.msra.mxu0 %v4562
  %5210 = vmatprep.subr.bf16.mxu0 %v4567
  %5211 = vmatpush1.bf16.msra.mxu0 %v4566
  %5212 = vmatprep.mubr.bf16.mxu0 %v3451
  %5213 = vmatmul.mubr.bf16.gmra.mrb[0].mxu0 %v3450
  %v5214 = vpop.f32.mrb[0].mxu0
  %v5215 = vadd.f32 %v3727, %v5214
  %v5216 = vpop.f32.mrb[0].mxu0
  %v5217 = vadd.f32 %v3731, %v5216
  %v5218 = vpop.f32.mrb[0].mxu0
  %v5219 = vpop.f32.mrb[0].mxu0
  %5220 = vdwg.mxu0
  %5221 = vmatprep.subr.bf16.mxu0 %v4571
  %5222 = vmatpush1.bf16.msra.mxu0 %v4570
  %5223 = vmatprep.subr.bf16.mxu0 %v4575
  %5224 = vmatpush1.bf16.msra.mxu0 %v4574
  %5225 = vmatprep.subr.bf16.mxu0 %v4579
  %5226 = vmatpush1.bf16.msra.mxu0 %v4578
  %5227 = vmatprep.subr.bf16.mxu0 %v4583
  %5228 = vmatpush1.bf16.msra.mxu0 %v4582
  %5229 = vmatprep.subr.bf16.mxu0 %v4587
  %5230 = vmatpush1.bf16.msra.mxu0 %v4586
  %5231 = vmatprep.subr.bf16.mxu0 %v4591
  %5232 = vmatpush1.bf16.msra.mxu0 %v4590
  %5233 = vmatprep.subr.bf16.mxu0 %v4595
  %5234 = vmatpush1.bf16.msra.mxu0 %v4594
  %5235 = vmatprep.subr.bf16.mxu0 %v4599
  %5236 = vmatpush1.bf16.msra.mxu0 %v4598
  %5237 = vmatprep.subr.bf16.mxu0 %v4603
  %5238 = vmatpush1.bf16.msra.mxu0 %v4602
  %5239 = vmatprep.subr.bf16.mxu0 %v4607
  %5240 = vmatpush1.bf16.msra.mxu0 %v4606
  %5241 = vmatprep.subr.bf16.mxu0 %v4611
  %5242 = vmatpush1.bf16.msra.mxu0 %v4610
  %5243 = vmatprep.subr.bf16.mxu0 %v4615
  %5244 = vmatpush1.bf16.msra.mxu0 %v4614
  %5245 = vmatprep.subr.bf16.mxu0 %v4619
  %5246 = vmatpush1.bf16.msra.mxu0 %v4618
  %5247 = vmatprep.subr.bf16.mxu0 %v4623
  %5248 = vmatpush1.bf16.msra.mxu0 %v4622
  %5249 = vmatprep.subr.bf16.mxu0 %v4627
  %5250 = vmatpush1.bf16.msra.mxu0 %v4626
  %5251 = vmatprep.subr.bf16.mxu0 %v4631
  %5252 = vmatpush1.bf16.msra.mxu0 %v4630
  %5253 = vmatprep.mubr.bf16.mxu0 %v3453
  %5254 = vmatmul.mubr.bf16.gmra.mrb[0].mxu0 %v3452
  %v5255 = vpop.f32.mrb[0].mxu0
  %v5256 = vadd.f32 %v5215, %v5255
  %v5257 = vpop.f32.mrb[0].mxu0
  %v5258 = vadd.f32 %v5217, %v5257
  %v5259 = vpop.f32.mrb[0].mxu0
  %v5260 = vpop.f32.mrb[0].mxu0
  %5261 = vdwg.mxu0
  %5262 = vmatprep.subr.bf16.mxu0 %v4635
  %5263 = vmatpush1.bf16.msra.mxu0 %v4634
  %5264 = vmatprep.subr.bf16.mxu0 %v4639
  %5265 = vmatpush1.bf16.msra.mxu0 %v4638
  %5266 = vmatprep.subr.bf16.mxu0 %v4643
  %5267 = vmatpush1.bf16.msra.mxu0 %v4642
  %5268 = vmatprep.subr.bf16.mxu0 %v4647
  %5269 = vmatpush1.bf16.msra.mxu0 %v4646
  %5270 = vmatprep.subr.bf16.mxu0 %v4651
  %5271 = vmatpush1.bf16.msra.mxu0 %v4650
  %5272 = vmatprep.subr.bf16.mxu0 %v4655
  %5273 = vmatpush1.bf16.msra.mxu0 %v4654
  %5274 = vmatprep.subr.bf16.mxu0 %v4659
  %5275 = vmatpush1.bf16.msra.mxu0 %v4658
  %5276 = vmatprep.subr.bf16.mxu0 %v4663
  %5277 = vmatpush1.bf16.msra.mxu0 %v4662
  %5278 = vmatprep.subr.bf16.mxu0 %v4667
  %5279 = vmatpush1.bf16.msra.mxu0 %v4666
  %5280 = vmatprep.subr.bf16.mxu0 %v4671
  %5281 = vmatpush1.bf16.msra.mxu0 %v4670
  %5282 = vmatprep.subr.bf16.mxu0 %v4675
  %5283 = vmatpush1.bf16.msra.mxu0 %v4674
  %5284 = vmatprep.subr.bf16.mxu0 %v4679
  %5285 = vmatpush1.bf16.msra.mxu0 %v4678
  %5286 = vmatprep.subr.bf16.mxu0 %v4683
  %5287 = vmatpush1.bf16.msra.mxu0 %v4682
  %5288 = vmatprep.subr.bf16.mxu0 %v4687
  %5289 = vmatpush1.bf16.msra.mxu0 %v4686
  %5290 = vmatprep.subr.bf16.mxu0 %v4691
  %5291 = vmatpush1.bf16.msra.mxu0 %v4690
  %5292 = vmatprep.subr.bf16.mxu0 %v4695
  %5293 = vmatpush1.bf16.msra.mxu0 %v4694
  %5294 = vmatprep.mubr.bf16.mxu0 %v3455
  %5295 = vmatmul.mubr.bf16.gmra.mrb[0].mxu0 %v3454
  %v5296 = vpop.f32.mrb[0].mxu0
  %v5297 = vadd.f32 %v5256, %v5296
  %v5298 = vpop.f32.mrb[0].mxu0
  %v5299 = vadd.f32 %v5258, %v5298
  %v5300 = vpop.f32.mrb[0].mxu0
  %v5301 = vpop.f32.mrb[0].mxu0
  %5302 = vdwg.mxu0
  %5303 = vmatprep.subr.bf16.mxu0 %v4699
  %5304 = vmatpush1.bf16.msra.mxu0 %v4698
  %5305 = vmatprep.subr.bf16.mxu0 %v4703
  %5306 = vmatpush1.bf16.msra.mxu0 %v4702
  %5307 = vmatprep.subr.bf16.mxu0 %v4707
  %5308 = vmatpush1.bf16.msra.mxu0 %v4706
  %5309 = vmatprep.subr.bf16.mxu0 %v4711
  %5310 = vmatpush1.bf16.msra.mxu0 %v4710
  %5311 = vmatprep.subr.bf16.mxu0 %v4715
  %5312 = vmatpush1.bf16.msra.mxu0 %v4714
  %5313 = vmatprep.subr.bf16.mxu0 %v4719
  %5314 = vmatpush1.bf16.msra.mxu0 %v4718
  %5315 = vmatprep.subr.bf16.mxu0 %v4723
  %5316 = vmatpush1.bf16.msra.mxu0 %v4722
  %5317 = vmatprep.subr.bf16.mxu0 %v4727
  %5318 = vmatpush1.bf16.msra.mxu0 %v4726
  %5319 = vmatprep.subr.bf16.mxu0 %v4731
  %5320 = vmatpush1.bf16.msra.mxu0 %v4730
  %5321 = vmatprep.subr.bf16.mxu0 %v4735
  %5322 = vmatpush1.bf16.msra.mxu0 %v4734
  %5323 = vmatprep.subr.bf16.mxu0 %v4739
  %5324 = vmatpush1.bf16.msra.mxu0 %v4738
  %5325 = vmatprep.subr.bf16.mxu0 %v4743
  %5326 = vmatpush1.bf16.msra.mxu0 %v4742
  %5327 = vmatprep.subr.bf16.mxu0 %v4747
  %5328 = vmatpush1.bf16.msra.mxu0 %v4746
  %5329 = vmatprep.subr.bf16.mxu0 %v4751
  %5330 = vmatpush1.bf16.msra.mxu0 %v4750
  %5331 = vmatprep.subr.bf16.mxu0 %v4755
  %5332 = vmatpush1.bf16.msra.mxu0 %v4754
  %5333 = vmatprep.subr.bf16.mxu0 %v4759
  %5334 = vmatpush1.bf16.msra.mxu0 %v4758
  %5335 = vmatprep.mubr.bf16.mxu0 %v3457
  %5336 = vmatmul.mubr.bf16.gmra.mrb[0].mxu0 %v3456
  %v5337 = vpop.f32.mrb[0].mxu0
  %v5338 = vadd.f32 %v5297, %v5337
  %v5339 = vpop.f32.mrb[0].mxu0
  %v5340 = vadd.f32 %v5299, %v5339
  %v5341 = vpop.f32.mrb[0].mxu0
  %v5342 = vpop.f32.mrb[0].mxu0
  %5343 = vdwg.mxu0
  %v5344 = vtanh.pop %v5174
  %v5345 = vtanh.pop %v5176
  %v5346 = vtanh.pop %v5338
  %v5347 = vtanh.pop %v5340
  %v5348 = vpack.c.bf16 %v5344, %v5344
  %v5349 = vpack.c.bf16 %v5345, %v5345
  %v5350 = vpack.c.bf16 %v5346, %v5346
  %v5351 = vpack.c.bf16 %v5347, %v5347
  %v5352 = vld [vmem:[%s5] sm:$0xf]
  %v5353 = vld [vmem:[%s5 + $0x4] sm:$0xf]
  %v5354 = vld [vmem:[%s5 + $0x8] sm:$0xf]
  %v5355 = vld [vmem:[%s5 + $0xc] sm:$0xf]
  %v5356 = vld [vmem:[%s5 + $0x10] sm:$0xf]
  %v5357 = vld [vmem:[%s5 + $0x14] sm:$0xf]
  %v5358 = vld [vmem:[%s5 + $0x18] sm:$0xf]
  %v5359 = vld [vmem:[%s5 + $0x1c] sm:$0xf]
  %v5360 = vld [vmem:[%s5 + $0x20] sm:$0xf]
  %v5361 = vld [vmem:[%s5 + $0x24] sm:$0xf]
  %v5362 = vld [vmem:[%s5 + $0x28] sm:$0xf]
  %v5363 = vld [vmem:[%s5 + $0x2c] sm:$0xf]
  %v5364 = vld [vmem:[%s5 + $0x30] sm:$0xf]
  %v5365 = vld [vmem:[%s5 + $0x34] sm:$0xf]
  %v5366 = vld [vmem:[%s5 + $0x38] sm:$0xf]
  %v5367 = vld [vmem:[%s5 + $0x3c] sm:$0xf]
  %v5368 = vld [vmem:[%s5 + $0x40] sm:$0xf]
  %v5369 = vld [vmem:[%s5 + $0x44] sm:$0xf]
  %v5370 = vld [vmem:[%s5 + $0x48] sm:$0xf]
  %v5371 = vld [vmem:[%s5 + $0x4c] sm:$0xf]
  %v5372 = vld [vmem:[%s5 + $0x50] sm:$0xf]
  %v5373 = vld [vmem:[%s5 + $0x54] sm:$0xf]
  %v5374 = vld [vmem:[%s5 + $0x58] sm:$0xf]
  %v5375 = vld [vmem:[%s5 + $0x5c] sm:$0xf]
  %v5376 = vld [vmem:[%s5 + $0x60] sm:$0xf]
  %v5377 = vld [vmem:[%s5 + $0x64] sm:$0xf]
  %v5378 = vld [vmem:[%s5 + $0x68] sm:$0xf]
  %v5379 = vld [vmem:[%s5 + $0x6c] sm:$0xf]
  %v5380 = vld [vmem:[%s5 + $0x70] sm:$0xf]
  %v5381 = vld [vmem:[%s5 + $0x74] sm:$0xf]
  %v5382 = vld [vmem:[%s5 + $0x78] sm:$0xf]
  %v5383 = vld [vmem:[%s5 + $0x7c] sm:$0xf]
  %v5384 = vld [vmem:[%s5 + $0x80] sm:$0xf]
  %v5385 = vld [vmem:[%s5 + $0x84] sm:$0xf]
  %v5386 = vld [vmem:[%s5 + $0x88] sm:$0xf]
  %v5387 = vld [vmem:[%s5 + $0x8c] sm:$0xf]
  %v5388 = vld [vmem:[%s5 + $0x90] sm:$0xf]
  %v5389 = vld [vmem:[%s5 + $0x94] sm:$0xf]
  %v5390 = vld [vmem:[%s5 + $0x98] sm:$0xf]
  %v5391 = vld [vmem:[%s5 + $0x9c] sm:$0xf]
  %v5392 = vld [vmem:[%s5 + $0xa0] sm:$0xf]
  %v5393 = vld [vmem:[%s5 + $0xa4] sm:$0xf]
  %v5394 = vld [vmem:[%s5 + $0xa8] sm:$0xf]
  %v5395 = vld [vmem:[%s5 + $0xac] sm:$0xf]
  %v5396 = vld [vmem:[%s5 + $0xb0] sm:$0xf]
  %v5397 = vld [vmem:[%s5 + $0xb4] sm:$0xf]
  %v5398 = vld [vmem:[%s5 + $0xb8] sm:$0xf]
  %v5399 = vld [vmem:[%s5 + $0xbc] sm:$0xf]
  %v5400 = vld [vmem:[%s5 + $0xc0] sm:$0xf]
  %v5401 = vld [vmem:[%s5 + $0xc4] sm:$0xf]
  %v5402 = vld [vmem:[%s5 + $0xc8] sm:$0xf]
  %v5403 = vld [vmem:[%s5 + $0xcc] sm:$0xf]
  %v5404 = vld [vmem:[%s5 + $0xd0] sm:$0xf]
  %v5405 = vld [vmem:[%s5 + $0xd4] sm:$0xf]
  %v5406 = vld [vmem:[%s5 + $0xd8] sm:$0xf]
  %v5407 = vld [vmem:[%s5 + $0xdc] sm:$0xf]
  %v5408 = vld [vmem:[%s5 + $0xe0] sm:$0xf]
  %v5409 = vld [vmem:[%s5 + $0xe4] sm:$0xf]
  %v5410 = vld [vmem:[%s5 + $0xe8] sm:$0xf]
  %v5411 = vld [vmem:[%s5 + $0xec] sm:$0xf]
  %v5412 = vld [vmem:[%s5 + $0xf0] sm:$0xf]
  %v5413 = vld [vmem:[%s5 + $0xf4] sm:$0xf]
  %v5414 = vld [vmem:[%s5 + $0xf8] sm:$0xf]
  %v5415 = vld [vmem:[%s5 + $0xfc] sm:$0xf]
  %v5416 = vld [vmem:[%s6] sm:$0x1]
  %v5418 = vlaneseq
  %v5419 = vshrl.u32 %v5418, 7
  %v5420 = vsub.s32 0, %v5419
  %v5421 = vrot.slane %v5416, %v5420
  %v5487 = vunpack.c.l.b16 %v5352
  %v5488 = vunpack.c.l.b16 %v5353
  %v5489 = vunpack.c.l.b16 %v5354
  %v5490 = vunpack.c.l.b16 %v5355
  %v5491 = vunpack.c.l.b16 %v5356
  %v5492 = vunpack.c.l.b16 %v5357
  %v5493 = vunpack.c.l.b16 %v5358
  %v5494 = vunpack.c.l.b16 %v5359
  %v5495 = vunpack.c.l.b16 %v5360
  %v5496 = vunpack.c.l.b16 %v5361
  %v5497 = vunpack.c.l.b16 %v5362
  %v5498 = vunpack.c.l.b16 %v5363
  %v5499 = vunpack.c.l.b16 %v5364
  %v5500 = vunpack.c.l.b16 %v5365
  %v5501 = vunpack.c.l.b16 %v5366
  %v5502 = vunpack.c.l.b16 %v5367
  %v5503 = vunpack.c.l.b16 %v5368
  %v5504 = vunpack.c.l.b16 %v5369
  %v5505 = vunpack.c.l.b16 %v5370
  %v5506 = vunpack.c.l.b16 %v5371
  %v5507 = vunpack.c.l.b16 %v5372
  %v5508 = vunpack.c.l.b16 %v5373
  %v5509 = vunpack.c.l.b16 %v5374
  %v5510 = vunpack.c.l.b16 %v5375
  %v5511 = vunpack.c.l.b16 %v5376
  %v5512 = vunpack.c.l.b16 %v5377
  %v5513 = vunpack.c.l.b16 %v5378
  %v5514 = vunpack.c.l.b16 %v5379
  %v5515 = vunpack.c.l.b16 %v5380
  %v5516 = vunpack.c.l.b16 %v5381
  %v5517 = vunpack.c.l.b16 %v5382
  %v5518 = vunpack.c.l.b16 %v5383
  %v5519 = vunpack.c.l.b16 %v5384
  %v5520 = vunpack.c.l.b16 %v5385
  %v5521 = vunpack.c.l.b16 %v5386
  %v5522 = vunpack.c.l.b16 %v5387
  %v5523 = vunpack.c.l.b16 %v5388
  %v5524 = vunpack.c.l.b16 %v5389
  %v5525 = vunpack.c.l.b16 %v5390
  %v5526 = vunpack.c.l.b16 %v5391
  %v5527 = vunpack.c.l.b16 %v5392
  %v5528 = vunpack.c.l.b16 %v5393
  %v5529 = vunpack.c.l.b16 %v5394
  %v5530 = vunpack.c.l.b16 %v5395
  %v5531 = vunpack.c.l.b16 %v5396
  %v5532 = vunpack.c.l.b16 %v5397
  %v5533 = vunpack.c.l.b16 %v5398
  %v5534 = vunpack.c.l.b16 %v5399
  %v5535 = vunpack.c.l.b16 %v5400
  %v5536 = vunpack.c.l.b16 %v5401
  %v5537 = vunpack.c.l.b16 %v5402
  %v5538 = vunpack.c.l.b16 %v5403
  %v5539 = vunpack.c.l.b16 %v5404
  %v5540 = vunpack.c.l.b16 %v5405
  %v5541 = vunpack.c.l.b16 %v5406
  %v5542 = vunpack.c.l.b16 %v5407
  %v5543 = vunpack.c.l.b16 %v5408
  %v5544 = vunpack.c.l.b16 %v5409
  %v5545 = vunpack.c.l.b16 %v5410
  %v5546 = vunpack.c.l.b16 %v5411
  %v5547 = vunpack.c.l.b16 %v5412
  %v5548 = vunpack.c.l.b16 %v5413
  %v5549 = vunpack.c.l.b16 %v5414
  %v5550 = vunpack.c.l.b16 %v5415
  %v5551 = vpack.c.b16 %v5488, %v5487
  %v5552 = vpack.c.b16 %v5490, %v5489
  %v5553 = vpack.c.b16 %v5492, %v5491
  %v5554 = vpack.c.b16 %v5494, %v5493
  %v5555 = vpack.c.b16 %v5496, %v5495
  %v5556 = vpack.c.b16 %v5498, %v5497
  %v5557 = vpack.c.b16 %v5500, %v5499
  %v5558 = vpack.c.b16 %v5502, %v5501
  %v5559 = vpack.c.b16 %v5504, %v5503
  %v5560 = vpack.c.b16 %v5506, %v5505
  %v5561 = vpack.c.b16 %v5508, %v5507
  %v5562 = vpack.c.b16 %v5510, %v5509
  %v5563 = vpack.c.b16 %v5512, %v5511
  %v5564 = vpack.c.b16 %v5514, %v5513
  %v5565 = vpack.c.b16 %v5516, %v5515
  %v5566 = vpack.c.b16 %v5518, %v5517
  %v5567 = vpack.c.b16 %v5520, %v5519
  %v5568 = vpack.c.b16 %v5522, %v5521
  %v5569 = vpack.c.b16 %v5524, %v5523
  %v5570 = vpack.c.b16 %v5526, %v5525
  %v5571 = vpack.c.b16 %v5528, %v5527
  %v5572 = vpack.c.b16 %v5530, %v5529
  %v5573 = vpack.c.b16 %v5532, %v5531
  %v5574 = vpack.c.b16 %v5534, %v5533
  %v5575 = vpack.c.b16 %v5536, %v5535
  %v5576 = vpack.c.b16 %v5538, %v5537
  %v5577 = vpack.c.b16 %v5540, %v5539
  %v5578 = vpack.c.b16 %v5542, %v5541
  %v5579 = vpack.c.b16 %v5544, %v5543
  %v5580 = vpack.c.b16 %v5546, %v5545
  %v5581 = vpack.c.b16 %v5548, %v5547
  %v5582 = vpack.c.b16 %v5550, %v5549
  %5615 = vmatprep.subr.bf16.mxu0 0
  %5616 = vmatpush1.bf16.msra.mxu0 %v5551
  %5617 = vmatprep.subr.bf16.mxu0 0
  %5618 = vmatpush1.bf16.msra.mxu0 %v5552
  %5619 = vmatprep.subr.bf16.mxu0 0
  %5620 = vmatpush1.bf16.msra.mxu0 %v5553
  %5621 = vmatprep.subr.bf16.mxu0 0
  %5622 = vmatpush1.bf16.msra.mxu0 %v5554
  %5623 = vmatprep.subr.bf16.mxu0 0
  %5624 = vmatpush1.bf16.msra.mxu0 %v5555
  %5625 = vmatprep.subr.bf16.mxu0 0
  %5626 = vmatpush1.bf16.msra.mxu0 %v5556
  %5627 = vmatprep.subr.bf16.mxu0 0
  %5628 = vmatpush1.bf16.msra.mxu0 %v5557
  %5629 = vmatprep.subr.bf16.mxu0 0
  %5630 = vmatpush1.bf16.msra.mxu0 %v5558
  %5631 = vmatprep.subr.bf16.mxu0 0
  %5632 = vmatpush1.bf16.msra.mxu0 %v5559
  %5633 = vmatprep.subr.bf16.mxu0 0
  %5634 = vmatpush1.bf16.msra.mxu0 %v5560
  %5635 = vmatprep.subr.bf16.mxu0 0
  %5636 = vmatpush1.bf16.msra.mxu0 %v5561
  %5637 = vmatprep.subr.bf16.mxu0 0
  %5638 = vmatpush1.bf16.msra.mxu0 %v5562
  %5639 = vmatprep.subr.bf16.mxu0 0
  %5640 = vmatpush1.bf16.msra.mxu0 %v5563
  %5641 = vmatprep.subr.bf16.mxu0 0
  %5642 = vmatpush1.bf16.msra.mxu0 %v5564
  %5643 = vmatprep.subr.bf16.mxu0 0
  %5644 = vmatpush1.bf16.msra.mxu0 %v5565
  %5645 = vmatprep.subr.bf16.mxu0 0
  %5646 = vmatpush1.bf16.msra.mxu0 %v5566
  %5647 = vmatprep.mubr.bf16.mxu0 %v5349
  %5648 = vmatmul.mubr.bf16.gmra.mrb[0].mxu0 %v5348
  %v5649 = vpop.f32.mrb[0].mxu0
  %v5650 = vadd.f32 %v5421, %v5649
  %v5651 = vpop.f32.mrb[0].mxu0
  %v5652 = vpop.f32.mrb[0].mxu0
  %v5653 = vpop.f32.mrb[0].mxu0
  %5654 = vdwg.mxu0
  %5655 = vmatprep.subr.bf16.mxu0 0
  %5656 = vmatpush1.bf16.msra.mxu0 %v5567
  %5657 = vmatprep.subr.bf16.mxu0 0
  %5658 = vmatpush1.bf16.msra.mxu0 %v5568
  %5659 = vmatprep.subr.bf16.mxu0 0
  %5660 = vmatpush1.bf16.msra.mxu0 %v5569
  %5661 = vmatprep.subr.bf16.mxu0 0
  %5662 = vmatpush1.bf16.msra.mxu0 %v5570
  %5663 = vmatprep.subr.bf16.mxu0 0
  %5664 = vmatpush1.bf16.msra.mxu0 %v5571
  %5665 = vmatprep.subr.bf16.mxu0 0
  %5666 = vmatpush1.bf16.msra.mxu0 %v5572
  %5667 = vmatprep.subr.bf16.mxu0 0
  %5668 = vmatpush1.bf16.msra.mxu0 %v5573
  %5669 = vmatprep.subr.bf16.mxu0 0
  %5670 = vmatpush1.bf16.msra.mxu0 %v5574
  %5671 = vmatprep.subr.bf16.mxu0 0
  %5672 = vmatpush1.bf16.msra.mxu0 %v5575
  %5673 = vmatprep.subr.bf16.mxu0 0
  %5674 = vmatpush1.bf16.msra.mxu0 %v5576
  %5675 = vmatprep.subr.bf16.mxu0 0
  %5676 = vmatpush1.bf16.msra.mxu0 %v5577
  %5677 = vmatprep.subr.bf16.mxu0 0
  %5678 = vmatpush1.bf16.msra.mxu0 %v5578
  %5679 = vmatprep.subr.bf16.mxu0 0
  %5680 = vmatpush1.bf16.msra.mxu0 %v5579
  %5681 = vmatprep.subr.bf16.mxu0 0
  %5682 = vmatpush1.bf16.msra.mxu0 %v5580
  %5683 = vmatprep.subr.bf16.mxu0 0
  %5684 = vmatpush1.bf16.msra.mxu0 %v5581
  %5685 = vmatprep.subr.bf16.mxu0 0
  %5686 = vmatpush1.bf16.msra.mxu0 %v5582
  %5687 = vmatprep.mubr.bf16.mxu0 %v5351
  %5688 = vmatmul.mubr.bf16.gmra.mrb[0].mxu0 %v5350
  %v5689 = vpop.f32.mrb[0].mxu0
  %v5690 = vadd.f32 %v5650, %v5689
  %v5691 = vpop.f32.mrb[0].mxu0
  %v5692 = vpop.f32.mrb[0].mxu0
  %v5693 = vpop.f32.mrb[0].mxu0
  %5694 = vdwg.mxu0
  %5695 = vst [vmem:[%s7] sm:$0xff] %v5690
  // Predicated region
  $region30: #{fst_lay_uni_dense_net.1} parent=0 // pred_check
    _
  $region31: #{fst_lay_uni_dense_net.1} parent=0 // pred_check_branch
    %5697 = sbr.rel (0) target = $region33
  $region32: #{fst_lay_uni_dense_net.1} parent=0 // pred_region
    _
  $region33: #{fst_lay_uni_dense_net.1} parent=0 // pred_fallthru
    _
  // Predicated region
  $region34: #{fst_lay_uni_dense_net.1} parent=0 // pred_check
    _
  $region35: #{fst_lay_uni_dense_net.1} parent=0 // pred_check_branch
    %5699 = sbr.rel (0) target = $region37
  $region36: #{fst_lay_uni_dense_net.1} parent=0 // pred_region
    _
  $region37: #{fst_lay_uni_dense_net.1} parent=0 // pred_fallthru
    _

</llo_original>
